<compile_context>
chip_gen: v6e
topology: v6e:2x2x1
jax: 0.10.0
libtpu: 0.0.40
codegen_flags: <defaults>
</compile_context>

<pallas_src>
import functools

import numpy as np
import jax
import jax.numpy as jnp
from jax import lax
from jax.experimental import pallas as pl
from jax.experimental.pallas import tpu as pltpu


# ----------------------------- Pallas kernel ------------------------------- #

def _basic_block_kernel(xp_ref, w1_ref, b1_ref, w2_ref, b2_ref, o_ref, y1p_ref,
                        *, H, W, Cin, Cout):
    # xp_ref : (1, H+2, W+2, Cin) bf16   spatially padded NHWC input (one image)
    # w1_ref : (9*Cin, Cout)      bf16   conv1 weights, BN1 scale folded in
    # b1_ref : (1, Cout)          f32    BN1 shift
    # w2_ref : (9*Cout+Cin, Cp)   bf16   conv2 weights (BN2 scale folded) + residual
    #                                    identity rows; out channels padded to Cp
    # b2_ref : (1, Cp)            f32    BN2 shift (zero-padded)
    # o_ref  : (1, H*W, Cp)       f32    lane-dense output block
    # y1p_ref: (H+2, W+2, Cout)   bf16   VMEM scratch for conv1 output (+ zero halo)
    xp = xp_ref[0]                                                # (H+2, W+2, Cin)

    # ---- conv1 (3x3, pad 1) as one MXU matmul on in-VMEM im2col patches ----
    cols1 = [xp[dy:dy + H, dx:dx + W, :] for dy in range(3) for dx in range(3)]
    p1 = jnp.concatenate(cols1, axis=-1).reshape(H * W, 9 * Cin)
    y1 = jnp.dot(p1, w1_ref[...], preferred_element_type=jnp.float32)
    y1 = jax.nn.sigmoid(y1 + b1_ref[...])                         # (H*W, Cout) f32

    # ---- keep conv1 output in VMEM with a zero halo for conv2's 3x3 gather ----
    y1p_ref[...] = jnp.zeros_like(y1p_ref)
    y1p_ref[1:H + 1, 1:W + 1, :] = y1.reshape(H, W, Cout).astype(jnp.bfloat16)

    # ---- conv2 + BN2 shift + residual + sigmoid (one matmul) ----
    cols2 = [y1p_ref[dy:dy + H, dx:dx + W, :] for dy in range(3) for dx in range(3)]
    cols2.append(xp[1:H + 1, 1:W + 1, :])                         # residual "tap"
    p2 = jnp.concatenate(cols2, axis=-1).reshape(H * W, 9 * Cout + Cin)
    y2 = jnp.dot(p2, w2_ref[...], preferred_element_type=jnp.float32)  # (H*W, Cp)
    o_ref[0] = jax.nn.sigmoid(y2 + b2_ref[...])


# ------------------------------- JAX glue ---------------------------------- #

def _fold_bn(bn, eps=1e-5):
    scale = bn["gamma"] / jnp.sqrt(bn["var"] + eps)
    shift = bn["beta"] - bn["mean"] * scale
    return scale, shift


def _w_to_mat(w_oihw):
    """PyTorch (Cout, Cin, 3, 3) -> (9*Cin, Cout); row order (ky, kx, cin)."""
    cout, cin = w_oihw.shape[0], w_oihw.shape[1]
    return jnp.transpose(w_oihw, (2, 3, 1, 0)).reshape(9 * cin, cout)


def basic_block_forward(x_nchw, params):
    n, cin, h, w = x_nchw.shape
    cout = params["w1"].shape[0]
    assert cin == cout, "downsample=None path requires inplanes == planes"
    cp = pl.cdiv(cout, 128) * 128            # lane-dense padded output channels

    # Fold eval-mode BN: scale into the weight columns, keep only the shift.
    s1, b1 = _fold_bn(params["bn1"])
    s2, b2 = _fold_bn(params["bn2"])
    w1m = (_w_to_mat(params["w1"]) * s1[None, :]).astype(jnp.bfloat16)      # (9Cin, Cout)
    w2m = _w_to_mat(params["w2"]) * s2[None, :]                             # (9Cout, Cout)
    # Residual identity rows (added AFTER bn2, so unscaled).
    w2m = jnp.concatenate([w2m, jnp.eye(cin, cout, dtype=jnp.float32)], axis=0)
    # Zero-pad output channels to a multiple of 128 for unmasked stores.
    w2p = (jnp.zeros((9 * cout + cin, cp), jnp.float32)
              .at[:, :cout].set(w2m).astype(jnp.bfloat16))
    b1 = b1.reshape(1, cout).astype(jnp.float32)
    b2p = jnp.zeros((1, cp), jnp.float32).at[:, :cout].set(b2.reshape(1, cout))

    # NCHW -> NHWC (channels on lanes), add spatial zero halo, bf16 at the boundary.
    xp = jnp.transpose(x_nchw, (0, 2, 3, 1)).astype(jnp.bfloat16)
    xp = jnp.pad(xp, ((0, 0), (1, 1), (1, 1), (0, 0)))

    kernel = functools.partial(_basic_block_kernel, H=h, W=w, Cin=cin, Cout=cout)
    out = pl.pallas_call(
        kernel,
        out_shape=jax.ShapeDtypeStruct((n, h * w, cp), jnp.float32),
        grid_spec=pltpu.PrefetchScalarGridSpec(
            num_scalar_prefetch=0,
            grid=(n,),
            in_specs=[
                pl.BlockSpec((1, h + 2, w + 2, cin), lambda i: (i, 0, 0, 0)),
                pl.BlockSpec((9 * cin, cout), lambda i: (0, 0)),
                pl.BlockSpec((1, cout), lambda i: (0, 0)),
                pl.BlockSpec((9 * cout + cin, cp), lambda i: (0, 0)),
                pl.BlockSpec((1, cp), lambda i: (0, 0)),
            ],
            out_specs=pl.BlockSpec((1, h * w, cp), lambda i: (i, 0, 0)),
            scratch_shapes=[pltpu.VMEM((h + 2, w + 2, cout), jnp.bfloat16)],
        ),
        compiler_params=pltpu.CompilerParams(
            dimension_semantics=("parallel",)),
    )(xp, w1m, b1, w2p, b2p)

    out = out[:, :, :cout]                                   # drop channel padding
    return jnp.transpose(out.reshape(n, h, w, cout), (0, 3, 1, 2))   # NHWC -> NCHW


def init_basic_block_params(key, inplanes, planes):
    ks = jax.random.split(key, 10)
    w1 = jax.random.normal(ks[0], (planes, inplanes, 3, 3), jnp.float32) * np.sqrt(2.0 / (9 * inplanes))
    w2 = jax.random.normal(ks[1], (planes, planes, 3, 3), jnp.float32) * np.sqrt(2.0 / (9 * planes))
    bn1 = dict(gamma=1.0 + 0.1 * jax.random.normal(ks[2], (planes,), jnp.float32),
               beta=0.1 * jax.random.normal(ks[3], (planes,), jnp.float32),
               mean=0.05 * jax.random.normal(ks[4], (planes,), jnp.float32),
               var=1.0 + 0.1 * jax.random.uniform(ks[5], (planes,), jnp.float32))
    bn2 = dict(gamma=1.0 + 0.1 * jax.random.normal(ks[6], (planes,), jnp.float32),
               beta=0.1 * jax.random.normal(ks[7], (planes,), jnp.float32),
               mean=0.05 * jax.random.normal(ks[8], (planes,), jnp.float32),
               var=1.0 + 0.1 * jax.random.uniform(ks[9], (planes,), jnp.float32))
    return dict(w1=w1, w2=w2, bn1=bn1, bn2=bn2)


def _ref_forward(x_nchw, params):
    """Pure-JAX reference (lax conv) with the same bf16 quantization points as the kernel."""
    q = lambda t: t.astype(jnp.bfloat16).astype(jnp.float32)
    s1, b1 = _fold_bn(params["bn1"])
    s2, b2 = _fold_bn(params["bn2"])
    w1 = q(params["w1"] * s1[:, None, None, None])
    w2 = q(params["w2"] * s2[:, None, None, None])
    x = q(jnp.transpose(x_nchw, (0, 2, 3, 1)).astype(jnp.float32))
    conv = lambda t, wgt: lax.conv_general_dilated(
        t, wgt, (1, 1), "SAME", dimension_numbers=("NHWC", "OIHW", "NHWC"),
        precision=lax.Precision.HIGHEST)
    y = jax.nn.sigmoid(conv(x, w1) + b1)
    y = q(y)                                    # conv1 activation is bf16 in the kernel
    y = jax.nn.sigmoid(conv(y, w2) + b2 + x)    # residual = (quantized) x
    return jnp.transpose(y, (0, 3, 1, 2))


if __name__ == "__main__":
    key = jax.random.PRNGKey(0)
    kx, kp = jax.random.split(key)

    N, C, H, W = 2, 8, 16, 16   # inplanes == planes == 8, stride=1, downsample=None
    x = jax.random.normal(kx, (N, C, H, W), jnp.float32)
    params = init_basic_block_params(kp, C, C)

    out = jax.block_until_ready(basic_block_forward(x, params))
    ref = jax.block_until_ready(_ref_forward(x, params))

    assert out.shape == (N, C, H, W)
    np.testing.assert_allclose(np.asarray(out), np.asarray(ref), rtol=1e-3, atol=1e-3)
    print("KERNEL_OK")
</pallas_src>

<mosaic_0001>
module attributes {stable_mosaic.version = 11 : i64} {
  func.func @_basic_block_kernel(%arg0: i32, %arg1: memref<1x18x18x8xbf16, #tpu.memory_space<vmem>>, %arg2: memref<72x8xbf16, #tpu.memory_space<vmem>>, %arg3: memref<1x8xf32, #tpu.memory_space<vmem>>, %arg4: memref<80x128xbf16, #tpu.memory_space<vmem>>, %arg5: memref<1x128xf32, #tpu.memory_space<vmem>>, %arg6: memref<1x256x128xf32, #tpu.memory_space<vmem>>, %arg7: memref<18x18x8xbf16, #tpu.memory_space<vmem>>) attributes {dimension_semantics = [#tpu.dimension_semantics<parallel>], iteration_bounds = array<i64: 2>, scalar_prefetch = 0 : i64, scratch_operands = 1 : i64, tpu.core_type = #tpu.core_type<tc>, window_params = [{transform_indices = @transform_0, window_bounds = array<i64: 1, 18, 18, 8>}, {pipeline_mode = #tpu.pipeline_mode<synchronous>, transform_indices = @transform_1, window_bounds = array<i64: 72, 8>}, {pipeline_mode = #tpu.pipeline_mode<synchronous>, transform_indices = @transform_2, window_bounds = array<i64: 1, 8>}, {pipeline_mode = #tpu.pipeline_mode<synchronous>, transform_indices = @transform_3, window_bounds = array<i64: 80, 128>}, {pipeline_mode = #tpu.pipeline_mode<synchronous>, transform_indices = @transform_4, window_bounds = array<i64: 1, 128>}, {transform_indices = @transform_5, window_bounds = array<i64: 1, 256, 128>}]} {
    %c0 = arith.constant 0 : index
    %c0_0 = arith.constant 0 : index
    %c0_1 = arith.constant 0 : index
    %c0_2 = arith.constant 0 : index
    %0 = vector.load %arg1[%c0, %c0_0, %c0_1, %c0_2] : memref<1x18x18x8xbf16, #tpu.memory_space<vmem>>, vector<1x18x18x8xbf16>
    %1 = vector.shape_cast %0 : vector<1x18x18x8xbf16> to vector<18x18x8xbf16>
    %2 = vector.extract_strided_slice %1 {offsets = [0, 0, 0], sizes = [16, 16, 8], strides = [1, 1, 1]} : vector<18x18x8xbf16> to vector<16x16x8xbf16>
    %3 = vector.extract_strided_slice %1 {offsets = [0, 1, 0], sizes = [16, 16, 8], strides = [1, 1, 1]} : vector<18x18x8xbf16> to vector<16x16x8xbf16>
    %4 = vector.extract_strided_slice %1 {offsets = [0, 2, 0], sizes = [16, 16, 8], strides = [1, 1, 1]} : vector<18x18x8xbf16> to vector<16x16x8xbf16>
    %5 = vector.extract_strided_slice %1 {offsets = [1, 0, 0], sizes = [16, 16, 8], strides = [1, 1, 1]} : vector<18x18x8xbf16> to vector<16x16x8xbf16>
    %6 = vector.extract_strided_slice %1 {offsets = [1, 1, 0], sizes = [16, 16, 8], strides = [1, 1, 1]} : vector<18x18x8xbf16> to vector<16x16x8xbf16>
    %7 = vector.extract_strided_slice %1 {offsets = [1, 2, 0], sizes = [16, 16, 8], strides = [1, 1, 1]} : vector<18x18x8xbf16> to vector<16x16x8xbf16>
    %8 = vector.extract_strided_slice %1 {offsets = [2, 0, 0], sizes = [16, 16, 8], strides = [1, 1, 1]} : vector<18x18x8xbf16> to vector<16x16x8xbf16>
    %9 = vector.extract_strided_slice %1 {offsets = [2, 1, 0], sizes = [16, 16, 8], strides = [1, 1, 1]} : vector<18x18x8xbf16> to vector<16x16x8xbf16>
    %10 = vector.extract_strided_slice %1 {offsets = [2, 2, 0], sizes = [16, 16, 8], strides = [1, 1, 1]} : vector<18x18x8xbf16> to vector<16x16x8xbf16>
    %11 = tpu.concatenate %2, %3, %4, %5, %6, %7, %8, %9, %10 in 2 : vector<16x16x8xbf16>, vector<16x16x8xbf16>, vector<16x16x8xbf16>, vector<16x16x8xbf16>, vector<16x16x8xbf16>, vector<16x16x8xbf16>, vector<16x16x8xbf16>, vector<16x16x8xbf16>, vector<16x16x8xbf16> -> vector<16x16x72xbf16>
    %12 = vector.shape_cast %11 : vector<16x16x72xbf16> to vector<256x72xbf16>
    %c0_3 = arith.constant 0 : index
    %c0_4 = arith.constant 0 : index
    %13 = vector.load %arg2[%c0_3, %c0_4] : memref<72x8xbf16, #tpu.memory_space<vmem>>, vector<72x8xbf16>
    %cst = arith.constant dense<0.000000e+00> : vector<256x8xf32>
    %14 = tpu.matmul %12, %13, %cst {dimension_numbers = #tpu.dot_dimension_numbers<[1], [0], [0], [1], [0, 0, 1, 1], [], []>} : vector<256x72xbf16>, vector<72x8xbf16>, vector<256x8xf32> -> vector<256x8xf32>
    %c0_5 = arith.constant 0 : index
    %c0_6 = arith.constant 0 : index
    %15 = vector.load %arg3[%c0_5, %c0_6] : memref<1x8xf32, #tpu.memory_space<vmem>>, vector<1x8xf32>
    %16 = vector.broadcast %15 : vector<1x8xf32> to vector<256x8xf32>
    %17 = arith.addf %14, %16 : vector<256x8xf32>
    %18 = arith.negf %17 : vector<256x8xf32>
    %19 = math.exp %18 : vector<256x8xf32>
    %cst_7 = arith.constant 1.000000e+00 : f32
    %20 = vector.broadcast %cst_7 : f32 to vector<256x8xf32>
    %21 = arith.addf %20, %19 : vector<256x8xf32>
    %22 = arith.divf %20, %21 : vector<256x8xf32>
    %cst_8 = arith.constant 0.000000e+00 : bf16
    %23 = vector.broadcast %cst_8 : bf16 to vector<18x18x8xbf16>
    %c0_9 = arith.constant 0 : index
    %c0_10 = arith.constant 0 : index
    %c0_11 = arith.constant 0 : index
    %24 = vector.load %arg7[%c0_9, %c0_10, %c0_11] : memref<18x18x8xbf16, #tpu.memory_space<vmem>>, vector<18x18x8xbf16>
    tpu.vector_store %arg7[%c0_9, %c0_10, %c0_11], %23 {strides = array<i32>} : memref<18x18x8xbf16, #tpu.memory_space<vmem>>, vector<18x18x8xbf16>,
    %25 = vector.shape_cast %22 : vector<256x8xf32> to vector<16x16x8xf32>
    %26 = arith.truncf %25 : vector<16x16x8xf32> to vector<16x16x8xbf16>
    %c1 = arith.constant 1 : index
    %c1_12 = arith.constant 1 : index
    %c0_13 = arith.constant 0 : index
    %27 = vector.load %arg7[%c1, %c1_12, %c0_13] : memref<18x18x8xbf16, #tpu.memory_space<vmem>>, vector<16x16x8xbf16>
    tpu.vector_store %arg7[%c1, %c1_12, %c0_13], %26 {strides = array<i32>} : memref<18x18x8xbf16, #tpu.memory_space<vmem>>, vector<16x16x8xbf16>,
    %c0_14 = arith.constant 0 : index
    %c0_15 = arith.constant 0 : index
    %c0_16 = arith.constant 0 : index
    %28 = vector.load %arg7[%c0_14, %c0_15, %c0_16] : memref<18x18x8xbf16, #tpu.memory_space<vmem>>, vector<16x16x8xbf16>
    %c0_17 = arith.constant 0 : index
    %c1_18 = arith.constant 1 : index
    %c0_19 = arith.constant 0 : index
    %29 = vector.load %arg7[%c0_17, %c1_18, %c0_19] : memref<18x18x8xbf16, #tpu.memory_space<vmem>>, vector<16x16x8xbf16>
    %c0_20 = arith.constant 0 : index
    %c2 = arith.constant 2 : index
    %c0_21 = arith.constant 0 : index
    %30 = vector.load %arg7[%c0_20, %c2, %c0_21] : memref<18x18x8xbf16, #tpu.memory_space<vmem>>, vector<16x16x8xbf16>
    %c1_22 = arith.constant 1 : index
    %c0_23 = arith.constant 0 : index
    %c0_24 = arith.constant 0 : index
    %31 = vector.load %arg7[%c1_22, %c0_23, %c0_24] : memref<18x18x8xbf16, #tpu.memory_space<vmem>>, vector<16x16x8xbf16>
    %c1_25 = arith.constant 1 : index
    %c1_26 = arith.constant 1 : index
    %c0_27 = arith.constant 0 : index
    %32 = vector.load %arg7[%c1_25, %c1_26, %c0_27] : memref<18x18x8xbf16, #tpu.memory_space<vmem>>, vector<16x16x8xbf16>
    %c1_28 = arith.constant 1 : index
    %c2_29 = arith.constant 2 : index
    %c0_30 = arith.constant 0 : index
    %33 = vector.load %arg7[%c1_28, %c2_29, %c0_30] : memref<18x18x8xbf16, #tpu.memory_space<vmem>>, vector<16x16x8xbf16>
    %c2_31 = arith.constant 2 : index
    %c0_32 = arith.constant 0 : index
    %c0_33 = arith.constant 0 : index
    %34 = vector.load %arg7[%c2_31, %c0_32, %c0_33] : memref<18x18x8xbf16, #tpu.memory_space<vmem>>, vector<16x16x8xbf16>
    %c2_34 = arith.constant 2 : index
    %c1_35 = arith.constant 1 : index
    %c0_36 = arith.constant 0 : index
    %35 = vector.load %arg7[%c2_34, %c1_35, %c0_36] : memref<18x18x8xbf16, #tpu.memory_space<vmem>>, vector<16x16x8xbf16>
    %c2_37 = arith.constant 2 : index
    %c2_38 = arith.constant 2 : index
    %c0_39 = arith.constant 0 : index
    %36 = vector.load %arg7[%c2_37, %c2_38, %c0_39] : memref<18x18x8xbf16, #tpu.memory_space<vmem>>, vector<16x16x8xbf16>
    %37 = vector.extract_strided_slice %1 {offsets = [1, 1, 0], sizes = [16, 16, 8], strides = [1, 1, 1]} : vector<18x18x8xbf16> to vector<16x16x8xbf16>
    %38 = tpu.concatenate %28, %29, %30, %31, %32, %33, %34, %35, %36, %37 in 2 : vector<16x16x8xbf16>, vector<16x16x8xbf16>, vector<16x16x8xbf16>, vector<16x16x8xbf16>, vector<16x16x8xbf16>, vector<16x16x8xbf16>, vector<16x16x8xbf16>, vector<16x16x8xbf16>, vector<16x16x8xbf16>, vector<16x16x8xbf16> -> vector<16x16x80xbf16>
    %39 = vector.shape_cast %38 : vector<16x16x80xbf16> to vector<256x80xbf16>
    %c0_40 = arith.constant 0 : index
    %c0_41 = arith.constant 0 : index
    %40 = vector.load %arg4[%c0_40, %c0_41] : memref<80x128xbf16, #tpu.memory_space<vmem>>, vector<80x128xbf16>
    %cst_42 = arith.constant dense<0.000000e+00> : vector<256x128xf32>
    %41 = tpu.matmul %39, %40, %cst_42 {dimension_numbers = #tpu.dot_dimension_numbers<[1], [0], [0], [1], [0, 0, 1, 1], [], []>} : vector<256x80xbf16>, vector<80x128xbf16>, vector<256x128xf32> -> vector<256x128xf32>
    %c0_43 = arith.constant 0 : index
    %c0_44 = arith.constant 0 : index
    %42 = vector.load %arg5[%c0_43, %c0_44] : memref<1x128xf32, #tpu.memory_space<vmem>>, vector<1x128xf32>
    %43 = vector.broadcast %42 : vector<1x128xf32> to vector<256x128xf32>
    %44 = arith.addf %41, %43 : vector<256x128xf32>
    %45 = arith.negf %44 : vector<256x128xf32>
    %46 = math.exp %45 : vector<256x128xf32>
    %cst_45 = arith.constant 1.000000e+00 : f32
    %47 = vector.broadcast %cst_45 : f32 to vector<256x128xf32>
    %48 = arith.addf %47, %46 : vector<256x128xf32>
    %49 = arith.divf %47, %48 : vector<256x128xf32>
    %c0_46 = arith.constant 0 : index
    %c0_47 = arith.constant 0 : index
    %c0_48 = arith.constant 0 : index
    %50 = vector.load %arg6[%c0_46, %c0_47, %c0_48] : memref<1x256x128xf32, #tpu.memory_space<vmem>>, vector<1x256x128xf32>
    %51 = vector.shape_cast %50 : vector<1x256x128xf32> to vector<256x128xf32>
    %52 = vector.shape_cast %49 : vector<256x128xf32> to vector<1x256x128xf32>
    tpu.vector_store %arg6[%c0_46, %c0_47, %c0_48], %52 {strides = array<i32>} : memref<1x256x128xf32, #tpu.memory_space<vmem>>, vector<1x256x128xf32>,
    return
  }
  func.func @transform_0(%arg0: i32) -> (i32, i32, i32, i32) {
    %c0_i32 = arith.constant 0 : i32
    %c0_i32_0 = arith.constant 0 : i32
    %c0_i32_1 = arith.constant 0 : i32
    %c0_i32_2 = arith.constant 0 : i32
    return %arg0, %c0_i32, %c0_i32_0, %c0_i32_1 : i32, i32, i32, i32
  }
  func.func @transform_1(%arg0: i32) -> (i32, i32) {
    %c0_i32 = arith.constant 0 : i32
    %c0_i32_0 = arith.constant 0 : i32
    %c0_i32_1 = arith.constant 0 : i32
    return %c0_i32, %c0_i32_0 : i32, i32
  }
  func.func @transform_2(%arg0: i32) -> (i32, i32) {
    %c0_i32 = arith.constant 0 : i32
    %c0_i32_0 = arith.constant 0 : i32
    %c0_i32_1 = arith.constant 0 : i32
    return %c0_i32, %c0_i32_0 : i32, i32
  }
  func.func @transform_3(%arg0: i32) -> (i32, i32) {
    %c0_i32 = arith.constant 0 : i32
    %c0_i32_0 = arith.constant 0 : i32
    %c0_i32_1 = arith.constant 0 : i32
    return %c0_i32, %c0_i32_0 : i32, i32
  }
  func.func @transform_4(%arg0: i32) -> (i32, i32) {
    %c0_i32 = arith.constant 0 : i32
    %c0_i32_0 = arith.constant 0 : i32
    %c0_i32_1 = arith.constant 0 : i32
    return %c0_i32, %c0_i32_0 : i32, i32
  }
  func.func @transform_5(%arg0: i32) -> (i32, i32, i32) {
    %c0_i32 = arith.constant 0 : i32
    %c0_i32_0 = arith.constant 0 : i32
    %c0_i32_1 = arith.constant 0 : i32
    return %arg0, %c0_i32, %c0_i32_0 : i32, i32, i32
  }
}

</mosaic_0001>

<llo_original>
// kernel: tpu_custom_call.1
$region0: #{tpu_custom_call.1}
  #allocation0 [shape = 'u32[]', space=smem, size = 0x4, offset = 0x4, fixed_abs, tag = 'smem constant byte address 0x4 - core index']
  #allocation1 [shape = 'u32[144,128]{1,0:T(1,128)}', space=vmem, size = 0x12000, scoped, tag = 'internal scratch']
  #allocation2 [shape = 'bf16[18,18,8]{2,1,0:T(8,128)(2,1)}', space=vmem, size = 0x1b000, scoped, tag = 'scratch operand']
  %s0 = inlined_call_operand.vmem [shape: bf16[2,18,18,8], index: 0, kind: input, shape index: {}]
  %s1 = inlined_call_operand.vmem [shape: bf16[72,8], index: 1, kind: input, shape index: {}]
  %s2 = inlined_call_operand.vmem [shape: f32[1,8], index: 2, kind: input, shape index: {}]
  %s3 = inlined_call_operand.vmem [shape: bf16[80,128], index: 3, kind: input, shape index: {}]
  %s4 = inlined_call_operand.vmem [shape: f32[1,128], index: 4, kind: input, shape index: {}]
  %s5 = inlined_call_operand.hbm [shape: f32[2,256,128], index: 5, kind: output, shape index: {}]
  %s6 = sld [smem:[#allocation0]]
  $region53: #{tpu_custom_call.1} parent=0
    _
  %s8 = ssub.s32 1, %s6
  %s9 = scalar_select 0, %s8, %s6
  $region1: #{tpu_custom_call.1} parent=0
    #allocation3 [shape = 'u8[262144]{0}', space=vmem, size = 0x40000, scoped, tag = 'output window, operand 0']
    #allocation4 [shape = 's32[2]{0}', space=sflag, size = 0x8, scoped, tag = 'scoped memory for tpu_custom_call.1']
    %10 = vsyncpa [#allocation4], 0
    %s11 = scalar_lea.sflag [#allocation4], 1
    %12 = vsyncpa %s11, 0
    loop: start=0, step=1, limit=4
    $region2: #{tpu_custom_call.1} parent=1 // loop_pre_header
      _
    $region3: #{tpu_custom_call.1} parent=1 // loop_header
      %s14 = sphi 0, %s18
      %p15 = scmp.ge.s32.totalorder %s14, 4
      %s24 = sphi 0, %s26
      %s27 = sphi 0, %s24
      %s28 = sphi 0, %s27
      %s44 = sphi 0, %s28
      %s48 = sphi 0, %s48
      %s50 = sphi 0, %s48
      %s51 = sphi 0, %s50
      %s65 = sphi 0, %s51
      %s69 = sphi 0, %s69
      %s71 = sphi 0, %s69
      %s72 = sphi 0, %s71
      %s86 = sphi 0, %s72
      %s90 = sphi 0, %s90
      %s92 = sphi 0, %s90
      %s93 = sphi 0, %s92
      %s107 = sphi 0, %s93
      %s111 = sphi 0, %s111
      %s113 = sphi 0, %s111
      %s114 = sphi 0, %s113
      %s128 = sphi 0, %s114
      %s134 = sphi 0, %s136
      %s137 = sphi 0, %s134
      %s138 = sphi 0, %s137
      %s154 = sphi 0, %s138
    $region4: #{tpu_custom_call.1} parent=1 // loop_header_branch
      %17 = sbr.rel (%p15) target = $region8
    $region5: #{tpu_custom_call.1} parent=1 // loop_body
      %s19 = ssub.s32 %s14, 1
      %s20 = ssub.s32 %s14, 2
      %s21 = sadd.s32 %s14, 1
      %s22 = ssub.s32 %s14, %s21
      %p23 = scmp.eq.s32.totalorder %s22, 0
      %s25 = sadd.s32 %s24, 1
      %s26 = scalar_select %p23, %s24, %s25
      %p29 = pneg %p23
      %p30 = scmp.eq.s32.totalorder %s14, 1
      %p31 = por %p29, %p30
      %p32 = scmp.ne.s32.totalorder %s24, %s27
      %p33 = scmp.eq.s32.totalorder %s14, 0
      %p34 = por %p32, %p33
      %p35 = scmp.ne.s32.totalorder %s24, %s27
      %p36 = scmp.eq.s32.totalorder %s19, 1
      %p37 = por %p35, %p36
      %p38 = scmp.ne.s32.totalorder %s27, %s28
      %p39 = scmp.eq.s32.totalorder %s19, 0
      %p40 = por %p38, %p39
      %p41 = scmp.ne.s32.totalorder %s27, %s28
      %p42 = scmp.eq.s32.totalorder %s20, 1
      %p43 = por %p41, %p42
      %p45 = scmp.ne.s32.totalorder %s28, %s44
      %p46 = scmp.eq.s32.totalorder %s20, 0
      %p47 = por %p45, %p46
      %s49 = sadd.s32 %s48, 1
      %p52 = scmp.eq.s32.totalorder %s14, 1
      %p53 = scmp.ne.s32.totalorder %s48, %s50
      %p54 = scmp.eq.s32.totalorder %s14, 0
      %p55 = por %p53, %p54
      %p56 = scmp.ne.s32.totalorder %s48, %s50
      %p57 = scmp.eq.s32.totalorder %s19, 1
      %p58 = por %p56, %p57
      %p59 = scmp.ne.s32.totalorder %s50, %s51
      %p60 = scmp.eq.s32.totalorder %s19, 0
      %p61 = por %p59, %p60
      %p62 = scmp.ne.s32.totalorder %s50, %s51
      %p63 = scmp.eq.s32.totalorder %s20, 1
      %p64 = por %p62, %p63
      %p66 = scmp.ne.s32.totalorder %s51, %s65
      %p67 = scmp.eq.s32.totalorder %s20, 0
      %p68 = por %p66, %p67
      %s70 = sadd.s32 %s69, 1
      %p73 = scmp.eq.s32.totalorder %s14, 1
      %p74 = scmp.ne.s32.totalorder %s69, %s71
      %p75 = scmp.eq.s32.totalorder %s14, 0
      %p76 = por %p74, %p75
      %p77 = scmp.ne.s32.totalorder %s69, %s71
      %p78 = scmp.eq.s32.totalorder %s19, 1
      %p79 = por %p77, %p78
      %p80 = scmp.ne.s32.totalorder %s71, %s72
      %p81 = scmp.eq.s32.totalorder %s19, 0
      %p82 = por %p80, %p81
      %p83 = scmp.ne.s32.totalorder %s71, %s72
      %p84 = scmp.eq.s32.totalorder %s20, 1
      %p85 = por %p83, %p84
      %p87 = scmp.ne.s32.totalorder %s72, %s86
      %p88 = scmp.eq.s32.totalorder %s20, 0
      %p89 = por %p87, %p88
      %s91 = sadd.s32 %s90, 1
      %p94 = scmp.eq.s32.totalorder %s14, 1
      %p95 = scmp.ne.s32.totalorder %s90, %s92
      %p96 = scmp.eq.s32.totalorder %s14, 0
      %p97 = por %p95, %p96
      %p98 = scmp.ne.s32.totalorder %s90, %s92
      %p99 = scmp.eq.s32.totalorder %s19, 1
      %p100 = por %p98, %p99
      %p101 = scmp.ne.s32.totalorder %s92, %s93
      %p102 = scmp.eq.s32.totalorder %s19, 0
      %p103 = por %p101, %p102
      %p104 = scmp.ne.s32.totalorder %s92, %s93
      %p105 = scmp.eq.s32.totalorder %s20, 1
      %p106 = por %p104, %p105
      %p108 = scmp.ne.s32.totalorder %s93, %s107
      %p109 = scmp.eq.s32.totalorder %s20, 0
      %p110 = por %p108, %p109
      %s112 = sadd.s32 %s111, 1
      %p115 = scmp.eq.s32.totalorder %s14, 1
      %p116 = scmp.ne.s32.totalorder %s111, %s113
      %p117 = scmp.eq.s32.totalorder %s14, 0
      %p118 = por %p116, %p117
      %p119 = scmp.ne.s32.totalorder %s111, %s113
      %p120 = scmp.eq.s32.totalorder %s19, 1
      %p121 = por %p119, %p120
      %p122 = scmp.ne.s32.totalorder %s113, %s114
      %p123 = scmp.eq.s32.totalorder %s19, 0
      %p124 = por %p122, %p123
      %p125 = scmp.ne.s32.totalorder %s113, %s114
      %p126 = scmp.eq.s32.totalorder %s20, 1
      %p127 = por %p125, %p126
      %p129 = scmp.ne.s32.totalorder %s114, %s128
      %p130 = scmp.eq.s32.totalorder %s20, 0
      %p131 = por %p129, %p130
      %s132 = ssub.s32 %s14, %s21
      %p133 = scmp.eq.s32.totalorder %s132, 0
      %s135 = sadd.s32 %s134, 1
      %s136 = scalar_select %p133, %s134, %s135
      %p139 = pneg %p133
      %p140 = scmp.eq.s32.totalorder %s14, 1
      %p141 = por %p139, %p140
      %p142 = scmp.ne.s32.totalorder %s134, %s137
      %p143 = scmp.eq.s32.totalorder %s14, 0
      %p144 = por %p142, %p143
      %p145 = scmp.ne.s32.totalorder %s134, %s137
      %p146 = scmp.eq.s32.totalorder %s19, 1
      %p147 = por %p145, %p146
      %p148 = scmp.ne.s32.totalorder %s137, %s138
      %p149 = scmp.eq.s32.totalorder %s19, 0
      %p150 = por %p148, %p149
      %p151 = scmp.ne.s32.totalorder %s137, %s138
      %p152 = scmp.eq.s32.totalorder %s20, 1
      %p153 = por %p151, %p152
      %p155 = scmp.ne.s32.totalorder %s138, %s154
      %p156 = scmp.eq.s32.totalorder %s20, 0
      %p157 = por %p155, %p156
      %p158 = scmp.le.s32.totalorder 1, %s14
      %p159 = scmp.lt.s32.totalorder %s14, 3
      %p160 = pnand %p158, %p159
      %p161 = pneg %p160
      // Predicated region
      $region9: #{tpu_custom_call.1} parent=5 // pred_check
        _
      $region10: #{tpu_custom_call.1} parent=5 // pred_check_branch
        %163 = sbr.rel (%p160) target = $region12
      $region11: #{tpu_custom_call.1} parent=5 // pred_region
        %s164 = ssub.s32 %s14, 1
        // Predicated region
        $region13: #{tpu_custom_call.1} parent=11 // pred_check
          %p165 = pneg %p61
        $region14: #{tpu_custom_call.1} parent=11 // pred_check_branch
          %167 = sbr.rel (%p165) target = $region16
        $region15: #{tpu_custom_call.1} parent=11 // pred_region
          _
        $region16: #{tpu_custom_call.1} parent=11 // pred_fallthru
          _
        // Predicated region
        $region17: #{tpu_custom_call.1} parent=11 // pred_check
          %p168 = pneg %p82
        $region18: #{tpu_custom_call.1} parent=11 // pred_check_branch
          %170 = sbr.rel (%p168) target = $region20
        $region19: #{tpu_custom_call.1} parent=11 // pred_region
          _
        $region20: #{tpu_custom_call.1} parent=11 // pred_fallthru
          _
        // Predicated region
        $region21: #{tpu_custom_call.1} parent=11 // pred_check
          %p171 = pneg %p103
        $region22: #{tpu_custom_call.1} parent=11 // pred_check_branch
          %173 = sbr.rel (%p171) target = $region24
        $region23: #{tpu_custom_call.1} parent=11 // pred_region
          _
        $region24: #{tpu_custom_call.1} parent=11 // pred_fallthru
          _
        // Predicated region
        $region25: #{tpu_custom_call.1} parent=11 // pred_check
          %p174 = pneg %p124
        $region26: #{tpu_custom_call.1} parent=11 // pred_check_branch
          %176 = sbr.rel (%p174) target = $region28
        $region27: #{tpu_custom_call.1} parent=11 // pred_region
          _
        $region28: #{tpu_custom_call.1} parent=11 // pred_fallthru
          _
      $region12: #{tpu_custom_call.1} parent=5 // pred_fallthru
        _
      %p177 = scmp.lt.s32.totalorder %s14, 2
      // Predicated region
      $region29: #{tpu_custom_call.1} parent=5 // pred_check
        %p178 = pneg %p177
      $region30: #{tpu_custom_call.1} parent=5 // pred_check_branch
        %180 = sbr.rel (%p178) target = $region32
      $region31: #{tpu_custom_call.1} parent=5 // pred_region
        // Predicated region
        $region33: #{tpu_custom_call.1} parent=31 // pred_check
          %p181 = pneg %p34
        $region34: #{tpu_custom_call.1} parent=31 // pred_check_branch
          %183 = sbr.rel (%p181) target = $region36
        $region35: #{tpu_custom_call.1} parent=31 // pred_region
          %p184 = scmp.lt.s32.totalorder %s14, 1
          %s185 = scalar_select %p184, %s14, 1
          %s186 = smul.addr %s185, 54
          %s187 = smul.addr %s186, 4
          %s188 = scalar_lea.vmem %s0, %s187
        $region36: #{tpu_custom_call.1} parent=31 // pred_fallthru
          _
      $region32: #{tpu_custom_call.1} parent=5 // pred_fallthru
        _
      %p189 = scmp.le.s32.totalorder 1, %s14
      %p190 = scmp.lt.s32.totalorder %s14, 3
      %p191 = pnand %p189, %p190
      %p192 = pneg %p191
      // Predicated region
      $region37: #{tpu_custom_call.1} parent=5 // pred_check
        _
      $region38: #{tpu_custom_call.1} parent=5 // pred_check_branch
        %194 = sbr.rel (%p191) target = $region40
      $region39: #{tpu_custom_call.1} parent=5 // pred_region
        %s195 = ssub.s32 %s14, 1
        %p196 = scmp.lt.s32.totalorder %s19, 1
        %s197 = scalar_select %p196, %s19, 1
        %s198 = smul.addr %s197, 54
        %s199 = smul.addr %s198, 4
        %s200 = scalar_lea.vmem %s0, %s199
        %p201 = pneg %p40
        %p202 = pneg %p37
        %p203 = pneg %p61
        %p204 = pneg %p58
        %p205 = pneg %p82
        %p206 = pneg %p79
        %p207 = pneg %p103
        %p208 = pneg %p100
        %p209 = pneg %p124
        %p210 = pneg %p121
        %p211 = pneg %p150
        %p212 = pneg %p147
        %s213 = sand.u32 %s137, 1
        %s214 = scalar_lea.sflag [#allocation4], %s213
        %s215 = sand.u32 %s137, 1
        %s216 = smul.addr %s215, 256
        %s217 = scalar_lea.vmem [#allocation3], %s216
        %p218 = scmp.lt.s32.totalorder %s19, 1
        %s219 = scalar_select %p218, %s19, 1
        %s220 = smul.addr %s219, 54
        %s221 = smul.addr %s220, 4
        %s222 = scalar_lea.vmem %s0, %s221
        %v224 = vld [vmem:[%s222] sm:$0xf]
        %v225 = vld [vmem:[%s222 + $0x4] sm:$0xf]
        %v226 = vld [vmem:[%s222 + $0x8] sm:$0x1]
        %v227 = vld [vmem:[%s222 + $0xc] sm:$0xf]
        %v228 = vld [vmem:[%s222 + $0x10] sm:$0xf]
        %v229 = vld [vmem:[%s222 + $0x14] sm:$0x1]
        %v230 = vld [vmem:[%s222 + $0x18] sm:$0xf]
        %v231 = vld [vmem:[%s222 + $0x1c] sm:$0xf]
        %v232 = vld [vmem:[%s222 + $0x20] sm:$0x1]
        %v233 = vld [vmem:[%s222 + $0x24] sm:$0xf]
        %v234 = vld [vmem:[%s222 + $0x28] sm:$0xf]
        %v235 = vld [vmem:[%s222 + $0x2c] sm:$0x1]
        %v236 = vld [vmem:[%s222 + $0x30] sm:$0xf]
        %v237 = vld [vmem:[%s222 + $0x34] sm:$0xf]
        %v238 = vld [vmem:[%s222 + $0x38] sm:$0x1]
        %v239 = vld [vmem:[%s222 + $0x3c] sm:$0xf]
        %v240 = vld [vmem:[%s222 + $0x40] sm:$0xf]
        %v241 = vld [vmem:[%s222 + $0x44] sm:$0x1]
        %v242 = vld [vmem:[%s222 + $0x48] sm:$0xf]
        %v243 = vld [vmem:[%s222 + $0x4c] sm:$0xf]
        %v244 = vld [vmem:[%s222 + $0x50] sm:$0x1]
        %v245 = vld [vmem:[%s222 + $0x54] sm:$0xf]
        %v246 = vld [vmem:[%s222 + $0x58] sm:$0xf]
        %v247 = vld [vmem:[%s222 + $0x5c] sm:$0x1]
        %v248 = vld [vmem:[%s222 + $0x60] sm:$0xf]
        %v249 = vld [vmem:[%s222 + $0x64] sm:$0xf]
        %v250 = vld [vmem:[%s222 + $0x68] sm:$0x1]
        %v251 = vld [vmem:[%s222 + $0x6c] sm:$0xf]
        %v252 = vld [vmem:[%s222 + $0x70] sm:$0xf]
        %v253 = vld [vmem:[%s222 + $0x74] sm:$0x1]
        %v254 = vld [vmem:[%s222 + $0x78] sm:$0xf]
        %v255 = vld [vmem:[%s222 + $0x7c] sm:$0xf]
        %v256 = vld [vmem:[%s222 + $0x80] sm:$0x1]
        %v257 = vld [vmem:[%s222 + $0x84] sm:$0xf]
        %v258 = vld [vmem:[%s222 + $0x88] sm:$0xf]
        %v259 = vld [vmem:[%s222 + $0x8c] sm:$0x1]
        %v260 = vld [vmem:[%s222 + $0x90] sm:$0xf]
        %v261 = vld [vmem:[%s222 + $0x94] sm:$0xf]
        %v262 = vld [vmem:[%s222 + $0x98] sm:$0x1]
        %v263 = vld [vmem:[%s222 + $0x9c] sm:$0xf]
        %v264 = vld [vmem:[%s222 + $0xa0] sm:$0xf]
        %v265 = vld [vmem:[%s222 + $0xa4] sm:$0x1]
        %v266 = vld [vmem:[%s222 + $0xa8] sm:$0xf]
        %v267 = vld [vmem:[%s222 + $0xac] sm:$0xf]
        %v268 = vld [vmem:[%s222 + $0xb0] sm:$0x1]
        %v269 = vld [vmem:[%s222 + $0xb4] sm:$0xf]
        %v270 = vld [vmem:[%s222 + $0xb8] sm:$0xf]
        %v271 = vld [vmem:[%s222 + $0xbc] sm:$0x1]
        %v272 = vld [vmem:[%s222 + $0xc0] sm:$0xf]
        %v273 = vld [vmem:[%s222 + $0xc4] sm:$0xf]
        %v274 = vld [vmem:[%s222 + $0xc8] sm:$0x1]
        %v275 = vld [vmem:[%s222 + $0xcc] sm:$0xf]
        %v276 = vld [vmem:[%s222 + $0xd0] sm:$0xf]
        %v277 = vld [vmem:[%s222 + $0xd4] sm:$0x1]
        %v310 = vunpack.c.l.b16 %v224
        %v311 = vunpack.c.l.b16 %v225
        %v312 = vunpack.c.l.b16 %v227
        %v313 = vunpack.c.l.b16 %v228
        %v314 = vunpack.c.l.b16 %v230
        %v315 = vunpack.c.l.b16 %v231
        %v316 = vunpack.c.l.b16 %v233
        %v317 = vunpack.c.l.b16 %v234
        %v318 = vunpack.c.l.b16 %v236
        %v319 = vunpack.c.l.b16 %v237
        %v320 = vunpack.c.l.b16 %v239
        %v321 = vunpack.c.l.b16 %v240
        %v322 = vunpack.c.l.b16 %v242
        %v323 = vunpack.c.l.b16 %v243
        %v324 = vunpack.c.l.b16 %v245
        %v325 = vunpack.c.l.b16 %v246
        %v326 = vunpack.c.l.b16 %v248
        %v327 = vunpack.c.l.b16 %v249
        %v328 = vunpack.c.l.b16 %v251
        %v329 = vunpack.c.l.b16 %v252
        %v330 = vunpack.c.l.b16 %v254
        %v331 = vunpack.c.l.b16 %v255
        %v332 = vunpack.c.l.b16 %v257
        %v333 = vunpack.c.l.b16 %v258
        %v334 = vunpack.c.l.b16 %v260
        %v335 = vunpack.c.l.b16 %v261
        %v336 = vunpack.c.l.b16 %v263
        %v337 = vunpack.c.l.b16 %v264
        %v338 = vunpack.c.l.b16 %v266
        %v339 = vunpack.c.l.b16 %v267
        %v340 = vunpack.c.l.b16 %v269
        %v341 = vunpack.c.l.b16 %v270
        %v342 = vpack.c.b16 %v311, %v310
        %v343 = vpack.c.b16 %v313, %v312
        %v344 = vpack.c.b16 %v315, %v314
        %v345 = vpack.c.b16 %v317, %v316
        %v346 = vpack.c.b16 %v319, %v318
        %v347 = vpack.c.b16 %v321, %v320
        %v348 = vpack.c.b16 %v323, %v322
        %v349 = vpack.c.b16 %v325, %v324
        %v350 = vpack.c.b16 %v327, %v326
        %v351 = vpack.c.b16 %v329, %v328
        %v352 = vpack.c.b16 %v331, %v330
        %v353 = vpack.c.b16 %v333, %v332
        %v354 = vpack.c.b16 %v335, %v334
        %v355 = vpack.c.b16 %v337, %v336
        %v356 = vpack.c.b16 %v339, %v338
        %v357 = vpack.c.b16 %v341, %v340
        %v374 = vunpack.c.l.b16 %v226
        %v375 = vunpack.c.l.b16 %v229
        %v376 = vunpack.c.l.b16 %v232
        %v377 = vunpack.c.l.b16 %v235
        %v378 = vunpack.c.l.b16 %v238
        %v379 = vunpack.c.l.b16 %v241
        %v380 = vunpack.c.l.b16 %v244
        %v381 = vunpack.c.l.b16 %v247
        %v382 = vunpack.c.l.b16 %v250
        %v383 = vunpack.c.l.b16 %v253
        %v384 = vunpack.c.l.b16 %v256
        %v385 = vunpack.c.l.b16 %v259
        %v386 = vunpack.c.l.b16 %v262
        %v387 = vunpack.c.l.b16 %v265
        %v388 = vunpack.c.l.b16 %v268
        %v389 = vunpack.c.l.b16 %v271
        %v390 = vpack.c.b16 %v374, %v374
        %v391 = vpack.c.b16 %v375, %v375
        %v392 = vpack.c.b16 %v376, %v376
        %v393 = vpack.c.b16 %v377, %v377
        %v394 = vpack.c.b16 %v378, %v378
        %v395 = vpack.c.b16 %v379, %v379
        %v396 = vpack.c.b16 %v380, %v380
        %v397 = vpack.c.b16 %v381, %v381
        %v398 = vpack.c.b16 %v382, %v382
        %v399 = vpack.c.b16 %v383, %v383
        %v400 = vpack.c.b16 %v384, %v384
        %v401 = vpack.c.b16 %v385, %v385
        %v402 = vpack.c.b16 %v386, %v386
        %v403 = vpack.c.b16 %v387, %v387
        %v404 = vpack.c.b16 %v388, %v388
        %v405 = vpack.c.b16 %v389, %v389
        %vm406 = vsmask.f32 7424
        %v408 = vshrl.u32 %v342, 16
        %v410 = vshll.u32 %v342, 16
        %v412 = vrot.slane %v410, 1
        %v413 = vor.u32 %v408, %v412
        %v415 = vshll.u32 %v390, 16
        %v417 = vrot.slane %v415, 1
        %v418 = vsel %vm406, %v413, %v417
        %v420 = vshrl.u32 %v343, 16
        %v422 = vshll.u32 %v343, 16
        %v424 = vrot.slane %v422, 1
        %v425 = vor.u32 %v420, %v424
        %v427 = vshll.u32 %v391, 16
        %v429 = vrot.slane %v427, 1
        %v430 = vsel %vm406, %v425, %v429
        %v432 = vshrl.u32 %v344, 16
        %v434 = vshll.u32 %v344, 16
        %v436 = vrot.slane %v434, 1
        %v437 = vor.u32 %v432, %v436
        %v439 = vshll.u32 %v392, 16
        %v441 = vrot.slane %v439, 1
        %v442 = vsel %vm406, %v437, %v441
        %v444 = vshrl.u32 %v345, 16
        %v446 = vshll.u32 %v345, 16
        %v448 = vrot.slane %v446, 1
        %v449 = vor.u32 %v444, %v448
        %v451 = vshll.u32 %v393, 16
        %v453 = vrot.slane %v451, 1
        %v454 = vsel %vm406, %v449, %v453
        %v456 = vshrl.u32 %v346, 16
        %v458 = vshll.u32 %v346, 16
        %v460 = vrot.slane %v458, 1
        %v461 = vor.u32 %v456, %v460
        %v463 = vshll.u32 %v394, 16
        %v465 = vrot.slane %v463, 1
        %v466 = vsel %vm406, %v461, %v465
        %v468 = vshrl.u32 %v347, 16
        %v470 = vshll.u32 %v347, 16
        %v472 = vrot.slane %v470, 1
        %v473 = vor.u32 %v468, %v472
        %v475 = vshll.u32 %v395, 16
        %v477 = vrot.slane %v475, 1
        %v478 = vsel %vm406, %v473, %v477
        %v480 = vshrl.u32 %v348, 16
        %v482 = vshll.u32 %v348, 16
        %v484 = vrot.slane %v482, 1
        %v485 = vor.u32 %v480, %v484
        %v487 = vshll.u32 %v396, 16
        %v489 = vrot.slane %v487, 1
        %v490 = vsel %vm406, %v485, %v489
        %v492 = vshrl.u32 %v349, 16
        %v494 = vshll.u32 %v349, 16
        %v496 = vrot.slane %v494, 1
        %v497 = vor.u32 %v492, %v496
        %v499 = vshll.u32 %v397, 16
        %v501 = vrot.slane %v499, 1
        %v502 = vsel %vm406, %v497, %v501
        %v504 = vshrl.u32 %v350, 16
        %v506 = vshll.u32 %v350, 16
        %v508 = vrot.slane %v506, 1
        %v509 = vor.u32 %v504, %v508
        %v511 = vshll.u32 %v398, 16
        %v513 = vrot.slane %v511, 1
        %v514 = vsel %vm406, %v509, %v513
        %v516 = vshrl.u32 %v351, 16
        %v518 = vshll.u32 %v351, 16
        %v520 = vrot.slane %v518, 1
        %v521 = vor.u32 %v516, %v520
        %v523 = vshll.u32 %v399, 16
        %v525 = vrot.slane %v523, 1
        %v526 = vsel %vm406, %v521, %v525
        %v528 = vshrl.u32 %v352, 16
        %v530 = vshll.u32 %v352, 16
        %v532 = vrot.slane %v530, 1
        %v533 = vor.u32 %v528, %v532
        %v535 = vshll.u32 %v400, 16
        %v537 = vrot.slane %v535, 1
        %v538 = vsel %vm406, %v533, %v537
        %v540 = vshrl.u32 %v353, 16
        %v542 = vshll.u32 %v353, 16
        %v544 = vrot.slane %v542, 1
        %v545 = vor.u32 %v540, %v544
        %v547 = vshll.u32 %v401, 16
        %v549 = vrot.slane %v547, 1
        %v550 = vsel %vm406, %v545, %v549
        %v552 = vshrl.u32 %v354, 16
        %v554 = vshll.u32 %v354, 16
        %v556 = vrot.slane %v554, 1
        %v557 = vor.u32 %v552, %v556
        %v559 = vshll.u32 %v402, 16
        %v561 = vrot.slane %v559, 1
        %v562 = vsel %vm406, %v557, %v561
        %v564 = vshrl.u32 %v355, 16
        %v566 = vshll.u32 %v355, 16
        %v568 = vrot.slane %v566, 1
        %v569 = vor.u32 %v564, %v568
        %v571 = vshll.u32 %v403, 16
        %v573 = vrot.slane %v571, 1
        %v574 = vsel %vm406, %v569, %v573
        %v576 = vshrl.u32 %v356, 16
        %v578 = vshll.u32 %v356, 16
        %v580 = vrot.slane %v578, 1
        %v581 = vor.u32 %v576, %v580
        %v583 = vshll.u32 %v404, 16
        %v585 = vrot.slane %v583, 1
        %v586 = vsel %vm406, %v581, %v585
        %v588 = vshrl.u32 %v357, 16
        %v590 = vshll.u32 %v357, 16
        %v592 = vrot.slane %v590, 1
        %v593 = vor.u32 %v588, %v592
        %v595 = vshll.u32 %v405, 16
        %v597 = vrot.slane %v595, 1
        %v598 = vsel %vm406, %v593, %v597
        %599 = vrot.lane.b32.xlu0 %v418, 8
        %v600 = vpop.permute.xlu0 %599
        %601 = vrot.lane.b32.xlu0 %v430, 8
        %v602 = vpop.permute.xlu0 %601
        %603 = vrot.lane.b32.xlu0 %v442, 8
        %v604 = vpop.permute.xlu0 %603
        %605 = vrot.lane.b32.xlu0 %v454, 8
        %v606 = vpop.permute.xlu0 %605
        %607 = vrot.lane.b32.xlu0 %v466, 8
        %v608 = vpop.permute.xlu0 %607
        %609 = vrot.lane.b32.xlu0 %v478, 8
        %v610 = vpop.permute.xlu0 %609
        %611 = vrot.lane.b32.xlu0 %v490, 8
        %v612 = vpop.permute.xlu0 %611
        %613 = vrot.lane.b32.xlu0 %v502, 8
        %v614 = vpop.permute.xlu0 %613
        %615 = vrot.lane.b32.xlu0 %v514, 8
        %v616 = vpop.permute.xlu0 %615
        %617 = vrot.lane.b32.xlu0 %v526, 8
        %v618 = vpop.permute.xlu0 %617
        %619 = vrot.lane.b32.xlu0 %v538, 8
        %v620 = vpop.permute.xlu0 %619
        %621 = vrot.lane.b32.xlu0 %v550, 8
        %v622 = vpop.permute.xlu0 %621
        %623 = vrot.lane.b32.xlu0 %v562, 8
        %v624 = vpop.permute.xlu0 %623
        %625 = vrot.lane.b32.xlu0 %v574, 8
        %v626 = vpop.permute.xlu0 %625
        %627 = vrot.lane.b32.xlu0 %v586, 8
        %v628 = vpop.permute.xlu0 %627
        %629 = vrot.lane.b32.xlu0 %v598, 8
        %v630 = vpop.permute.xlu0 %629
        %vm631 = vcmask 1046528
        %v632 = vrot.slane %v342, 1
        %v633 = vrot.slane %v390, 1
        %v634 = vsel %vm631, %v632, %v633
        %v635 = vrot.slane %v343, 1
        %v636 = vrot.slane %v391, 1
        %v637 = vsel %vm631, %v635, %v636
        %v638 = vrot.slane %v344, 1
        %v639 = vrot.slane %v392, 1
        %v640 = vsel %vm631, %v638, %v639
        %v641 = vrot.slane %v345, 1
        %v642 = vrot.slane %v393, 1
        %v643 = vsel %vm631, %v641, %v642
        %v644 = vrot.slane %v346, 1
        %v645 = vrot.slane %v394, 1
        %v646 = vsel %vm631, %v644, %v645
        %v647 = vrot.slane %v347, 1
        %v648 = vrot.slane %v395, 1
        %v649 = vsel %vm631, %v647, %v648
        %v650 = vrot.slane %v348, 1
        %v651 = vrot.slane %v396, 1
        %v652 = vsel %vm631, %v650, %v651
        %v653 = vrot.slane %v349, 1
        %v654 = vrot.slane %v397, 1
        %v655 = vsel %vm631, %v653, %v654
        %v656 = vrot.slane %v350, 1
        %v657 = vrot.slane %v398, 1
        %v658 = vsel %vm631, %v656, %v657
        %v659 = vrot.slane %v351, 1
        %v660 = vrot.slane %v399, 1
        %v661 = vsel %vm631, %v659, %v660
        %v662 = vrot.slane %v352, 1
        %v663 = vrot.slane %v400, 1
        %v664 = vsel %vm631, %v662, %v663
        %v665 = vrot.slane %v353, 1
        %v666 = vrot.slane %v401, 1
        %v667 = vsel %vm631, %v665, %v666
        %v668 = vrot.slane %v354, 1
        %v669 = vrot.slane %v402, 1
        %v670 = vsel %vm631, %v668, %v669
        %v671 = vrot.slane %v355, 1
        %v672 = vrot.slane %v403, 1
        %v673 = vsel %vm631, %v671, %v672
        %v674 = vrot.slane %v356, 1
        %v675 = vrot.slane %v404, 1
        %v676 = vsel %vm631, %v674, %v675
        %v677 = vrot.slane %v357, 1
        %v678 = vrot.slane %v405, 1
        %v679 = vsel %vm631, %v677, %v678
        %680 = vrot.lane.b32.xlu0 %v634, 16
        %v681 = vpop.permute.xlu0 %680
        %682 = vrot.lane.b32.xlu0 %v637, 16
        %v683 = vpop.permute.xlu0 %682
        %684 = vrot.lane.b32.xlu0 %v640, 16
        %v685 = vpop.permute.xlu0 %684
        %686 = vrot.lane.b32.xlu0 %v643, 16
        %v687 = vpop.permute.xlu0 %686
        %688 = vrot.lane.b32.xlu0 %v646, 16
        %v689 = vpop.permute.xlu0 %688
        %690 = vrot.lane.b32.xlu0 %v649, 16
        %v691 = vpop.permute.xlu0 %690
        %692 = vrot.lane.b32.xlu0 %v652, 16
        %v693 = vpop.permute.xlu0 %692
        %694 = vrot.lane.b32.xlu0 %v655, 16
        %v695 = vpop.permute.xlu0 %694
        %696 = vrot.lane.b32.xlu0 %v658, 16
        %v697 = vpop.permute.xlu0 %696
        %698 = vrot.lane.b32.xlu0 %v661, 16
        %v699 = vpop.permute.xlu0 %698
        %700 = vrot.lane.b32.xlu0 %v664, 16
        %v701 = vpop.permute.xlu0 %700
        %702 = vrot.lane.b32.xlu0 %v667, 16
        %v703 = vpop.permute.xlu0 %702
        %704 = vrot.lane.b32.xlu0 %v670, 16
        %v705 = vpop.permute.xlu0 %704
        %706 = vrot.lane.b32.xlu0 %v673, 16
        %v707 = vpop.permute.xlu0 %706
        %708 = vrot.lane.b32.xlu0 %v676, 16
        %v709 = vpop.permute.xlu0 %708
        %710 = vrot.lane.b32.xlu0 %v679, 16
        %v711 = vpop.permute.xlu0 %710
        %v714 = vunpack.c.l.b16 %v272
        %v715 = vunpack.c.l.b16 %v273
        %v716 = vpack.c.b16 %v715, %v714
        %717 = vrot.lane.b32.xlu0 %v343, 24
        %v718 = vpop.permute.xlu0 %717
        %719 = vrot.lane.b32.xlu0 %v344, 24
        %v720 = vpop.permute.xlu0 %719
        %721 = vrot.lane.b32.xlu0 %v345, 24
        %v722 = vpop.permute.xlu0 %721
        %723 = vrot.lane.b32.xlu0 %v346, 24
        %v724 = vpop.permute.xlu0 %723
        %725 = vrot.lane.b32.xlu0 %v347, 24
        %v726 = vpop.permute.xlu0 %725
        %727 = vrot.lane.b32.xlu0 %v348, 24
        %v728 = vpop.permute.xlu0 %727
        %729 = vrot.lane.b32.xlu0 %v349, 24
        %v730 = vpop.permute.xlu0 %729
        %731 = vrot.lane.b32.xlu0 %v350, 24
        %v732 = vpop.permute.xlu0 %731
        %733 = vrot.lane.b32.xlu0 %v351, 24
        %v734 = vpop.permute.xlu0 %733
        %735 = vrot.lane.b32.xlu0 %v352, 24
        %v736 = vpop.permute.xlu0 %735
        %737 = vrot.lane.b32.xlu0 %v353, 24
        %v738 = vpop.permute.xlu0 %737
        %739 = vrot.lane.b32.xlu0 %v354, 24
        %v740 = vpop.permute.xlu0 %739
        %741 = vrot.lane.b32.xlu0 %v355, 24
        %v742 = vpop.permute.xlu0 %741
        %743 = vrot.lane.b32.xlu0 %v356, 24
        %v744 = vpop.permute.xlu0 %743
        %745 = vrot.lane.b32.xlu0 %v357, 24
        %v746 = vpop.permute.xlu0 %745
        %747 = vrot.lane.b32.xlu0 %v716, 24
        %v748 = vpop.permute.xlu0 %747
        %v750 = vunpack.c.l.b16 %v274
        %v751 = vpack.c.b16 %v750, %v750
        %v753 = vshrl.u32 %v716, 16
        %v755 = vshll.u32 %v716, 16
        %v757 = vrot.slane %v755, 1
        %v758 = vor.u32 %v753, %v757
        %v760 = vshll.u32 %v751, 16
        %v762 = vrot.slane %v760, 1
        %v763 = vsel %vm406, %v758, %v762
        %764 = vrot.lane.b32.xlu0 %v430, 32
        %v765 = vpop.permute.xlu0 %764
        %766 = vrot.lane.b32.xlu0 %v442, 32
        %v767 = vpop.permute.xlu0 %766
        %768 = vrot.lane.b32.xlu0 %v454, 32
        %v769 = vpop.permute.xlu0 %768
        %770 = vrot.lane.b32.xlu0 %v466, 32
        %v771 = vpop.permute.xlu0 %770
        %772 = vrot.lane.b32.xlu0 %v478, 32
        %v773 = vpop.permute.xlu0 %772
        %774 = vrot.lane.b32.xlu0 %v490, 32
        %v775 = vpop.permute.xlu0 %774
        %776 = vrot.lane.b32.xlu0 %v502, 32
        %v777 = vpop.permute.xlu0 %776
        %778 = vrot.lane.b32.xlu0 %v514, 32
        %v779 = vpop.permute.xlu0 %778
        %780 = vrot.lane.b32.xlu0 %v526, 32
        %v781 = vpop.permute.xlu0 %780
        %782 = vrot.lane.b32.xlu0 %v538, 32
        %v783 = vpop.permute.xlu0 %782
        %784 = vrot.lane.b32.xlu0 %v550, 32
        %v785 = vpop.permute.xlu0 %784
        %786 = vrot.lane.b32.xlu0 %v562, 32
        %v787 = vpop.permute.xlu0 %786
        %788 = vrot.lane.b32.xlu0 %v574, 32
        %v789 = vpop.permute.xlu0 %788
        %790 = vrot.lane.b32.xlu0 %v586, 32
        %v791 = vpop.permute.xlu0 %790
        %792 = vrot.lane.b32.xlu0 %v598, 32
        %v793 = vpop.permute.xlu0 %792
        %794 = vrot.lane.b32.xlu0 %v763, 32
        %v795 = vpop.permute.xlu0 %794
        %v796 = vrot.slane %v716, 1
        %v797 = vrot.slane %v751, 1
        %v798 = vsel %vm631, %v796, %v797
        %799 = vrot.lane.b32.xlu0 %v637, 40
        %v800 = vpop.permute.xlu0 %799
        %801 = vrot.lane.b32.xlu0 %v640, 40
        %v802 = vpop.permute.xlu0 %801
        %803 = vrot.lane.b32.xlu0 %v643, 40
        %v804 = vpop.permute.xlu0 %803
        %805 = vrot.lane.b32.xlu0 %v646, 40
        %v806 = vpop.permute.xlu0 %805
        %807 = vrot.lane.b32.xlu0 %v649, 40
        %v808 = vpop.permute.xlu0 %807
        %809 = vrot.lane.b32.xlu0 %v652, 40
        %v810 = vpop.permute.xlu0 %809
        %811 = vrot.lane.b32.xlu0 %v655, 40
        %v812 = vpop.permute.xlu0 %811
        %813 = vrot.lane.b32.xlu0 %v658, 40
        %v814 = vpop.permute.xlu0 %813
        %815 = vrot.lane.b32.xlu0 %v661, 40
        %v816 = vpop.permute.xlu0 %815
        %817 = vrot.lane.b32.xlu0 %v664, 40
        %v818 = vpop.permute.xlu0 %817
        %819 = vrot.lane.b32.xlu0 %v667, 40
        %v820 = vpop.permute.xlu0 %819
        %821 = vrot.lane.b32.xlu0 %v670, 40
        %v822 = vpop.permute.xlu0 %821
        %823 = vrot.lane.b32.xlu0 %v673, 40
        %v824 = vpop.permute.xlu0 %823
        %825 = vrot.lane.b32.xlu0 %v676, 40
        %v826 = vpop.permute.xlu0 %825
        %827 = vrot.lane.b32.xlu0 %v679, 40
        %v828 = vpop.permute.xlu0 %827
        %829 = vrot.lane.b32.xlu0 %v798, 40
        %v830 = vpop.permute.xlu0 %829
        %v833 = vunpack.c.l.b16 %v275
        %v834 = vunpack.c.l.b16 %v276
        %v835 = vpack.c.b16 %v834, %v833
        %836 = vrot.lane.b32.xlu0 %v344, 48
        %v837 = vpop.permute.xlu0 %836
        %838 = vrot.lane.b32.xlu0 %v345, 48
        %v839 = vpop.permute.xlu0 %838
        %840 = vrot.lane.b32.xlu0 %v346, 48
        %v841 = vpop.permute.xlu0 %840
        %842 = vrot.lane.b32.xlu0 %v347, 48
        %v843 = vpop.permute.xlu0 %842
        %844 = vrot.lane.b32.xlu0 %v348, 48
        %v845 = vpop.permute.xlu0 %844
        %846 = vrot.lane.b32.xlu0 %v349, 48
        %v847 = vpop.permute.xlu0 %846
        %848 = vrot.lane.b32.xlu0 %v350, 48
        %v849 = vpop.permute.xlu0 %848
        %850 = vrot.lane.b32.xlu0 %v351, 48
        %v851 = vpop.permute.xlu0 %850
        %852 = vrot.lane.b32.xlu0 %v352, 48
        %v853 = vpop.permute.xlu0 %852
        %854 = vrot.lane.b32.xlu0 %v353, 48
        %v855 = vpop.permute.xlu0 %854
        %856 = vrot.lane.b32.xlu0 %v354, 48
        %v857 = vpop.permute.xlu0 %856
        %858 = vrot.lane.b32.xlu0 %v355, 48
        %v859 = vpop.permute.xlu0 %858
        %860 = vrot.lane.b32.xlu0 %v356, 48
        %v861 = vpop.permute.xlu0 %860
        %862 = vrot.lane.b32.xlu0 %v357, 48
        %v863 = vpop.permute.xlu0 %862
        %864 = vrot.lane.b32.xlu0 %v716, 48
        %v865 = vpop.permute.xlu0 %864
        %866 = vrot.lane.b32.xlu0 %v835, 48
        %v867 = vpop.permute.xlu0 %866
        %v869 = vunpack.c.l.b16 %v277
        %v870 = vpack.c.b16 %v869, %v869
        %v872 = vshrl.u32 %v835, 16
        %v874 = vshll.u32 %v835, 16
        %v876 = vrot.slane %v874, 1
        %v877 = vor.u32 %v872, %v876
        %v879 = vshll.u32 %v870, 16
        %v881 = vrot.slane %v879, 1
        %v882 = vsel %vm406, %v877, %v881
        %883 = vrot.lane.b32.xlu0 %v442, 56
        %v884 = vpop.permute.xlu0 %883
        %885 = vrot.lane.b32.xlu0 %v454, 56
        %v886 = vpop.permute.xlu0 %885
        %887 = vrot.lane.b32.xlu0 %v466, 56
        %v888 = vpop.permute.xlu0 %887
        %889 = vrot.lane.b32.xlu0 %v478, 56
        %v890 = vpop.permute.xlu0 %889
        %891 = vrot.lane.b32.xlu0 %v490, 56
        %v892 = vpop.permute.xlu0 %891
        %893 = vrot.lane.b32.xlu0 %v502, 56
        %v894 = vpop.permute.xlu0 %893
        %895 = vrot.lane.b32.xlu0 %v514, 56
        %v896 = vpop.permute.xlu0 %895
        %897 = vrot.lane.b32.xlu0 %v526, 56
        %v898 = vpop.permute.xlu0 %897
        %899 = vrot.lane.b32.xlu0 %v538, 56
        %v900 = vpop.permute.xlu0 %899
        %901 = vrot.lane.b32.xlu0 %v550, 56
        %v902 = vpop.permute.xlu0 %901
        %903 = vrot.lane.b32.xlu0 %v562, 56
        %v904 = vpop.permute.xlu0 %903
        %905 = vrot.lane.b32.xlu0 %v574, 56
        %v906 = vpop.permute.xlu0 %905
        %907 = vrot.lane.b32.xlu0 %v586, 56
        %v908 = vpop.permute.xlu0 %907
        %909 = vrot.lane.b32.xlu0 %v598, 56
        %v910 = vpop.permute.xlu0 %909
        %911 = vrot.lane.b32.xlu0 %v763, 56
        %v912 = vpop.permute.xlu0 %911
        %913 = vrot.lane.b32.xlu0 %v882, 56
        %v914 = vpop.permute.xlu0 %913
        %v915 = vrot.slane %v835, 1
        %v916 = vrot.slane %v870, 1
        %v917 = vsel %vm631, %v915, %v916
        %918 = vrot.lane.b32.xlu0 %v640, 64
        %v919 = vpop.permute.xlu0 %918
        %920 = vrot.lane.b32.xlu0 %v643, 64
        %v921 = vpop.permute.xlu0 %920
        %922 = vrot.lane.b32.xlu0 %v646, 64
        %v923 = vpop.permute.xlu0 %922
        %924 = vrot.lane.b32.xlu0 %v649, 64
        %v925 = vpop.permute.xlu0 %924
        %926 = vrot.lane.b32.xlu0 %v652, 64
        %v927 = vpop.permute.xlu0 %926
        %928 = vrot.lane.b32.xlu0 %v655, 64
        %v929 = vpop.permute.xlu0 %928
        %930 = vrot.lane.b32.xlu0 %v658, 64
        %v931 = vpop.permute.xlu0 %930
        %932 = vrot.lane.b32.xlu0 %v661, 64
        %v933 = vpop.permute.xlu0 %932
        %934 = vrot.lane.b32.xlu0 %v664, 64
        %v935 = vpop.permute.xlu0 %934
        %936 = vrot.lane.b32.xlu0 %v667, 64
        %v937 = vpop.permute.xlu0 %936
        %938 = vrot.lane.b32.xlu0 %v670, 64
        %v939 = vpop.permute.xlu0 %938
        %940 = vrot.lane.b32.xlu0 %v673, 64
        %v941 = vpop.permute.xlu0 %940
        %942 = vrot.lane.b32.xlu0 %v676, 64
        %v943 = vpop.permute.xlu0 %942
        %944 = vrot.lane.b32.xlu0 %v679, 64
        %v945 = vpop.permute.xlu0 %944
        %946 = vrot.lane.b32.xlu0 %v798, 64
        %v947 = vpop.permute.xlu0 %946
        %948 = vrot.lane.b32.xlu0 %v917, 64
        %v949 = vpop.permute.xlu0 %948
        %vm950 = vcmask 64512
        %v952 = vsel %vm950, %v342, %v600
        %v954 = vsel %vm950, %v343, %v602
        %v956 = vsel %vm950, %v344, %v604
        %v958 = vsel %vm950, %v345, %v606
        %v960 = vsel %vm950, %v346, %v608
        %v962 = vsel %vm950, %v347, %v610
        %v964 = vsel %vm950, %v348, %v612
        %v966 = vsel %vm950, %v349, %v614
        %v968 = vsel %vm950, %v350, %v616
        %v970 = vsel %vm950, %v351, %v618
        %v972 = vsel %vm950, %v352, %v620
        %v974 = vsel %vm950, %v353, %v622
        %v976 = vsel %vm950, %v354, %v624
        %v978 = vsel %vm950, %v355, %v626
        %v980 = vsel %vm950, %v356, %v628
        %v982 = vsel %vm950, %v357, %v630
        %vm983 = vcmask 130048
        %v985 = vsel %vm983, %v952, %v681
        %v987 = vsel %vm983, %v954, %v683
        %v989 = vsel %vm983, %v956, %v685
        %v991 = vsel %vm983, %v958, %v687
        %v993 = vsel %vm983, %v960, %v689
        %v995 = vsel %vm983, %v962, %v691
        %v997 = vsel %vm983, %v964, %v693
        %v999 = vsel %vm983, %v966, %v695
        %v1001 = vsel %vm983, %v968, %v697
        %v1003 = vsel %vm983, %v970, %v699
        %v1005 = vsel %vm983, %v972, %v701
        %v1007 = vsel %vm983, %v974, %v703
        %v1009 = vsel %vm983, %v976, %v705
        %v1011 = vsel %vm983, %v978, %v707
        %v1013 = vsel %vm983, %v980, %v709
        %v1015 = vsel %vm983, %v982, %v711
        %vm1016 = vcmask 195584
        %v1018 = vsel %vm1016, %v985, %v718
        %v1020 = vsel %vm1016, %v987, %v720
        %v1022 = vsel %vm1016, %v989, %v722
        %v1024 = vsel %vm1016, %v991, %v724
        %v1026 = vsel %vm1016, %v993, %v726
        %v1028 = vsel %vm1016, %v995, %v728
        %v1030 = vsel %vm1016, %v997, %v730
        %v1032 = vsel %vm1016, %v999, %v732
        %v1034 = vsel %vm1016, %v1001, %v734
        %v1036 = vsel %vm1016, %v1003, %v736
        %v1038 = vsel %vm1016, %v1005, %v738
        %v1040 = vsel %vm1016, %v1007, %v740
        %v1042 = vsel %vm1016, %v1009, %v742
        %v1044 = vsel %vm1016, %v1011, %v744
        %v1046 = vsel %vm1016, %v1013, %v746
        %v1048 = vsel %vm1016, %v1015, %v748
        %vm1049 = vcmask 261120
        %v1051 = vsel %vm1049, %v1018, %v765
        %v1053 = vsel %vm1049, %v1020, %v767
        %v1055 = vsel %vm1049, %v1022, %v769
        %v1057 = vsel %vm1049, %v1024, %v771
        %v1059 = vsel %vm1049, %v1026, %v773
        %v1061 = vsel %vm1049, %v1028, %v775
        %v1063 = vsel %vm1049, %v1030, %v777
        %v1065 = vsel %vm1049, %v1032, %v779
        %v1067 = vsel %vm1049, %v1034, %v781
        %v1069 = vsel %vm1049, %v1036, %v783
        %v1071 = vsel %vm1049, %v1038, %v785
        %v1073 = vsel %vm1049, %v1040, %v787
        %v1075 = vsel %vm1049, %v1042, %v789
        %v1077 = vsel %vm1049, %v1044, %v791
        %v1079 = vsel %vm1049, %v1046, %v793
        %v1081 = vsel %vm1049, %v1048, %v795
        %vm1082 = vcmask 326656
        %v1084 = vsel %vm1082, %v1051, %v800
        %v1086 = vsel %vm1082, %v1053, %v802
        %v1088 = vsel %vm1082, %v1055, %v804
        %v1090 = vsel %vm1082, %v1057, %v806
        %v1092 = vsel %vm1082, %v1059, %v808
        %v1094 = vsel %vm1082, %v1061, %v810
        %v1096 = vsel %vm1082, %v1063, %v812
        %v1098 = vsel %vm1082, %v1065, %v814
        %v1100 = vsel %vm1082, %v1067, %v816
        %v1102 = vsel %vm1082, %v1069, %v818
        %v1104 = vsel %vm1082, %v1071, %v820
        %v1106 = vsel %vm1082, %v1073, %v822
        %v1108 = vsel %vm1082, %v1075, %v824
        %v1110 = vsel %vm1082, %v1077, %v826
        %v1112 = vsel %vm1082, %v1079, %v828
        %v1114 = vsel %vm1082, %v1081, %v830
        %vm1115 = vcmask 392192
        %v1117 = vsel %vm1115, %v1084, %v837
        %v1119 = vsel %vm1115, %v1086, %v839
        %v1121 = vsel %vm1115, %v1088, %v841
        %v1123 = vsel %vm1115, %v1090, %v843
        %v1125 = vsel %vm1115, %v1092, %v845
        %v1127 = vsel %vm1115, %v1094, %v847
        %v1129 = vsel %vm1115, %v1096, %v849
        %v1131 = vsel %vm1115, %v1098, %v851
        %v1133 = vsel %vm1115, %v1100, %v853
        %v1135 = vsel %vm1115, %v1102, %v855
        %v1137 = vsel %vm1115, %v1104, %v857
        %v1139 = vsel %vm1115, %v1106, %v859
        %v1141 = vsel %vm1115, %v1108, %v861
        %v1143 = vsel %vm1115, %v1110, %v863
        %v1145 = vsel %vm1115, %v1112, %v865
        %v1147 = vsel %vm1115, %v1114, %v867
        %vm1148 = vcmask 457728
        %v1150 = vsel %vm1148, %v1117, %v884
        %v1152 = vsel %vm1148, %v1119, %v886
        %v1154 = vsel %vm1148, %v1121, %v888
        %v1156 = vsel %vm1148, %v1123, %v890
        %v1158 = vsel %vm1148, %v1125, %v892
        %v1160 = vsel %vm1148, %v1127, %v894
        %v1162 = vsel %vm1148, %v1129, %v896
        %v1164 = vsel %vm1148, %v1131, %v898
        %v1166 = vsel %vm1148, %v1133, %v900
        %v1168 = vsel %vm1148, %v1135, %v902
        %v1170 = vsel %vm1148, %v1137, %v904
        %v1172 = vsel %vm1148, %v1139, %v906
        %v1174 = vsel %vm1148, %v1141, %v908
        %v1176 = vsel %vm1148, %v1143, %v910
        %v1178 = vsel %vm1148, %v1145, %v912
        %v1180 = vsel %vm1148, %v1147, %v914
        %vm1181 = vcmask 523264
        %v1183 = vsel %vm1181, %v1150, %v919
        %v1185 = vsel %vm1181, %v1152, %v921
        %v1187 = vsel %vm1181, %v1154, %v923
        %v1189 = vsel %vm1181, %v1156, %v925
        %v1191 = vsel %vm1181, %v1158, %v927
        %v1193 = vsel %vm1181, %v1160, %v929
        %v1195 = vsel %vm1181, %v1162, %v931
        %v1197 = vsel %vm1181, %v1164, %v933
        %v1199 = vsel %vm1181, %v1166, %v935
        %v1201 = vsel %vm1181, %v1168, %v937
        %v1203 = vsel %vm1181, %v1170, %v939
        %v1205 = vsel %vm1181, %v1172, %v941
        %v1207 = vsel %vm1181, %v1174, %v943
        %v1209 = vsel %vm1181, %v1176, %v945
        %v1211 = vsel %vm1181, %v1178, %v947
        %v1213 = vsel %vm1181, %v1180, %v949
        %v1214 = vld [vmem:[%s1] sm:$0xf]
        %v1215 = vld [vmem:[%s1 + $0x4] sm:$0xf]
        %v1216 = vld [vmem:[%s1 + $0x8] sm:$0xf]
        %v1217 = vld [vmem:[%s1 + $0xc] sm:$0xf]
        %v1218 = vld [vmem:[%s1 + $0x10] sm:$0xf]
        %v1219 = vld [vmem:[%s1 + $0x14] sm:$0xf]
        %v1220 = vld [vmem:[%s1 + $0x18] sm:$0xf]
        %v1221 = vld [vmem:[%s1 + $0x1c] sm:$0xf]
        %v1222 = vld [vmem:[%s1 + $0x20] sm:$0xf]
        %v1223 = vld [vmem:[%s2] sm:$0x1]
        %v1225 = vlaneseq
        %v1226 = vshrl.u32 %v1225, 7
        %v1227 = vsub.s32 0, %v1226
        %v1228 = vrot.slane %v1223, %v1227
        %v1239 = vunpack.c.l.b16 %v1214
        %v1240 = vunpack.c.l.b16 %v1215
        %v1241 = vunpack.c.l.b16 %v1216
        %v1242 = vunpack.c.l.b16 %v1217
        %v1243 = vunpack.c.l.b16 %v1218
        %v1244 = vunpack.c.l.b16 %v1219
        %v1245 = vunpack.c.l.b16 %v1220
        %v1246 = vunpack.c.l.b16 %v1221
        %v1247 = vunpack.c.l.b16 %v1222
        %v1248 = vpack.c.b16 %v1240, %v1239
        %v1249 = vpack.c.b16 %v1242, %v1241
        %v1250 = vpack.c.b16 %v1244, %v1243
        %v1251 = vpack.c.b16 %v1246, %v1245
        %v1252 = vpack.c.b16 %v1247, %v1247
        %vm1257 = vcmask 588800
        %v1258 = vsel %vm1257, %v1183, 0
        %v1260 = vsel %vm1257, %v1185, 0
        %v1262 = vsel %vm1257, %v1187, 0
        %v1264 = vsel %vm1257, %v1189, 0
        %v1266 = vsel %vm1257, %v1191, 0
        %v1268 = vsel %vm1257, %v1193, 0
        %v1270 = vsel %vm1257, %v1195, 0
        %v1272 = vsel %vm1257, %v1197, 0
        %v1274 = vsel %vm1257, %v1199, 0
        %v1276 = vsel %vm1257, %v1201, 0
        %v1278 = vsel %vm1257, %v1203, 0
        %v1280 = vsel %vm1257, %v1205, 0
        %v1282 = vsel %vm1257, %v1207, 0
        %v1284 = vsel %vm1257, %v1209, 0
        %v1286 = vsel %vm1257, %v1211, 0
        %v1288 = vsel %vm1257, %v1213, 0
        %vm1290 = vcmask 1043456
        %v1292 = vsel %vm1290, %v1252, 0
        %1294 = vmatprep.subr.bf16.mxu0 0
        %1295 = vmatpush1.bf16.msra.mxu0 0
        %1296 = vmatprep.subr.bf16.mxu0 0
        %1297 = vmatpush1.bf16.msra.mxu0 0
        %1298 = vmatprep.subr.bf16.mxu0 0
        %1299 = vmatpush1.bf16.msra.mxu0 0
        %1300 = vmatprep.subr.bf16.mxu0 0
        %1301 = vmatpush1.bf16.msra.mxu0 %v1292
        %1302 = vmatprep.subr.bf16.mxu0 0
        %1303 = vmatpush1.bf16.msra.mxu0 %v1251
        %1304 = vmatprep.subr.bf16.mxu0 0
        %1305 = vmatpush1.bf16.msra.mxu0 %v1250
        %1306 = vmatprep.subr.bf16.mxu0 0
        %1307 = vmatpush1.bf16.msra.mxu0 %v1249
        %1308 = vmatprep.subr.bf16.mxu0 0
        %1309 = vmatpush1.bf16.msra.mxu0 %v1248
        %1310 = vmatprep.subr.bf16.mxu0 0
        %1311 = vmatpush2.bf16.msra.mxu0 0
        %1312 = vmatprep.subr.bf16.mxu0 0
        %1313 = vmatpush2.bf16.msra.mxu0 0
        %1314 = vmatprep.subr.bf16.mxu0 0
        %1315 = vmatpush2.bf16.msra.mxu0 0
        %1316 = vmatprep.subr.bf16.mxu0 0
        %1317 = vmatpush2.bf16.msra.mxu0 0
        %1318 = vmatprep.subr.bf16.mxu0 0
        %1319 = vmatpush2.bf16.msra.mxu0 0
        %1320 = vmatprep.subr.bf16.mxu0 0
        %1321 = vmatpush2.bf16.msra.mxu0 0
        %1322 = vmatprep.subr.bf16.mxu0 0
        %1323 = vmatpush2.bf16.msra.mxu0 0
        %1324 = vmatprep.subr.bf16.mxu0 0
        %1325 = vmatpush2.bf16.msra.mxu0 0
        %1326 = vmatprep.mubr.bf16.mxu0 0
        %1327 = vmatmul.mubr.bf16.gmra.mxu0 %v1258
        %v1328 = vpop.f32.mrf.mxu0
        %v1329 = vadd.f32 %v1228, %v1328
        %v1330 = vpop.f32.mrf.mxu0
        %v1331 = vpop.f32.mrf.mxu0
        %v1332 = vadd.f32 %v1228, %v1331
        %v1333 = vpop.f32.mrf.mxu0
        %1334 = vmatprep.mubr.bf16.mxu0 0
        %1335 = vmatmul.mubr.bf16.gmra.mxu0 %v1260
        %v1336 = vpop.f32.mrf.mxu0
        %v1337 = vadd.f32 %v1228, %v1336
        %v1338 = vpop.f32.mrf.mxu0
        %v1339 = vpop.f32.mrf.mxu0
        %v1340 = vadd.f32 %v1228, %v1339
        %v1341 = vpop.f32.mrf.mxu0
        %1342 = vmatprep.mubr.bf16.mxu0 0
        %1343 = vmatmul.mubr.bf16.gmra.mxu0 %v1262
        %v1344 = vpop.f32.mrf.mxu0
        %v1345 = vadd.f32 %v1228, %v1344
        %v1346 = vpop.f32.mrf.mxu0
        %v1347 = vpop.f32.mrf.mxu0
        %v1348 = vadd.f32 %v1228, %v1347
        %v1349 = vpop.f32.mrf.mxu0
        %1350 = vmatprep.mubr.bf16.mxu0 0
        %1351 = vmatmul.mubr.bf16.gmra.mxu0 %v1264
        %v1352 = vpop.f32.mrf.mxu0
        %v1353 = vadd.f32 %v1228, %v1352
        %v1354 = vpop.f32.mrf.mxu0
        %v1355 = vpop.f32.mrf.mxu0
        %v1356 = vadd.f32 %v1228, %v1355
        %v1357 = vpop.f32.mrf.mxu0
        %1358 = vmatprep.mubr.bf16.mxu0 0
        %1359 = vmatmul.mubr.bf16.gmra.mxu0 %v1266
        %v1360 = vpop.f32.mrf.mxu0
        %v1361 = vadd.f32 %v1228, %v1360
        %v1362 = vpop.f32.mrf.mxu0
        %v1363 = vpop.f32.mrf.mxu0
        %v1364 = vadd.f32 %v1228, %v1363
        %v1365 = vpop.f32.mrf.mxu0
        %1366 = vmatprep.mubr.bf16.mxu0 0
        %1367 = vmatmul.mubr.bf16.gmra.mxu0 %v1268
        %v1368 = vpop.f32.mrf.mxu0
        %v1369 = vadd.f32 %v1228, %v1368
        %v1370 = vpop.f32.mrf.mxu0
        %v1371 = vpop.f32.mrf.mxu0
        %v1372 = vadd.f32 %v1228, %v1371
        %v1373 = vpop.f32.mrf.mxu0
        %1374 = vmatprep.mubr.bf16.mxu0 0
        %1375 = vmatmul.mubr.bf16.gmra.mxu0 %v1270
        %v1376 = vpop.f32.mrf.mxu0
        %v1377 = vadd.f32 %v1228, %v1376
        %v1378 = vpop.f32.mrf.mxu0
        %v1379 = vpop.f32.mrf.mxu0
        %v1380 = vadd.f32 %v1228, %v1379
        %v1381 = vpop.f32.mrf.mxu0
        %1382 = vmatprep.mubr.bf16.mxu0 0
        %1383 = vmatmul.mubr.bf16.gmra.mxu0 %v1272
        %v1384 = vpop.f32.mrf.mxu0
        %v1385 = vadd.f32 %v1228, %v1384
        %v1386 = vpop.f32.mrf.mxu0
        %v1387 = vpop.f32.mrf.mxu0
        %v1388 = vadd.f32 %v1228, %v1387
        %v1389 = vpop.f32.mrf.mxu0
        %1390 = vmatprep.mubr.bf16.mxu0 0
        %1391 = vmatmul.mubr.bf16.gmra.mxu0 %v1274
        %v1392 = vpop.f32.mrf.mxu0
        %v1393 = vadd.f32 %v1228, %v1392
        %v1394 = vpop.f32.mrf.mxu0
        %v1395 = vpop.f32.mrf.mxu0
        %v1396 = vadd.f32 %v1228, %v1395
        %v1397 = vpop.f32.mrf.mxu0
        %1398 = vmatprep.mubr.bf16.mxu0 0
        %1399 = vmatmul.mubr.bf16.gmra.mxu0 %v1276
        %v1400 = vpop.f32.mrf.mxu0
        %v1401 = vadd.f32 %v1228, %v1400
        %v1402 = vpop.f32.mrf.mxu0
        %v1403 = vpop.f32.mrf.mxu0
        %v1404 = vadd.f32 %v1228, %v1403
        %v1405 = vpop.f32.mrf.mxu0
        %1406 = vmatprep.mubr.bf16.mxu0 0
        %1407 = vmatmul.mubr.bf16.gmra.mxu0 %v1278
        %v1408 = vpop.f32.mrf.mxu0
        %v1409 = vadd.f32 %v1228, %v1408
        %v1410 = vpop.f32.mrf.mxu0
        %v1411 = vpop.f32.mrf.mxu0
        %v1412 = vadd.f32 %v1228, %v1411
        %v1413 = vpop.f32.mrf.mxu0
        %1414 = vmatprep.mubr.bf16.mxu0 0
        %1415 = vmatmul.mubr.bf16.gmra.mxu0 %v1280
        %v1416 = vpop.f32.mrf.mxu0
        %v1417 = vadd.f32 %v1228, %v1416
        %v1418 = vpop.f32.mrf.mxu0
        %v1419 = vpop.f32.mrf.mxu0
        %v1420 = vadd.f32 %v1228, %v1419
        %v1421 = vpop.f32.mrf.mxu0
        %1422 = vmatprep.mubr.bf16.mxu0 0
        %1423 = vmatmul.mubr.bf16.gmra.mxu0 %v1282
        %v1424 = vpop.f32.mrf.mxu0
        %v1425 = vadd.f32 %v1228, %v1424
        %v1426 = vpop.f32.mrf.mxu0
        %v1427 = vpop.f32.mrf.mxu0
        %v1428 = vadd.f32 %v1228, %v1427
        %v1429 = vpop.f32.mrf.mxu0
        %1430 = vmatprep.mubr.bf16.mxu0 0
        %1431 = vmatmul.mubr.bf16.gmra.mxu0 %v1284
        %v1432 = vpop.f32.mrf.mxu0
        %v1433 = vadd.f32 %v1228, %v1432
        %v1434 = vpop.f32.mrf.mxu0
        %v1435 = vpop.f32.mrf.mxu0
        %v1436 = vadd.f32 %v1228, %v1435
        %v1437 = vpop.f32.mrf.mxu0
        %1438 = vmatprep.mubr.bf16.mxu0 0
        %1439 = vmatmul.mubr.bf16.gmra.mxu0 %v1286
        %v1440 = vpop.f32.mrf.mxu0
        %v1441 = vadd.f32 %v1228, %v1440
        %v1442 = vpop.f32.mrf.mxu0
        %v1443 = vpop.f32.mrf.mxu0
        %v1444 = vadd.f32 %v1228, %v1443
        %v1445 = vpop.f32.mrf.mxu0
        %1446 = vmatprep.mubr.bf16.mxu0 0
        %1447 = vmatmul.mubr.bf16.gmra.mxu0 %v1288
        %v1448 = vpop.f32.mrf.mxu0
        %v1449 = vadd.f32 %v1228, %v1448
        %v1450 = vpop.f32.mrf.mxu0
        %v1451 = vpop.f32.mrf.mxu0
        %v1452 = vadd.f32 %v1228, %v1451
        %v1453 = vpop.f32.mrf.mxu0
        %1454 = vdwg.mxu0
        %v1455 = vxor.u32 %v1329, 2147483648
        %v1456 = vxor.u32 %v1332, 2147483648
        %v1457 = vxor.u32 %v1337, 2147483648
        %v1458 = vxor.u32 %v1340, 2147483648
        %v1459 = vxor.u32 %v1345, 2147483648
        %v1460 = vxor.u32 %v1348, 2147483648
        %v1461 = vxor.u32 %v1353, 2147483648
        %v1462 = vxor.u32 %v1356, 2147483648
        %v1463 = vxor.u32 %v1361, 2147483648
        %v1464 = vxor.u32 %v1364, 2147483648
        %v1465 = vxor.u32 %v1369, 2147483648
        %v1466 = vxor.u32 %v1372, 2147483648
        %v1467 = vxor.u32 %v1377, 2147483648
        %v1468 = vxor.u32 %v1380, 2147483648
        %v1469 = vxor.u32 %v1385, 2147483648
        %v1470 = vxor.u32 %v1388, 2147483648
        %v1471 = vxor.u32 %v1393, 2147483648
        %v1472 = vxor.u32 %v1396, 2147483648
        %v1473 = vxor.u32 %v1401, 2147483648
        %v1474 = vxor.u32 %v1404, 2147483648
        %v1475 = vxor.u32 %v1409, 2147483648
        %v1476 = vxor.u32 %v1412, 2147483648
        %v1477 = vxor.u32 %v1417, 2147483648
        %v1478 = vxor.u32 %v1420, 2147483648
        %v1479 = vxor.u32 %v1425, 2147483648
        %v1480 = vxor.u32 %v1428, 2147483648
        %v1481 = vxor.u32 %v1433, 2147483648
        %v1482 = vxor.u32 %v1436, 2147483648
        %v1483 = vxor.u32 %v1441, 2147483648
        %v1484 = vxor.u32 %v1444, 2147483648
        %v1485 = vxor.u32 %v1449, 2147483648
        %v1486 = vxor.u32 %v1452, 2147483648
        %v1487 = vmul.f32 %v1455, 1.442695
        %v1488 = vpow.pop %v1487
        %v1489 = vmul.f32 %v1456, 1.442695
        %v1490 = vpow.pop %v1489
        %v1491 = vmul.f32 %v1457, 1.442695
        %v1492 = vpow.pop %v1491
        %v1493 = vmul.f32 %v1458, 1.442695
        %v1494 = vpow.pop %v1493
        %v1495 = vmul.f32 %v1459, 1.442695
        %v1496 = vpow.pop %v1495
        %v1497 = vmul.f32 %v1460, 1.442695
        %v1498 = vpow.pop %v1497
        %v1499 = vmul.f32 %v1461, 1.442695
        %v1500 = vpow.pop %v1499
        %v1501 = vmul.f32 %v1462, 1.442695
        %v1502 = vpow.pop %v1501
        %v1503 = vmul.f32 %v1463, 1.442695
        %v1504 = vpow.pop %v1503
        %v1505 = vmul.f32 %v1464, 1.442695
        %v1506 = vpow.pop %v1505
        %v1507 = vmul.f32 %v1465, 1.442695
        %v1508 = vpow.pop %v1507
        %v1509 = vmul.f32 %v1466, 1.442695
        %v1510 = vpow.pop %v1509
        %v1511 = vmul.f32 %v1467, 1.442695
        %v1512 = vpow.pop %v1511
        %v1513 = vmul.f32 %v1468, 1.442695
        %v1514 = vpow.pop %v1513
        %v1515 = vmul.f32 %v1469, 1.442695
        %v1516 = vpow.pop %v1515
        %v1517 = vmul.f32 %v1470, 1.442695
        %v1518 = vpow.pop %v1517
        %v1519 = vmul.f32 %v1471, 1.442695
        %v1520 = vpow.pop %v1519
        %v1521 = vmul.f32 %v1472, 1.442695
        %v1522 = vpow.pop %v1521
        %v1523 = vmul.f32 %v1473, 1.442695
        %v1524 = vpow.pop %v1523
        %v1525 = vmul.f32 %v1474, 1.442695
        %v1526 = vpow.pop %v1525
        %v1527 = vmul.f32 %v1475, 1.442695
        %v1528 = vpow.pop %v1527
        %v1529 = vmul.f32 %v1476, 1.442695
        %v1530 = vpow.pop %v1529
        %v1531 = vmul.f32 %v1477, 1.442695
        %v1532 = vpow.pop %v1531
        %v1533 = vmul.f32 %v1478, 1.442695
        %v1534 = vpow.pop %v1533
        %v1535 = vmul.f32 %v1479, 1.442695
        %v1536 = vpow.pop %v1535
        %v1537 = vmul.f32 %v1480, 1.442695
        %v1538 = vpow.pop %v1537
        %v1539 = vmul.f32 %v1481, 1.442695
        %v1540 = vpow.pop %v1539
        %v1541 = vmul.f32 %v1482, 1.442695
        %v1542 = vpow.pop %v1541
        %v1543 = vmul.f32 %v1483, 1.442695
        %v1544 = vpow.pop %v1543
        %v1545 = vmul.f32 %v1484, 1.442695
        %v1546 = vpow.pop %v1545
        %v1547 = vmul.f32 %v1485, 1.442695
        %v1548 = vpow.pop %v1547
        %v1549 = vmul.f32 %v1486, 1.442695
        %v1550 = vpow.pop %v1549
        %v1551 = vadd.f32 %v1488, 1.0
        %v1552 = vadd.f32 %v1490, 1.0
        %v1553 = vadd.f32 %v1492, 1.0
        %v1554 = vadd.f32 %v1494, 1.0
        %v1555 = vadd.f32 %v1496, 1.0
        %v1556 = vadd.f32 %v1498, 1.0
        %v1557 = vadd.f32 %v1500, 1.0
        %v1558 = vadd.f32 %v1502, 1.0
        %v1559 = vadd.f32 %v1504, 1.0
        %v1560 = vadd.f32 %v1506, 1.0
        %v1561 = vadd.f32 %v1508, 1.0
        %v1562 = vadd.f32 %v1510, 1.0
        %v1563 = vadd.f32 %v1512, 1.0
        %v1564 = vadd.f32 %v1514, 1.0
        %v1565 = vadd.f32 %v1516, 1.0
        %v1566 = vadd.f32 %v1518, 1.0
        %v1567 = vadd.f32 %v1520, 1.0
        %v1568 = vadd.f32 %v1522, 1.0
        %v1569 = vadd.f32 %v1524, 1.0
        %v1570 = vadd.f32 %v1526, 1.0
        %v1571 = vadd.f32 %v1528, 1.0
        %v1572 = vadd.f32 %v1530, 1.0
        %v1573 = vadd.f32 %v1532, 1.0
        %v1574 = vadd.f32 %v1534, 1.0
        %v1575 = vadd.f32 %v1536, 1.0
        %v1576 = vadd.f32 %v1538, 1.0
        %v1577 = vadd.f32 %v1540, 1.0
        %v1578 = vadd.f32 %v1542, 1.0
        %v1579 = vadd.f32 %v1544, 1.0
        %v1580 = vadd.f32 %v1546, 1.0
        %v1581 = vadd.f32 %v1548, 1.0
        %v1582 = vadd.f32 %v1550, 1.0
        %v1583 = vrcp.pop %v1551
        %v1584 = vmul.f32 1.0, %v1583
        %v1585 = vrcp.pop %v1552
        %v1586 = vmul.f32 1.0, %v1585
        %v1587 = vrcp.pop %v1553
        %v1588 = vmul.f32 1.0, %v1587
        %v1589 = vrcp.pop %v1554
        %v1590 = vmul.f32 1.0, %v1589
        %v1591 = vrcp.pop %v1555
        %v1592 = vmul.f32 1.0, %v1591
        %v1593 = vrcp.pop %v1556
        %v1594 = vmul.f32 1.0, %v1593
        %v1595 = vrcp.pop %v1557
        %v1596 = vmul.f32 1.0, %v1595
        %v1597 = vrcp.pop %v1558
        %v1598 = vmul.f32 1.0, %v1597
        %v1599 = vrcp.pop %v1559
        %v1600 = vmul.f32 1.0, %v1599
        %v1601 = vrcp.pop %v1560
        %v1602 = vmul.f32 1.0, %v1601
        %v1603 = vrcp.pop %v1561
        %v1604 = vmul.f32 1.0, %v1603
        %v1605 = vrcp.pop %v1562
        %v1606 = vmul.f32 1.0, %v1605
        %v1607 = vrcp.pop %v1563
        %v1608 = vmul.f32 1.0, %v1607
        %v1609 = vrcp.pop %v1564
        %v1610 = vmul.f32 1.0, %v1609
        %v1611 = vrcp.pop %v1565
        %v1612 = vmul.f32 1.0, %v1611
        %v1613 = vrcp.pop %v1566
        %v1614 = vmul.f32 1.0, %v1613
        %v1615 = vrcp.pop %v1567
        %v1616 = vmul.f32 1.0, %v1615
        %v1617 = vrcp.pop %v1568
        %v1618 = vmul.f32 1.0, %v1617
        %v1619 = vrcp.pop %v1569
        %v1620 = vmul.f32 1.0, %v1619
        %v1621 = vrcp.pop %v1570
        %v1622 = vmul.f32 1.0, %v1621
        %v1623 = vrcp.pop %v1571
        %v1624 = vmul.f32 1.0, %v1623
        %v1625 = vrcp.pop %v1572
        %v1626 = vmul.f32 1.0, %v1625
        %v1627 = vrcp.pop %v1573
        %v1628 = vmul.f32 1.0, %v1627
        %v1629 = vrcp.pop %v1574
        %v1630 = vmul.f32 1.0, %v1629
        %v1631 = vrcp.pop %v1575
        %v1632 = vmul.f32 1.0, %v1631
        %v1633 = vrcp.pop %v1576
        %v1634 = vmul.f32 1.0, %v1633
        %v1635 = vrcp.pop %v1577
        %v1636 = vmul.f32 1.0, %v1635
        %v1637 = vrcp.pop %v1578
        %v1638 = vmul.f32 1.0, %v1637
        %v1639 = vrcp.pop %v1579
        %v1640 = vmul.f32 1.0, %v1639
        %v1641 = vrcp.pop %v1580
        %v1642 = vmul.f32 1.0, %v1641
        %v1643 = vrcp.pop %v1581
        %v1644 = vmul.f32 1.0, %v1643
        %v1645 = vrcp.pop %v1582
        %v1646 = vmul.f32 1.0, %v1645
        %vm1647 = vcmask 60416
        %1648 = vst.msk [vmem:[#allocation2] sm:$0xf] %vm1647, 0
        %1649 = vst.msk [vmem:[#allocation2 + $0x4] sm:$0xf] %vm1647, 0
        %vm1650 = vcmask 57344
        %1651 = vst.msk [vmem:[#allocation2 + $0x8] sm:$0x1] %vm1650, 0
        %1652 = vst.msk [vmem:[#allocation2 + $0xc] sm:$0xf] %vm1647, 0
        %1653 = vst.msk [vmem:[#allocation2 + $0x10] sm:$0xf] %vm1647, 0
        %1654 = vst.msk [vmem:[#allocation2 + $0x14] sm:$0x1] %vm1650, 0
        %1655 = vst.msk [vmem:[#allocation2 + $0x18] sm:$0xf] %vm1647, 0
        %1656 = vst.msk [vmem:[#allocation2 + $0x1c] sm:$0xf] %vm1647, 0
        %1657 = vst.msk [vmem:[#allocation2 + $0x20] sm:$0x1] %vm1650, 0
        %1658 = vst.msk [vmem:[#allocation2 + $0x24] sm:$0xf] %vm1647, 0
        %1659 = vst.msk [vmem:[#allocation2 + $0x28] sm:$0xf] %vm1647, 0
        %1660 = vst.msk [vmem:[#allocation2 + $0x2c] sm:$0x1] %vm1650, 0
        %1661 = vst.msk [vmem:[#allocation2 + $0x30] sm:$0xf] %vm1647, 0
        %1662 = vst.msk [vmem:[#allocation2 + $0x34] sm:$0xf] %vm1647, 0
        %1663 = vst.msk [vmem:[#allocation2 + $0x38] sm:$0x1] %vm1650, 0
        %1664 = vst.msk [vmem:[#allocation2 + $0x3c] sm:$0xf] %vm1647, 0
        %1665 = vst.msk [vmem:[#allocation2 + $0x40] sm:$0xf] %vm1647, 0
        %1666 = vst.msk [vmem:[#allocation2 + $0x44] sm:$0x1] %vm1650, 0
        %1667 = vst.msk [vmem:[#allocation2 + $0x48] sm:$0xf] %vm1647, 0
        %1668 = vst.msk [vmem:[#allocation2 + $0x4c] sm:$0xf] %vm1647, 0
        %1669 = vst.msk [vmem:[#allocation2 + $0x50] sm:$0x1] %vm1650, 0
        %1670 = vst.msk [vmem:[#allocation2 + $0x54] sm:$0xf] %vm1647, 0
        %1671 = vst.msk [vmem:[#allocation2 + $0x58] sm:$0xf] %vm1647, 0
        %1672 = vst.msk [vmem:[#allocation2 + $0x5c] sm:$0x1] %vm1650, 0
        %1673 = vst.msk [vmem:[#allocation2 + $0x60] sm:$0xf] %vm1647, 0
        %1674 = vst.msk [vmem:[#allocation2 + $0x64] sm:$0xf] %vm1647, 0
        %1675 = vst.msk [vmem:[#allocation2 + $0x68] sm:$0x1] %vm1650, 0
        %1676 = vst.msk [vmem:[#allocation2 + $0x6c] sm:$0xf] %vm1647, 0
        %1677 = vst.msk [vmem:[#allocation2 + $0x70] sm:$0xf] %vm1647, 0
        %1678 = vst.msk [vmem:[#allocation2 + $0x74] sm:$0x1] %vm1650, 0
        %1679 = vst.msk [vmem:[#allocation2 + $0x78] sm:$0xf] %vm1647, 0
        %1680 = vst.msk [vmem:[#allocation2 + $0x7c] sm:$0xf] %vm1647, 0
        %1681 = vst.msk [vmem:[#allocation2 + $0x80] sm:$0x1] %vm1650, 0
        %1682 = vst.msk [vmem:[#allocation2 + $0x84] sm:$0xf] %vm1647, 0
        %1683 = vst.msk [vmem:[#allocation2 + $0x88] sm:$0xf] %vm1647, 0
        %1684 = vst.msk [vmem:[#allocation2 + $0x8c] sm:$0x1] %vm1650, 0
        %1685 = vst.msk [vmem:[#allocation2 + $0x90] sm:$0xf] %vm1647, 0
        %1686 = vst.msk [vmem:[#allocation2 + $0x94] sm:$0xf] %vm1647, 0
        %1687 = vst.msk [vmem:[#allocation2 + $0x98] sm:$0x1] %vm1650, 0
        %1688 = vst.msk [vmem:[#allocation2 + $0x9c] sm:$0xf] %vm1647, 0
        %1689 = vst.msk [vmem:[#allocation2 + $0xa0] sm:$0xf] %vm1647, 0
        %1690 = vst.msk [vmem:[#allocation2 + $0xa4] sm:$0x1] %vm1650, 0
        %1691 = vst.msk [vmem:[#allocation2 + $0xa8] sm:$0xf] %vm1647, 0
        %1692 = vst.msk [vmem:[#allocation2 + $0xac] sm:$0xf] %vm1647, 0
        %1693 = vst.msk [vmem:[#allocation2 + $0xb0] sm:$0x1] %vm1650, 0
        %1694 = vst.msk [vmem:[#allocation2 + $0xb4] sm:$0xf] %vm1647, 0
        %1695 = vst.msk [vmem:[#allocation2 + $0xb8] sm:$0xf] %vm1647, 0
        %1696 = vst.msk [vmem:[#allocation2 + $0xbc] sm:$0x1] %vm1650, 0
        %1697 = vst.msk [vmem:[#allocation2 + $0xc0] sm:$0xf] %vm1647, 0
        %1698 = vst.msk [vmem:[#allocation2 + $0xc4] sm:$0xf] %vm1647, 0
        %1699 = vst.msk [vmem:[#allocation2 + $0xc8] sm:$0x1] %vm1650, 0
        %1700 = vst.msk [vmem:[#allocation2 + $0xcc] sm:$0xf] %vm1647, 0
        %1701 = vst.msk [vmem:[#allocation2 + $0xd0] sm:$0xf] %vm1647, 0
        %1702 = vst.msk [vmem:[#allocation2 + $0xd4] sm:$0x1] %vm1650, 0
        %v1703 = vpack.c.bf16 %v1586, %v1584
        %v1704 = vpack.c.bf16 %v1590, %v1588
        %v1705 = vpack.c.bf16 %v1594, %v1592
        %v1706 = vpack.c.bf16 %v1598, %v1596
        %v1707 = vpack.c.bf16 %v1602, %v1600
        %v1708 = vpack.c.bf16 %v1606, %v1604
        %v1709 = vpack.c.bf16 %v1610, %v1608
        %v1710 = vpack.c.bf16 %v1614, %v1612
        %v1711 = vpack.c.bf16 %v1618, %v1616
        %v1712 = vpack.c.bf16 %v1622, %v1620
        %v1713 = vpack.c.bf16 %v1626, %v1624
        %v1714 = vpack.c.bf16 %v1630, %v1628
        %v1715 = vpack.c.bf16 %v1634, %v1632
        %v1716 = vpack.c.bf16 %v1638, %v1636
        %v1717 = vpack.c.bf16 %v1642, %v1640
        %v1718 = vpack.c.bf16 %v1646, %v1644
        %v1735 = vunpack.c.l.b16 %v1703
        %v1736 = vunpack.c.h.b16 %v1703
        %v1737 = vunpack.c.l.b16 %v1704
        %v1738 = vunpack.c.h.b16 %v1704
        %v1739 = vunpack.c.l.b16 %v1705
        %v1740 = vunpack.c.h.b16 %v1705
        %v1741 = vunpack.c.l.b16 %v1706
        %v1742 = vunpack.c.h.b16 %v1706
        %v1743 = vunpack.c.l.b16 %v1707
        %v1744 = vunpack.c.h.b16 %v1707
        %v1745 = vunpack.c.l.b16 %v1708
        %v1746 = vunpack.c.h.b16 %v1708
        %v1747 = vunpack.c.l.b16 %v1709
        %v1748 = vunpack.c.h.b16 %v1709
        %v1749 = vunpack.c.l.b16 %v1710
        %v1750 = vunpack.c.h.b16 %v1710
        %v1751 = vunpack.c.l.b16 %v1711
        %v1752 = vunpack.c.h.b16 %v1711
        %v1753 = vunpack.c.l.b16 %v1712
        %v1754 = vunpack.c.h.b16 %v1712
        %v1755 = vunpack.c.l.b16 %v1713
        %v1756 = vunpack.c.h.b16 %v1713
        %v1757 = vunpack.c.l.b16 %v1714
        %v1758 = vunpack.c.h.b16 %v1714
        %v1759 = vunpack.c.l.b16 %v1715
        %v1760 = vunpack.c.h.b16 %v1715
        %v1761 = vunpack.c.l.b16 %v1716
        %v1762 = vunpack.c.h.b16 %v1716
        %v1763 = vunpack.c.l.b16 %v1717
        %v1764 = vunpack.c.h.b16 %v1717
        %v1765 = vunpack.c.l.b16 %v1718
        %v1766 = vunpack.c.h.b16 %v1718
        %v1767 = vpack.c.b16 %v1735, %v1735
        %v1768 = vpack.c.b16 %v1736, %v1736
        %v1769 = vpack.c.b16 %v1737, %v1737
        %v1770 = vpack.c.b16 %v1738, %v1738
        %v1771 = vpack.c.b16 %v1739, %v1739
        %v1772 = vpack.c.b16 %v1740, %v1740
        %v1773 = vpack.c.b16 %v1741, %v1741
        %v1774 = vpack.c.b16 %v1742, %v1742
        %v1775 = vpack.c.b16 %v1743, %v1743
        %v1776 = vpack.c.b16 %v1744, %v1744
        %v1777 = vpack.c.b16 %v1745, %v1745
        %v1778 = vpack.c.b16 %v1746, %v1746
        %v1779 = vpack.c.b16 %v1747, %v1747
        %v1780 = vpack.c.b16 %v1748, %v1748
        %v1781 = vpack.c.b16 %v1749, %v1749
        %v1782 = vpack.c.b16 %v1750, %v1750
        %v1783 = vpack.c.b16 %v1751, %v1751
        %v1784 = vpack.c.b16 %v1752, %v1752
        %v1785 = vpack.c.b16 %v1753, %v1753
        %v1786 = vpack.c.b16 %v1754, %v1754
        %v1787 = vpack.c.b16 %v1755, %v1755
        %v1788 = vpack.c.b16 %v1756, %v1756
        %v1789 = vpack.c.b16 %v1757, %v1757
        %v1790 = vpack.c.b16 %v1758, %v1758
        %v1791 = vpack.c.b16 %v1759, %v1759
        %v1792 = vpack.c.b16 %v1760, %v1760
        %v1793 = vpack.c.b16 %v1761, %v1761
        %v1794 = vpack.c.b16 %v1762, %v1762
        %v1795 = vpack.c.b16 %v1763, %v1763
        %v1796 = vpack.c.b16 %v1764, %v1764
        %v1797 = vpack.c.b16 %v1765, %v1765
        %v1798 = vpack.c.b16 %v1766, %v1766
        %vm1799 = vsmask.f32 256
        %vm1800 = vsmask.f32 4368
        %vm1801 = vmor %vm1799, %vm1800
        %v1803 = vshrl.u32 %v1767, 16
        %v1805 = vrot.slane %v1803, 7
        %v1806 = vshll.u32 %v1767, 16
        %v1808 = vor.u32 %v1805, %v1806
        %v1809 = vrot.slane %v1805, 4
        %v1811 = vshrl.u32 %v1768, 16
        %v1813 = vrot.slane %v1811, 7
        %v1814 = vshll.u32 %v1768, 16
        %v1816 = vor.u32 %v1813, %v1814
        %v1817 = vsel %vm1801, %v1809, %v1816
        %v1818 = vrot.slane %v1813, 4
        %v1820 = vshrl.u32 %v1769, 16
        %v1822 = vrot.slane %v1820, 7
        %v1823 = vshll.u32 %v1769, 16
        %v1825 = vor.u32 %v1822, %v1823
        %v1826 = vrot.slane %v1822, 4
        %v1828 = vshrl.u32 %v1770, 16
        %v1830 = vrot.slane %v1828, 7
        %v1831 = vshll.u32 %v1770, 16
        %v1833 = vor.u32 %v1830, %v1831
        %v1834 = vsel %vm1801, %v1826, %v1833
        %v1835 = vrot.slane %v1830, 4
        %v1837 = vshrl.u32 %v1771, 16
        %v1839 = vrot.slane %v1837, 7
        %v1840 = vshll.u32 %v1771, 16
        %v1842 = vor.u32 %v1839, %v1840
        %v1843 = vrot.slane %v1839, 4
        %v1845 = vshrl.u32 %v1772, 16
        %v1847 = vrot.slane %v1845, 7
        %v1848 = vshll.u32 %v1772, 16
        %v1850 = vor.u32 %v1847, %v1848
        %v1851 = vsel %vm1801, %v1843, %v1850
        %v1852 = vrot.slane %v1847, 4
        %v1854 = vshrl.u32 %v1773, 16
        %v1856 = vrot.slane %v1854, 7
        %v1857 = vshll.u32 %v1773, 16
        %v1859 = vor.u32 %v1856, %v1857
        %v1860 = vrot.slane %v1856, 4
        %v1862 = vshrl.u32 %v1774, 16
        %v1864 = vrot.slane %v1862, 7
        %v1865 = vshll.u32 %v1774, 16
        %v1867 = vor.u32 %v1864, %v1865
        %v1868 = vsel %vm1801, %v1860, %v1867
        %v1869 = vrot.slane %v1864, 4
        %v1871 = vshrl.u32 %v1775, 16
        %v1873 = vrot.slane %v1871, 7
        %v1874 = vshll.u32 %v1775, 16
        %v1876 = vor.u32 %v1873, %v1874
        %v1877 = vrot.slane %v1873, 4
        %v1879 = vshrl.u32 %v1776, 16
        %v1881 = vrot.slane %v1879, 7
        %v1882 = vshll.u32 %v1776, 16
        %v1884 = vor.u32 %v1881, %v1882
        %v1885 = vsel %vm1801, %v1877, %v1884
        %v1886 = vrot.slane %v1881, 4
        %v1888 = vshrl.u32 %v1777, 16
        %v1890 = vrot.slane %v1888, 7
        %v1891 = vshll.u32 %v1777, 16
        %v1893 = vor.u32 %v1890, %v1891
        %v1894 = vrot.slane %v1890, 4
        %v1896 = vshrl.u32 %v1778, 16
        %v1898 = vrot.slane %v1896, 7
        %v1899 = vshll.u32 %v1778, 16
        %v1901 = vor.u32 %v1898, %v1899
        %v1902 = vsel %vm1801, %v1894, %v1901
        %v1903 = vrot.slane %v1898, 4
        %v1905 = vshrl.u32 %v1779, 16
        %v1907 = vrot.slane %v1905, 7
        %v1908 = vshll.u32 %v1779, 16
        %v1910 = vor.u32 %v1907, %v1908
        %v1911 = vrot.slane %v1907, 4
        %v1913 = vshrl.u32 %v1780, 16
        %v1915 = vrot.slane %v1913, 7
        %v1916 = vshll.u32 %v1780, 16
        %v1918 = vor.u32 %v1915, %v1916
        %v1919 = vsel %vm1801, %v1911, %v1918
        %v1920 = vrot.slane %v1915, 4
        %v1922 = vshrl.u32 %v1781, 16
        %v1924 = vrot.slane %v1922, 7
        %v1925 = vshll.u32 %v1781, 16
        %v1927 = vor.u32 %v1924, %v1925
        %v1928 = vrot.slane %v1924, 4
        %v1930 = vshrl.u32 %v1782, 16
        %v1932 = vrot.slane %v1930, 7
        %v1933 = vshll.u32 %v1782, 16
        %v1935 = vor.u32 %v1932, %v1933
        %v1936 = vsel %vm1801, %v1928, %v1935
        %v1937 = vrot.slane %v1932, 4
        %v1939 = vshrl.u32 %v1783, 16
        %v1941 = vrot.slane %v1939, 7
        %v1942 = vshll.u32 %v1783, 16
        %v1944 = vor.u32 %v1941, %v1942
        %v1945 = vrot.slane %v1941, 4
        %v1947 = vshrl.u32 %v1784, 16
        %v1949 = vrot.slane %v1947, 7
        %v1950 = vshll.u32 %v1784, 16
        %v1952 = vor.u32 %v1949, %v1950
        %v1953 = vsel %vm1801, %v1945, %v1952
        %v1954 = vrot.slane %v1949, 4
        %v1956 = vshrl.u32 %v1785, 16
        %v1958 = vrot.slane %v1956, 7
        %v1959 = vshll.u32 %v1785, 16
        %v1961 = vor.u32 %v1958, %v1959
        %v1962 = vrot.slane %v1958, 4
        %v1964 = vshrl.u32 %v1786, 16
        %v1966 = vrot.slane %v1964, 7
        %v1967 = vshll.u32 %v1786, 16
        %v1969 = vor.u32 %v1966, %v1967
        %v1970 = vsel %vm1801, %v1962, %v1969
        %v1971 = vrot.slane %v1966, 4
        %v1973 = vshrl.u32 %v1787, 16
        %v1975 = vrot.slane %v1973, 7
        %v1976 = vshll.u32 %v1787, 16
        %v1978 = vor.u32 %v1975, %v1976
        %v1979 = vrot.slane %v1975, 4
        %v1981 = vshrl.u32 %v1788, 16
        %v1983 = vrot.slane %v1981, 7
        %v1984 = vshll.u32 %v1788, 16
        %v1986 = vor.u32 %v1983, %v1984
        %v1987 = vsel %vm1801, %v1979, %v1986
        %v1988 = vrot.slane %v1983, 4
        %v1990 = vshrl.u32 %v1789, 16
        %v1992 = vrot.slane %v1990, 7
        %v1993 = vshll.u32 %v1789, 16
        %v1995 = vor.u32 %v1992, %v1993
        %v1996 = vrot.slane %v1992, 4
        %v1998 = vshrl.u32 %v1790, 16
        %v2000 = vrot.slane %v1998, 7
        %v2001 = vshll.u32 %v1790, 16
        %v2003 = vor.u32 %v2000, %v2001
        %v2004 = vsel %vm1801, %v1996, %v2003
        %v2005 = vrot.slane %v2000, 4
        %v2007 = vshrl.u32 %v1791, 16
        %v2009 = vrot.slane %v2007, 7
        %v2010 = vshll.u32 %v1791, 16
        %v2012 = vor.u32 %v2009, %v2010
        %v2013 = vrot.slane %v2009, 4
        %v2015 = vshrl.u32 %v1792, 16
        %v2017 = vrot.slane %v2015, 7
        %v2018 = vshll.u32 %v1792, 16
        %v2020 = vor.u32 %v2017, %v2018
        %v2021 = vsel %vm1801, %v2013, %v2020
        %v2022 = vrot.slane %v2017, 4
        %v2024 = vshrl.u32 %v1793, 16
        %v2026 = vrot.slane %v2024, 7
        %v2027 = vshll.u32 %v1793, 16
        %v2029 = vor.u32 %v2026, %v2027
        %v2030 = vrot.slane %v2026, 4
        %v2032 = vshrl.u32 %v1794, 16
        %v2034 = vrot.slane %v2032, 7
        %v2035 = vshll.u32 %v1794, 16
        %v2037 = vor.u32 %v2034, %v2035
        %v2038 = vsel %vm1801, %v2030, %v2037
        %v2039 = vrot.slane %v2034, 4
        %v2041 = vshrl.u32 %v1795, 16
        %v2043 = vrot.slane %v2041, 7
        %v2044 = vshll.u32 %v1795, 16
        %v2046 = vor.u32 %v2043, %v2044
        %v2047 = vrot.slane %v2043, 4
        %v2049 = vshrl.u32 %v1796, 16
        %v2051 = vrot.slane %v2049, 7
        %v2052 = vshll.u32 %v1796, 16
        %v2054 = vor.u32 %v2051, %v2052
        %v2055 = vsel %vm1801, %v2047, %v2054
        %v2056 = vrot.slane %v2051, 4
        %v2058 = vshrl.u32 %v1797, 16
        %v2060 = vrot.slane %v2058, 7
        %v2061 = vshll.u32 %v1797, 16
        %v2063 = vor.u32 %v2060, %v2061
        %v2064 = vrot.slane %v2060, 4
        %v2066 = vshrl.u32 %v1798, 16
        %v2068 = vrot.slane %v2066, 7
        %v2069 = vshll.u32 %v1798, 16
        %v2071 = vor.u32 %v2068, %v2069
        %v2072 = vsel %vm1801, %v2064, %v2071
        %v2073 = vrot.slane %v2068, 4
        %s2122 = scalar_lea.vmem [#allocation2], 12
        %vm2123 = vcmask 60416
        %vm2124 = vsmask.f32 7938
        %vm2125 = vmand %vm2123, %vm2124
        %v2126 = vld [vmem:[%s2122] sm:$0xf]
        %v2127 = vsel %vm2125, %v1808, %v2126
        %2128 = vst [vmem:[%s2122] sm:$0xf] %v2127
        %2129 = vst.msk [vmem:[%s2122 + $0x4] sm:$0xf] %vm1647, %v1817
        %vm2130 = vcmask 57344
        %vm2131 = vmand %vm2130, %vm1799
        %v2132 = vld [vmem:[%s2122 + $0x8] sm:$0x1]
        %v2133 = vsel %vm2131, %v1818, %v2132
        %2134 = vst [vmem:[%s2122 + $0x8] sm:$0x1] %v2133
        %v2135 = vld [vmem:[%s2122 + $0xc] sm:$0xf]
        %v2136 = vsel %vm2125, %v1825, %v2135
        %2137 = vst [vmem:[%s2122 + $0xc] sm:$0xf] %v2136
        %2138 = vst.msk [vmem:[%s2122 + $0x10] sm:$0xf] %vm1647, %v1834
        %v2139 = vld [vmem:[%s2122 + $0x14] sm:$0x1]
        %v2140 = vsel %vm2131, %v1835, %v2139
        %2141 = vst [vmem:[%s2122 + $0x14] sm:$0x1] %v2140
        %v2142 = vld [vmem:[%s2122 + $0x18] sm:$0xf]
        %v2143 = vsel %vm2125, %v1842, %v2142
        %2144 = vst [vmem:[%s2122 + $0x18] sm:$0xf] %v2143
        %2145 = vst.msk [vmem:[%s2122 + $0x1c] sm:$0xf] %vm1647, %v1851
        %v2146 = vld [vmem:[%s2122 + $0x20] sm:$0x1]
        %v2147 = vsel %vm2131, %v1852, %v2146
        %2148 = vst [vmem:[%s2122 + $0x20] sm:$0x1] %v2147
        %v2149 = vld [vmem:[%s2122 + $0x24] sm:$0xf]
        %v2150 = vsel %vm2125, %v1859, %v2149
        %2151 = vst [vmem:[%s2122 + $0x24] sm:$0xf] %v2150
        %2152 = vst.msk [vmem:[%s2122 + $0x28] sm:$0xf] %vm1647, %v1868
        %v2153 = vld [vmem:[%s2122 + $0x2c] sm:$0x1]
        %v2154 = vsel %vm2131, %v1869, %v2153
        %2155 = vst [vmem:[%s2122 + $0x2c] sm:$0x1] %v2154
        %v2156 = vld [vmem:[%s2122 + $0x30] sm:$0xf]
        %v2157 = vsel %vm2125, %v1876, %v2156
        %2158 = vst [vmem:[%s2122 + $0x30] sm:$0xf] %v2157
        %2159 = vst.msk [vmem:[%s2122 + $0x34] sm:$0xf] %vm1647, %v1885
        %v2160 = vld [vmem:[%s2122 + $0x38] sm:$0x1]
        %v2161 = vsel %vm2131, %v1886, %v2160
        %2162 = vst [vmem:[%s2122 + $0x38] sm:$0x1] %v2161
        %v2163 = vld [vmem:[%s2122 + $0x3c] sm:$0xf]
        %v2164 = vsel %vm2125, %v1893, %v2163
        %2165 = vst [vmem:[%s2122 + $0x3c] sm:$0xf] %v2164
        %2166 = vst.msk [vmem:[%s2122 + $0x40] sm:$0xf] %vm1647, %v1902
        %v2167 = vld [vmem:[%s2122 + $0x44] sm:$0x1]
        %v2168 = vsel %vm2131, %v1903, %v2167
        %2169 = vst [vmem:[%s2122 + $0x44] sm:$0x1] %v2168
        %v2170 = vld [vmem:[%s2122 + $0x48] sm:$0xf]
        %v2171 = vsel %vm2125, %v1910, %v2170
        %2172 = vst [vmem:[%s2122 + $0x48] sm:$0xf] %v2171
        %2173 = vst.msk [vmem:[%s2122 + $0x4c] sm:$0xf] %vm1647, %v1919
        %v2174 = vld [vmem:[%s2122 + $0x50] sm:$0x1]
        %v2175 = vsel %vm2131, %v1920, %v2174
        %2176 = vst [vmem:[%s2122 + $0x50] sm:$0x1] %v2175
        %v2177 = vld [vmem:[%s2122 + $0x54] sm:$0xf]
        %v2178 = vsel %vm2125, %v1927, %v2177
        %2179 = vst [vmem:[%s2122 + $0x54] sm:$0xf] %v2178
        %2180 = vst.msk [vmem:[%s2122 + $0x58] sm:$0xf] %vm1647, %v1936
        %v2181 = vld [vmem:[%s2122 + $0x5c] sm:$0x1]
        %v2182 = vsel %vm2131, %v1937, %v2181
        %2183 = vst [vmem:[%s2122 + $0x5c] sm:$0x1] %v2182
        %v2184 = vld [vmem:[%s2122 + $0x60] sm:$0xf]
        %v2185 = vsel %vm2125, %v1944, %v2184
        %2186 = vst [vmem:[%s2122 + $0x60] sm:$0xf] %v2185
        %2187 = vst.msk [vmem:[%s2122 + $0x64] sm:$0xf] %vm1647, %v1953
        %v2188 = vld [vmem:[%s2122 + $0x68] sm:$0x1]
        %v2189 = vsel %vm2131, %v1954, %v2188
        %2190 = vst [vmem:[%s2122 + $0x68] sm:$0x1] %v2189
        %v2191 = vld [vmem:[%s2122 + $0x6c] sm:$0xf]
        %v2192 = vsel %vm2125, %v1961, %v2191
        %2193 = vst [vmem:[%s2122 + $0x6c] sm:$0xf] %v2192
        %2194 = vst.msk [vmem:[%s2122 + $0x70] sm:$0xf] %vm1647, %v1970
        %v2195 = vld [vmem:[%s2122 + $0x74] sm:$0x1]
        %v2196 = vsel %vm2131, %v1971, %v2195
        %2197 = vst [vmem:[%s2122 + $0x74] sm:$0x1] %v2196
        %v2198 = vld [vmem:[%s2122 + $0x78] sm:$0xf]
        %v2199 = vsel %vm2125, %v1978, %v2198
        %2200 = vst [vmem:[%s2122 + $0x78] sm:$0xf] %v2199
        %2201 = vst.msk [vmem:[%s2122 + $0x7c] sm:$0xf] %vm1647, %v1987
        %v2202 = vld [vmem:[%s2122 + $0x80] sm:$0x1]
        %v2203 = vsel %vm2131, %v1988, %v2202
        %2204 = vst [vmem:[%s2122 + $0x80] sm:$0x1] %v2203
        %v2205 = vld [vmem:[%s2122 + $0x84] sm:$0xf]
        %v2206 = vsel %vm2125, %v1995, %v2205
        %2207 = vst [vmem:[%s2122 + $0x84] sm:$0xf] %v2206
        %2208 = vst.msk [vmem:[%s2122 + $0x88] sm:$0xf] %vm1647, %v2004
        %v2209 = vld [vmem:[%s2122 + $0x8c] sm:$0x1]
        %v2210 = vsel %vm2131, %v2005, %v2209
        %2211 = vst [vmem:[%s2122 + $0x8c] sm:$0x1] %v2210
        %v2212 = vld [vmem:[%s2122 + $0x90] sm:$0xf]
        %v2213 = vsel %vm2125, %v2012, %v2212
        %2214 = vst [vmem:[%s2122 + $0x90] sm:$0xf] %v2213
        %2215 = vst.msk [vmem:[%s2122 + $0x94] sm:$0xf] %vm1647, %v2021
        %v2216 = vld [vmem:[%s2122 + $0x98] sm:$0x1]
        %v2217 = vsel %vm2131, %v2022, %v2216
        %2218 = vst [vmem:[%s2122 + $0x98] sm:$0x1] %v2217
        %v2219 = vld [vmem:[%s2122 + $0x9c] sm:$0xf]
        %v2220 = vsel %vm2125, %v2029, %v2219
        %2221 = vst [vmem:[%s2122 + $0x9c] sm:$0xf] %v2220
        %2222 = vst.msk [vmem:[%s2122 + $0xa0] sm:$0xf] %vm1647, %v2038
        %v2223 = vld [vmem:[%s2122 + $0xa4] sm:$0x1]
        %v2224 = vsel %vm2131, %v2039, %v2223
        %2225 = vst [vmem:[%s2122 + $0xa4] sm:$0x1] %v2224
        %v2226 = vld [vmem:[%s2122 + $0xa8] sm:$0xf]
        %v2227 = vsel %vm2125, %v2046, %v2226
        %2228 = vst [vmem:[%s2122 + $0xa8] sm:$0xf] %v2227
        %2229 = vst.msk [vmem:[%s2122 + $0xac] sm:$0xf] %vm1647, %v2055
        %v2230 = vld [vmem:[%s2122 + $0xb0] sm:$0x1]
        %v2231 = vsel %vm2131, %v2056, %v2230
        %2232 = vst [vmem:[%s2122 + $0xb0] sm:$0x1] %v2231
        %v2233 = vld [vmem:[%s2122 + $0xb4] sm:$0xf]
        %v2234 = vsel %vm2125, %v2063, %v2233
        %2235 = vst [vmem:[%s2122 + $0xb4] sm:$0xf] %v2234
        %2236 = vst.msk [vmem:[%s2122 + $0xb8] sm:$0xf] %vm1647, %v2072
        %v2237 = vld [vmem:[%s2122 + $0xbc] sm:$0x1]
        %v2238 = vsel %vm2131, %v2073, %v2237
        %2239 = vst [vmem:[%s2122 + $0xbc] sm:$0x1] %v2238
        %v2240 = vld [vmem:[#allocation2] sm:$0xf]
        %v2241 = vld [vmem:[#allocation2 + $0x4] sm:$0xf]
        %v2242 = vld [vmem:[#allocation2 + $0xc] sm:$0xf]
        %v2243 = vld [vmem:[#allocation2 + $0x10] sm:$0xf]
        %v2244 = vld [vmem:[#allocation2 + $0x18] sm:$0xf]
        %v2245 = vld [vmem:[#allocation2 + $0x1c] sm:$0xf]
        %v2246 = vld [vmem:[#allocation2 + $0x24] sm:$0xf]
        %v2247 = vld [vmem:[#allocation2 + $0x28] sm:$0xf]
        %v2248 = vld [vmem:[#allocation2 + $0x30] sm:$0xf]
        %v2249 = vld [vmem:[#allocation2 + $0x34] sm:$0xf]
        %v2250 = vld [vmem:[#allocation2 + $0x3c] sm:$0xf]
        %v2251 = vld [vmem:[#allocation2 + $0x40] sm:$0xf]
        %v2252 = vld [vmem:[#allocation2 + $0x48] sm:$0xf]
        %v2253 = vld [vmem:[#allocation2 + $0x4c] sm:$0xf]
        %v2254 = vld [vmem:[#allocation2 + $0x54] sm:$0xf]
        %v2255 = vld [vmem:[#allocation2 + $0x58] sm:$0xf]
        %v2256 = vld [vmem:[#allocation2 + $0x60] sm:$0xf]
        %v2257 = vld [vmem:[#allocation2 + $0x64] sm:$0xf]
        %v2258 = vld [vmem:[#allocation2 + $0x6c] sm:$0xf]
        %v2259 = vld [vmem:[#allocation2 + $0x70] sm:$0xf]
        %v2260 = vld [vmem:[#allocation2 + $0x78] sm:$0xf]
        %v2261 = vld [vmem:[#allocation2 + $0x7c] sm:$0xf]
        %v2262 = vld [vmem:[#allocation2 + $0x84] sm:$0xf]
        %v2263 = vld [vmem:[#allocation2 + $0x88] sm:$0xf]
        %v2264 = vld [vmem:[#allocation2 + $0x90] sm:$0xf]
        %v2265 = vld [vmem:[#allocation2 + $0x94] sm:$0xf]
        %v2266 = vld [vmem:[#allocation2 + $0x9c] sm:$0xf]
        %v2267 = vld [vmem:[#allocation2 + $0xa0] sm:$0xf]
        %v2268 = vld [vmem:[#allocation2 + $0xa8] sm:$0xf]
        %v2269 = vld [vmem:[#allocation2 + $0xac] sm:$0xf]
        %v2270 = vld [vmem:[#allocation2 + $0xb4] sm:$0xf]
        %v2271 = vld [vmem:[#allocation2 + $0xb8] sm:$0xf]
        %v2272 = vld [vmem:[#allocation2 + $0x8] sm:$0x1]
        %v2273 = vld [vmem:[#allocation2 + $0x14] sm:$0x1]
        %v2274 = vld [vmem:[#allocation2 + $0x20] sm:$0x1]
        %v2275 = vld [vmem:[#allocation2 + $0x2c] sm:$0x1]
        %v2276 = vld [vmem:[#allocation2 + $0x38] sm:$0x1]
        %v2277 = vld [vmem:[#allocation2 + $0x44] sm:$0x1]
        %v2278 = vld [vmem:[#allocation2 + $0x50] sm:$0x1]
        %v2279 = vld [vmem:[#allocation2 + $0x5c] sm:$0x1]
        %v2280 = vld [vmem:[#allocation2 + $0x68] sm:$0x1]
        %v2281 = vld [vmem:[#allocation2 + $0x74] sm:$0x1]
        %v2282 = vld [vmem:[#allocation2 + $0x80] sm:$0x1]
        %v2283 = vld [vmem:[#allocation2 + $0x8c] sm:$0x1]
        %v2284 = vld [vmem:[#allocation2 + $0x98] sm:$0x1]
        %v2285 = vld [vmem:[#allocation2 + $0xa4] sm:$0x1]
        %v2286 = vld [vmem:[#allocation2 + $0xb0] sm:$0x1]
        %v2287 = vld [vmem:[#allocation2 + $0xbc] sm:$0x1]
        %v2288 = vld [vmem:[#allocation2] sm:$0xe]
        %v2289 = vld [vmem:[#allocation2 + $0xc] sm:$0xe]
        %v2290 = vld [vmem:[#allocation2 + $0x18] sm:$0xe]
        %v2291 = vld [vmem:[#allocation2 + $0x24] sm:$0xe]
        %v2292 = vld [vmem:[#allocation2 + $0x30] sm:$0xe]
        %v2293 = vld [vmem:[#allocation2 + $0x3c] sm:$0xe]
        %v2294 = vld [vmem:[#allocation2 + $0x48] sm:$0xe]
        %v2295 = vld [vmem:[#allocation2 + $0x54] sm:$0xe]
        %v2296 = vld [vmem:[#allocation2 + $0x60] sm:$0xe]
        %v2297 = vld [vmem:[#allocation2 + $0x6c] sm:$0xe]
        %v2298 = vld [vmem:[#allocation2 + $0x78] sm:$0xe]
        %v2299 = vld [vmem:[#allocation2 + $0x84] sm:$0xe]
        %v2300 = vld [vmem:[#allocation2 + $0x90] sm:$0xe]
        %v2301 = vld [vmem:[#allocation2 + $0x9c] sm:$0xe]
        %v2302 = vld [vmem:[#allocation2 + $0xa8] sm:$0xe]
        %v2303 = vld [vmem:[#allocation2 + $0xb4] sm:$0xe]
        %v2304 = vld [vmem:[%s2122] sm:$0xf]
        %v2305 = vld [vmem:[%s2122 + $0x4] sm:$0xf]
        %v2306 = vld [vmem:[%s2122 + $0xc] sm:$0xf]
        %v2307 = vld [vmem:[%s2122 + $0x10] sm:$0xf]
        %v2308 = vld [vmem:[%s2122 + $0x18] sm:$0xf]
        %v2309 = vld [vmem:[%s2122 + $0x1c] sm:$0xf]
        %v2310 = vld [vmem:[%s2122 + $0x24] sm:$0xf]
        %v2311 = vld [vmem:[%s2122 + $0x28] sm:$0xf]
        %v2312 = vld [vmem:[%s2122 + $0x30] sm:$0xf]
        %v2313 = vld [vmem:[%s2122 + $0x34] sm:$0xf]
        %v2314 = vld [vmem:[%s2122 + $0x3c] sm:$0xf]
        %v2315 = vld [vmem:[%s2122 + $0x40] sm:$0xf]
        %v2316 = vld [vmem:[%s2122 + $0x48] sm:$0xf]
        %v2317 = vld [vmem:[%s2122 + $0x4c] sm:$0xf]
        %v2318 = vld [vmem:[%s2122 + $0x54] sm:$0xf]
        %v2319 = vld [vmem:[%s2122 + $0x58] sm:$0xf]
        %v2320 = vld [vmem:[%s2122 + $0x60] sm:$0xf]
        %v2321 = vld [vmem:[%s2122 + $0x64] sm:$0xf]
        %v2322 = vld [vmem:[%s2122 + $0x6c] sm:$0xf]
        %v2323 = vld [vmem:[%s2122 + $0x70] sm:$0xf]
        %v2324 = vld [vmem:[%s2122 + $0x78] sm:$0xf]
        %v2325 = vld [vmem:[%s2122 + $0x7c] sm:$0xf]
        %v2326 = vld [vmem:[%s2122 + $0x84] sm:$0xf]
        %v2327 = vld [vmem:[%s2122 + $0x88] sm:$0xf]
        %v2328 = vld [vmem:[%s2122 + $0x90] sm:$0xf]
        %v2329 = vld [vmem:[%s2122 + $0x94] sm:$0xf]
        %v2330 = vld [vmem:[%s2122 + $0x9c] sm:$0xf]
        %v2331 = vld [vmem:[%s2122 + $0xa0] sm:$0xf]
        %v2332 = vld [vmem:[%s2122 + $0xa8] sm:$0xf]
        %v2333 = vld [vmem:[%s2122 + $0xac] sm:$0xf]
        %v2334 = vld [vmem:[%s2122 + $0xb4] sm:$0xf]
        %v2335 = vld [vmem:[%s2122 + $0xb8] sm:$0xf]
        %v2336 = vld [vmem:[%s2122 + $0x8] sm:$0x1]
        %v2337 = vld [vmem:[%s2122 + $0x14] sm:$0x1]
        %v2338 = vld [vmem:[%s2122 + $0x20] sm:$0x1]
        %v2339 = vld [vmem:[%s2122 + $0x2c] sm:$0x1]
        %v2340 = vld [vmem:[%s2122 + $0x38] sm:$0x1]
        %v2341 = vld [vmem:[%s2122 + $0x44] sm:$0x1]
        %v2342 = vld [vmem:[%s2122 + $0x50] sm:$0x1]
        %v2343 = vld [vmem:[%s2122 + $0x5c] sm:$0x1]
        %v2344 = vld [vmem:[%s2122 + $0x68] sm:$0x1]
        %v2345 = vld [vmem:[%s2122 + $0x74] sm:$0x1]
        %v2346 = vld [vmem:[%s2122 + $0x80] sm:$0x1]
        %v2347 = vld [vmem:[%s2122 + $0x8c] sm:$0x1]
        %v2348 = vld [vmem:[%s2122 + $0x98] sm:$0x1]
        %v2349 = vld [vmem:[%s2122 + $0xa4] sm:$0x1]
        %v2350 = vld [vmem:[%s2122 + $0xb0] sm:$0x1]
        %v2351 = vld [vmem:[%s2122 + $0xbc] sm:$0x1]
        %v2352 = vld [vmem:[%s2122] sm:$0xe]
        %v2353 = vld [vmem:[%s2122 + $0xc] sm:$0xe]
        %v2354 = vld [vmem:[%s2122 + $0x18] sm:$0xe]
        %v2355 = vld [vmem:[%s2122 + $0x24] sm:$0xe]
        %v2356 = vld [vmem:[%s2122 + $0x30] sm:$0xe]
        %v2357 = vld [vmem:[%s2122 + $0x3c] sm:$0xe]
        %v2358 = vld [vmem:[%s2122 + $0x48] sm:$0xe]
        %v2359 = vld [vmem:[%s2122 + $0x54] sm:$0xe]
        %v2360 = vld [vmem:[%s2122 + $0x60] sm:$0xe]
        %v2361 = vld [vmem:[%s2122 + $0x6c] sm:$0xe]
        %v2362 = vld [vmem:[%s2122 + $0x78] sm:$0xe]
        %v2363 = vld [vmem:[%s2122 + $0x84] sm:$0xe]
        %v2364 = vld [vmem:[%s2122 + $0x90] sm:$0xe]
        %v2365 = vld [vmem:[%s2122 + $0x9c] sm:$0xe]
        %v2366 = vld [vmem:[%s2122 + $0xa8] sm:$0xe]
        %v2367 = vld [vmem:[%s2122 + $0xb4] sm:$0xe]
        %s2368 = scalar_lea.vmem [#allocation2], 24
        %v2369 = vld [vmem:[%s2368] sm:$0xf]
        %v2370 = vld [vmem:[%s2368 + $0x4] sm:$0xf]
        %v2371 = vld [vmem:[%s2368 + $0xc] sm:$0xf]
        %v2372 = vld [vmem:[%s2368 + $0x10] sm:$0xf]
        %v2373 = vld [vmem:[%s2368 + $0x18] sm:$0xf]
        %v2374 = vld [vmem:[%s2368 + $0x1c] sm:$0xf]
        %v2375 = vld [vmem:[%s2368 + $0x24] sm:$0xf]
        %v2376 = vld [vmem:[%s2368 + $0x28] sm:$0xf]
        %v2377 = vld [vmem:[%s2368 + $0x30] sm:$0xf]
        %v2378 = vld [vmem:[%s2368 + $0x34] sm:$0xf]
        %v2379 = vld [vmem:[%s2368 + $0x3c] sm:$0xf]
        %v2380 = vld [vmem:[%s2368 + $0x40] sm:$0xf]
        %v2381 = vld [vmem:[%s2368 + $0x48] sm:$0xf]
        %v2382 = vld [vmem:[%s2368 + $0x4c] sm:$0xf]
        %v2383 = vld [vmem:[%s2368 + $0x54] sm:$0xf]
        %v2384 = vld [vmem:[%s2368 + $0x58] sm:$0xf]
        %v2385 = vld [vmem:[%s2368 + $0x60] sm:$0xf]
        %v2386 = vld [vmem:[%s2368 + $0x64] sm:$0xf]
        %v2387 = vld [vmem:[%s2368 + $0x6c] sm:$0xf]
        %v2388 = vld [vmem:[%s2368 + $0x70] sm:$0xf]
        %v2389 = vld [vmem:[%s2368 + $0x78] sm:$0xf]
        %v2390 = vld [vmem:[%s2368 + $0x7c] sm:$0xf]
        %v2391 = vld [vmem:[%s2368 + $0x84] sm:$0xf]
        %v2392 = vld [vmem:[%s2368 + $0x88] sm:$0xf]
        %v2393 = vld [vmem:[%s2368 + $0x90] sm:$0xf]
        %v2394 = vld [vmem:[%s2368 + $0x94] sm:$0xf]
        %v2395 = vld [vmem:[%s2368 + $0x9c] sm:$0xf]
        %v2396 = vld [vmem:[%s2368 + $0xa0] sm:$0xf]
        %v2397 = vld [vmem:[%s2368 + $0xa8] sm:$0xf]
        %v2398 = vld [vmem:[%s2368 + $0xac] sm:$0xf]
        %v2399 = vld [vmem:[%s2368 + $0xb4] sm:$0xf]
        %v2400 = vld [vmem:[%s2368 + $0xb8] sm:$0xf]
        %v2401 = vld [vmem:[%s2368 + $0x8] sm:$0x1]
        %v2402 = vld [vmem:[%s2368 + $0x14] sm:$0x1]
        %v2403 = vld [vmem:[%s2368 + $0x20] sm:$0x1]
        %v2404 = vld [vmem:[%s2368 + $0x2c] sm:$0x1]
        %v2405 = vld [vmem:[%s2368 + $0x38] sm:$0x1]
        %v2406 = vld [vmem:[%s2368 + $0x44] sm:$0x1]
        %v2407 = vld [vmem:[%s2368 + $0x50] sm:$0x1]
        %v2408 = vld [vmem:[%s2368 + $0x5c] sm:$0x1]
        %v2409 = vld [vmem:[%s2368 + $0x68] sm:$0x1]
        %v2410 = vld [vmem:[%s2368 + $0x74] sm:$0x1]
        %v2411 = vld [vmem:[%s2368 + $0x80] sm:$0x1]
        %v2412 = vld [vmem:[%s2368 + $0x8c] sm:$0x1]
        %v2413 = vld [vmem:[%s2368 + $0x98] sm:$0x1]
        %v2414 = vld [vmem:[%s2368 + $0xa4] sm:$0x1]
        %v2415 = vld [vmem:[%s2368 + $0xb0] sm:$0x1]
        %v2416 = vld [vmem:[%s2368 + $0xbc] sm:$0x1]
        %v2417 = vld [vmem:[%s2368] sm:$0xe]
        %v2418 = vld [vmem:[%s2368 + $0xc] sm:$0xe]
        %v2419 = vld [vmem:[%s2368 + $0x18] sm:$0xe]
        %v2420 = vld [vmem:[%s2368 + $0x24] sm:$0xe]
        %v2421 = vld [vmem:[%s2368 + $0x30] sm:$0xe]
        %v2422 = vld [vmem:[%s2368 + $0x3c] sm:$0xe]
        %v2423 = vld [vmem:[%s2368 + $0x48] sm:$0xe]
        %v2424 = vld [vmem:[%s2368 + $0x54] sm:$0xe]
        %v2425 = vld [vmem:[%s2368 + $0x60] sm:$0xe]
        %v2426 = vld [vmem:[%s2368 + $0x6c] sm:$0xe]
        %v2427 = vld [vmem:[%s2368 + $0x78] sm:$0xe]
        %v2428 = vld [vmem:[%s2368 + $0x84] sm:$0xe]
        %v2429 = vld [vmem:[%s2368 + $0x90] sm:$0xe]
        %v2430 = vld [vmem:[%s2368 + $0x9c] sm:$0xe]
        %v2431 = vld [vmem:[%s2368 + $0xa8] sm:$0xe]
        %v2432 = vld [vmem:[%s2368 + $0xb4] sm:$0xe]
        %v2465 = vunpack.c.l.b16 %v2240
        %v2466 = vunpack.c.l.b16 %v2241
        %v2467 = vunpack.c.l.b16 %v2242
        %v2468 = vunpack.c.l.b16 %v2243
        %v2469 = vunpack.c.l.b16 %v2244
        %v2470 = vunpack.c.l.b16 %v2245
        %v2471 = vunpack.c.l.b16 %v2246
        %v2472 = vunpack.c.l.b16 %v2247
        %v2473 = vunpack.c.l.b16 %v2248
        %v2474 = vunpack.c.l.b16 %v2249
        %v2475 = vunpack.c.l.b16 %v2250
        %v2476 = vunpack.c.l.b16 %v2251
        %v2477 = vunpack.c.l.b16 %v2252
        %v2478 = vunpack.c.l.b16 %v2253
        %v2479 = vunpack.c.l.b16 %v2254
        %v2480 = vunpack.c.l.b16 %v2255
        %v2481 = vunpack.c.l.b16 %v2256
        %v2482 = vunpack.c.l.b16 %v2257
        %v2483 = vunpack.c.l.b16 %v2258
        %v2484 = vunpack.c.l.b16 %v2259
        %v2485 = vunpack.c.l.b16 %v2260
        %v2486 = vunpack.c.l.b16 %v2261
        %v2487 = vunpack.c.l.b16 %v2262
        %v2488 = vunpack.c.l.b16 %v2263
        %v2489 = vunpack.c.l.b16 %v2264
        %v2490 = vunpack.c.l.b16 %v2265
        %v2491 = vunpack.c.l.b16 %v2266
        %v2492 = vunpack.c.l.b16 %v2267
        %v2493 = vunpack.c.l.b16 %v2268
        %v2494 = vunpack.c.l.b16 %v2269
        %v2495 = vunpack.c.l.b16 %v2270
        %v2496 = vunpack.c.l.b16 %v2271
        %v2497 = vpack.c.b16 %v2466, %v2465
        %v2498 = vpack.c.b16 %v2468, %v2467
        %v2499 = vpack.c.b16 %v2470, %v2469
        %v2500 = vpack.c.b16 %v2472, %v2471
        %v2501 = vpack.c.b16 %v2474, %v2473
        %v2502 = vpack.c.b16 %v2476, %v2475
        %v2503 = vpack.c.b16 %v2478, %v2477
        %v2504 = vpack.c.b16 %v2480, %v2479
        %v2505 = vpack.c.b16 %v2482, %v2481
        %v2506 = vpack.c.b16 %v2484, %v2483
        %v2507 = vpack.c.b16 %v2486, %v2485
        %v2508 = vpack.c.b16 %v2488, %v2487
        %v2509 = vpack.c.b16 %v2490, %v2489
        %v2510 = vpack.c.b16 %v2492, %v2491
        %v2511 = vpack.c.b16 %v2494, %v2493
        %v2512 = vpack.c.b16 %v2496, %v2495
        %v2529 = vunpack.c.l.b16 %v2272
        %v2530 = vunpack.c.l.b16 %v2273
        %v2531 = vunpack.c.l.b16 %v2274
        %v2532 = vunpack.c.l.b16 %v2275
        %v2533 = vunpack.c.l.b16 %v2276
        %v2534 = vunpack.c.l.b16 %v2277
        %v2535 = vunpack.c.l.b16 %v2278
        %v2536 = vunpack.c.l.b16 %v2279
        %v2537 = vunpack.c.l.b16 %v2280
        %v2538 = vunpack.c.l.b16 %v2281
        %v2539 = vunpack.c.l.b16 %v2282
        %v2540 = vunpack.c.l.b16 %v2283
        %v2541 = vunpack.c.l.b16 %v2284
        %v2542 = vunpack.c.l.b16 %v2285
        %v2543 = vunpack.c.l.b16 %v2286
        %v2544 = vunpack.c.l.b16 %v2287
        %v2545 = vpack.c.b16 %v2529, %v2529
        %v2546 = vpack.c.b16 %v2530, %v2530
        %v2547 = vpack.c.b16 %v2531, %v2531
        %v2548 = vpack.c.b16 %v2532, %v2532
        %v2549 = vpack.c.b16 %v2533, %v2533
        %v2550 = vpack.c.b16 %v2534, %v2534
        %v2551 = vpack.c.b16 %v2535, %v2535
        %v2552 = vpack.c.b16 %v2536, %v2536
        %v2553 = vpack.c.b16 %v2537, %v2537
        %v2554 = vpack.c.b16 %v2538, %v2538
        %v2555 = vpack.c.b16 %v2539, %v2539
        %v2556 = vpack.c.b16 %v2540, %v2540
        %v2557 = vpack.c.b16 %v2541, %v2541
        %v2558 = vpack.c.b16 %v2542, %v2542
        %v2559 = vpack.c.b16 %v2543, %v2543
        %v2560 = vpack.c.b16 %v2544, %v2544
        %v2562 = vshrl.u32 %v2497, 16
        %v2564 = vshll.u32 %v2497, 16
        %v2566 = vrot.slane %v2564, 1
        %v2567 = vor.u32 %v2562, %v2566
        %v2569 = vshll.u32 %v2545, 16
        %v2571 = vrot.slane %v2569, 1
        %v2572 = vsel %vm406, %v2567, %v2571
        %v2574 = vshrl.u32 %v2498, 16
        %v2576 = vshll.u32 %v2498, 16
        %v2578 = vrot.slane %v2576, 1
        %v2579 = vor.u32 %v2574, %v2578
        %v2581 = vshll.u32 %v2546, 16
        %v2583 = vrot.slane %v2581, 1
        %v2584 = vsel %vm406, %v2579, %v2583
        %v2586 = vshrl.u32 %v2499, 16
        %v2588 = vshll.u32 %v2499, 16
        %v2590 = vrot.slane %v2588, 1
        %v2591 = vor.u32 %v2586, %v2590
        %v2593 = vshll.u32 %v2547, 16
        %v2595 = vrot.slane %v2593, 1
        %v2596 = vsel %vm406, %v2591, %v2595
        %v2598 = vshrl.u32 %v2500, 16
        %v2600 = vshll.u32 %v2500, 16
        %v2602 = vrot.slane %v2600, 1
        %v2603 = vor.u32 %v2598, %v2602
        %v2605 = vshll.u32 %v2548, 16
        %v2607 = vrot.slane %v2605, 1
        %v2608 = vsel %vm406, %v2603, %v2607
        %v2610 = vshrl.u32 %v2501, 16
        %v2612 = vshll.u32 %v2501, 16
        %v2614 = vrot.slane %v2612, 1
        %v2615 = vor.u32 %v2610, %v2614
        %v2617 = vshll.u32 %v2549, 16
        %v2619 = vrot.slane %v2617, 1
        %v2620 = vsel %vm406, %v2615, %v2619
        %v2622 = vshrl.u32 %v2502, 16
        %v2624 = vshll.u32 %v2502, 16
        %v2626 = vrot.slane %v2624, 1
        %v2627 = vor.u32 %v2622, %v2626
        %v2629 = vshll.u32 %v2550, 16
        %v2631 = vrot.slane %v2629, 1
        %v2632 = vsel %vm406, %v2627, %v2631
        %v2634 = vshrl.u32 %v2503, 16
        %v2636 = vshll.u32 %v2503, 16
        %v2638 = vrot.slane %v2636, 1
        %v2639 = vor.u32 %v2634, %v2638
        %v2641 = vshll.u32 %v2551, 16
        %v2643 = vrot.slane %v2641, 1
        %v2644 = vsel %vm406, %v2639, %v2643
        %v2646 = vshrl.u32 %v2504, 16
        %v2648 = vshll.u32 %v2504, 16
        %v2650 = vrot.slane %v2648, 1
        %v2651 = vor.u32 %v2646, %v2650
        %v2653 = vshll.u32 %v2552, 16
        %v2655 = vrot.slane %v2653, 1
        %v2656 = vsel %vm406, %v2651, %v2655
        %v2658 = vshrl.u32 %v2505, 16
        %v2660 = vshll.u32 %v2505, 16
        %v2662 = vrot.slane %v2660, 1
        %v2663 = vor.u32 %v2658, %v2662
        %v2665 = vshll.u32 %v2553, 16
        %v2667 = vrot.slane %v2665, 1
        %v2668 = vsel %vm406, %v2663, %v2667
        %v2670 = vshrl.u32 %v2506, 16
        %v2672 = vshll.u32 %v2506, 16
        %v2674 = vrot.slane %v2672, 1
        %v2675 = vor.u32 %v2670, %v2674
        %v2677 = vshll.u32 %v2554, 16
        %v2679 = vrot.slane %v2677, 1
        %v2680 = vsel %vm406, %v2675, %v2679
        %v2682 = vshrl.u32 %v2507, 16
        %v2684 = vshll.u32 %v2507, 16
        %v2686 = vrot.slane %v2684, 1
        %v2687 = vor.u32 %v2682, %v2686
        %v2689 = vshll.u32 %v2555, 16
        %v2691 = vrot.slane %v2689, 1
        %v2692 = vsel %vm406, %v2687, %v2691
        %v2694 = vshrl.u32 %v2508, 16
        %v2696 = vshll.u32 %v2508, 16
        %v2698 = vrot.slane %v2696, 1
        %v2699 = vor.u32 %v2694, %v2698
        %v2701 = vshll.u32 %v2556, 16
        %v2703 = vrot.slane %v2701, 1
        %v2704 = vsel %vm406, %v2699, %v2703
        %v2706 = vshrl.u32 %v2509, 16
        %v2708 = vshll.u32 %v2509, 16
        %v2710 = vrot.slane %v2708, 1
        %v2711 = vor.u32 %v2706, %v2710
        %v2713 = vshll.u32 %v2557, 16
        %v2715 = vrot.slane %v2713, 1
        %v2716 = vsel %vm406, %v2711, %v2715
        %v2718 = vshrl.u32 %v2510, 16
        %v2720 = vshll.u32 %v2510, 16
        %v2722 = vrot.slane %v2720, 1
        %v2723 = vor.u32 %v2718, %v2722
        %v2725 = vshll.u32 %v2558, 16
        %v2727 = vrot.slane %v2725, 1
        %v2728 = vsel %vm406, %v2723, %v2727
        %v2730 = vshrl.u32 %v2511, 16
        %v2732 = vshll.u32 %v2511, 16
        %v2734 = vrot.slane %v2732, 1
        %v2735 = vor.u32 %v2730, %v2734
        %v2737 = vshll.u32 %v2559, 16
        %v2739 = vrot.slane %v2737, 1
        %v2740 = vsel %vm406, %v2735, %v2739
        %v2742 = vshrl.u32 %v2512, 16
        %v2744 = vshll.u32 %v2512, 16
        %v2746 = vrot.slane %v2744, 1
        %v2747 = vor.u32 %v2742, %v2746
        %v2749 = vshll.u32 %v2560, 16
        %v2751 = vrot.slane %v2749, 1
        %v2752 = vsel %vm406, %v2747, %v2751
        %2753 = vrot.lane.b32.xlu0 %v2572, 8
        %v2754 = vpop.permute.xlu0 %2753
        %2755 = vrot.lane.b32.xlu0 %v2584, 8
        %v2756 = vpop.permute.xlu0 %2755
        %2757 = vrot.lane.b32.xlu0 %v2596, 8
        %v2758 = vpop.permute.xlu0 %2757
        %2759 = vrot.lane.b32.xlu0 %v2608, 8
        %v2760 = vpop.permute.xlu0 %2759
        %2761 = vrot.lane.b32.xlu0 %v2620, 8
        %v2762 = vpop.permute.xlu0 %2761
        %2763 = vrot.lane.b32.xlu0 %v2632, 8
        %v2764 = vpop.permute.xlu0 %2763
        %2765 = vrot.lane.b32.xlu0 %v2644, 8
        %v2766 = vpop.permute.xlu0 %2765
        %2767 = vrot.lane.b32.xlu0 %v2656, 8
        %v2768 = vpop.permute.xlu0 %2767
        %2769 = vrot.lane.b32.xlu0 %v2668, 8
        %v2770 = vpop.permute.xlu0 %2769
        %2771 = vrot.lane.b32.xlu0 %v2680, 8
        %v2772 = vpop.permute.xlu0 %2771
        %2773 = vrot.lane.b32.xlu0 %v2692, 8
        %v2774 = vpop.permute.xlu0 %2773
        %2775 = vrot.lane.b32.xlu0 %v2704, 8
        %v2776 = vpop.permute.xlu0 %2775
        %2777 = vrot.lane.b32.xlu0 %v2716, 8
        %v2778 = vpop.permute.xlu0 %2777
        %2779 = vrot.lane.b32.xlu0 %v2728, 8
        %v2780 = vpop.permute.xlu0 %2779
        %2781 = vrot.lane.b32.xlu0 %v2740, 8
        %v2782 = vpop.permute.xlu0 %2781
        %2783 = vrot.lane.b32.xlu0 %v2752, 8
        %v2784 = vpop.permute.xlu0 %2783
        %v2801 = vunpack.c.l.b16 %v2288
        %v2802 = vunpack.c.l.b16 %v2289
        %v2803 = vunpack.c.l.b16 %v2290
        %v2804 = vunpack.c.l.b16 %v2291
        %v2805 = vunpack.c.l.b16 %v2292
        %v2806 = vunpack.c.l.b16 %v2293
        %v2807 = vunpack.c.l.b16 %v2294
        %v2808 = vunpack.c.l.b16 %v2295
        %v2809 = vunpack.c.l.b16 %v2296
        %v2810 = vunpack.c.l.b16 %v2297
        %v2811 = vunpack.c.l.b16 %v2298
        %v2812 = vunpack.c.l.b16 %v2299
        %v2813 = vunpack.c.l.b16 %v2300
        %v2814 = vunpack.c.l.b16 %v2301
        %v2815 = vunpack.c.l.b16 %v2302
        %v2816 = vunpack.c.l.b16 %v2303
        %v2817 = vpack.c.b16 %v2466, %v2801
        %v2818 = vpack.c.b16 %v2468, %v2802
        %v2819 = vpack.c.b16 %v2470, %v2803
        %v2820 = vpack.c.b16 %v2472, %v2804
        %v2821 = vpack.c.b16 %v2474, %v2805
        %v2822 = vpack.c.b16 %v2476, %v2806
        %v2823 = vpack.c.b16 %v2478, %v2807
        %v2824 = vpack.c.b16 %v2480, %v2808
        %v2825 = vpack.c.b16 %v2482, %v2809
        %v2826 = vpack.c.b16 %v2484, %v2810
        %v2827 = vpack.c.b16 %v2486, %v2811
        %v2828 = vpack.c.b16 %v2488, %v2812
        %v2829 = vpack.c.b16 %v2490, %v2813
        %v2830 = vpack.c.b16 %v2492, %v2814
        %v2831 = vpack.c.b16 %v2494, %v2815
        %v2832 = vpack.c.b16 %v2496, %v2816
        %v2833 = vrot.slane %v2817, 1
        %v2834 = vrot.slane %v2545, 1
        %v2835 = vsel %vm631, %v2833, %v2834
        %v2836 = vrot.slane %v2818, 1
        %v2837 = vrot.slane %v2546, 1
        %v2838 = vsel %vm631, %v2836, %v2837
        %v2839 = vrot.slane %v2819, 1
        %v2840 = vrot.slane %v2547, 1
        %v2841 = vsel %vm631, %v2839, %v2840
        %v2842 = vrot.slane %v2820, 1
        %v2843 = vrot.slane %v2548, 1
        %v2844 = vsel %vm631, %v2842, %v2843
        %v2845 = vrot.slane %v2821, 1
        %v2846 = vrot.slane %v2549, 1
        %v2847 = vsel %vm631, %v2845, %v2846
        %v2848 = vrot.slane %v2822, 1
        %v2849 = vrot.slane %v2550, 1
        %v2850 = vsel %vm631, %v2848, %v2849
        %v2851 = vrot.slane %v2823, 1
        %v2852 = vrot.slane %v2551, 1
        %v2853 = vsel %vm631, %v2851, %v2852
        %v2854 = vrot.slane %v2824, 1
        %v2855 = vrot.slane %v2552, 1
        %v2856 = vsel %vm631, %v2854, %v2855
        %v2857 = vrot.slane %v2825, 1
        %v2858 = vrot.slane %v2553, 1
        %v2859 = vsel %vm631, %v2857, %v2858
        %v2860 = vrot.slane %v2826, 1
        %v2861 = vrot.slane %v2554, 1
        %v2862 = vsel %vm631, %v2860, %v2861
        %v2863 = vrot.slane %v2827, 1
        %v2864 = vrot.slane %v2555, 1
        %v2865 = vsel %vm631, %v2863, %v2864
        %v2866 = vrot.slane %v2828, 1
        %v2867 = vrot.slane %v2556, 1
        %v2868 = vsel %vm631, %v2866, %v2867
        %v2869 = vrot.slane %v2829, 1
        %v2870 = vrot.slane %v2557, 1
        %v2871 = vsel %vm631, %v2869, %v2870
        %v2872 = vrot.slane %v2830, 1
        %v2873 = vrot.slane %v2558, 1
        %v2874 = vsel %vm631, %v2872, %v2873
        %v2875 = vrot.slane %v2831, 1
        %v2876 = vrot.slane %v2559, 1
        %v2877 = vsel %vm631, %v2875, %v2876
        %v2878 = vrot.slane %v2832, 1
        %v2879 = vrot.slane %v2560, 1
        %v2880 = vsel %vm631, %v2878, %v2879
        %2881 = vrot.lane.b32.xlu0 %v2835, 16
        %v2882 = vpop.permute.xlu0 %2881
        %2883 = vrot.lane.b32.xlu0 %v2838, 16
        %v2884 = vpop.permute.xlu0 %2883
        %2885 = vrot.lane.b32.xlu0 %v2841, 16
        %v2886 = vpop.permute.xlu0 %2885
        %2887 = vrot.lane.b32.xlu0 %v2844, 16
        %v2888 = vpop.permute.xlu0 %2887
        %2889 = vrot.lane.b32.xlu0 %v2847, 16
        %v2890 = vpop.permute.xlu0 %2889
        %2891 = vrot.lane.b32.xlu0 %v2850, 16
        %v2892 = vpop.permute.xlu0 %2891
        %2893 = vrot.lane.b32.xlu0 %v2853, 16
        %v2894 = vpop.permute.xlu0 %2893
        %2895 = vrot.lane.b32.xlu0 %v2856, 16
        %v2896 = vpop.permute.xlu0 %2895
        %2897 = vrot.lane.b32.xlu0 %v2859, 16
        %v2898 = vpop.permute.xlu0 %2897
        %2899 = vrot.lane.b32.xlu0 %v2862, 16
        %v2900 = vpop.permute.xlu0 %2899
        %2901 = vrot.lane.b32.xlu0 %v2865, 16
        %v2902 = vpop.permute.xlu0 %2901
        %2903 = vrot.lane.b32.xlu0 %v2868, 16
        %v2904 = vpop.permute.xlu0 %2903
        %2905 = vrot.lane.b32.xlu0 %v2871, 16
        %v2906 = vpop.permute.xlu0 %2905
        %2907 = vrot.lane.b32.xlu0 %v2874, 16
        %v2908 = vpop.permute.xlu0 %2907
        %2909 = vrot.lane.b32.xlu0 %v2877, 16
        %v2910 = vpop.permute.xlu0 %2909
        %2911 = vrot.lane.b32.xlu0 %v2880, 16
        %v2912 = vpop.permute.xlu0 %2911
        %v2945 = vunpack.c.l.b16 %v2304
        %v2946 = vunpack.c.l.b16 %v2305
        %v2947 = vunpack.c.l.b16 %v2306
        %v2948 = vunpack.c.l.b16 %v2307
        %v2949 = vunpack.c.l.b16 %v2308
        %v2950 = vunpack.c.l.b16 %v2309
        %v2951 = vunpack.c.l.b16 %v2310
        %v2952 = vunpack.c.l.b16 %v2311
        %v2953 = vunpack.c.l.b16 %v2312
        %v2954 = vunpack.c.l.b16 %v2313
        %v2955 = vunpack.c.l.b16 %v2314
        %v2956 = vunpack.c.l.b16 %v2315
        %v2957 = vunpack.c.l.b16 %v2316
        %v2958 = vunpack.c.l.b16 %v2317
        %v2959 = vunpack.c.l.b16 %v2318
        %v2960 = vunpack.c.l.b16 %v2319
        %v2961 = vunpack.c.l.b16 %v2320
        %v2962 = vunpack.c.l.b16 %v2321
        %v2963 = vunpack.c.l.b16 %v2322
        %v2964 = vunpack.c.l.b16 %v2323
        %v2965 = vunpack.c.l.b16 %v2324
        %v2966 = vunpack.c.l.b16 %v2325
        %v2967 = vunpack.c.l.b16 %v2326
        %v2968 = vunpack.c.l.b16 %v2327
        %v2969 = vunpack.c.l.b16 %v2328
        %v2970 = vunpack.c.l.b16 %v2329
        %v2971 = vunpack.c.l.b16 %v2330
        %v2972 = vunpack.c.l.b16 %v2331
        %v2973 = vunpack.c.l.b16 %v2332
        %v2974 = vunpack.c.l.b16 %v2333
        %v2975 = vunpack.c.l.b16 %v2334
        %v2976 = vunpack.c.l.b16 %v2335
        %v2977 = vpack.c.b16 %v2946, %v2945
        %v2978 = vpack.c.b16 %v2948, %v2947
        %v2979 = vpack.c.b16 %v2950, %v2949
        %v2980 = vpack.c.b16 %v2952, %v2951
        %v2981 = vpack.c.b16 %v2954, %v2953
        %v2982 = vpack.c.b16 %v2956, %v2955
        %v2983 = vpack.c.b16 %v2958, %v2957
        %v2984 = vpack.c.b16 %v2960, %v2959
        %v2985 = vpack.c.b16 %v2962, %v2961
        %v2986 = vpack.c.b16 %v2964, %v2963
        %v2987 = vpack.c.b16 %v2966, %v2965
        %v2988 = vpack.c.b16 %v2968, %v2967
        %v2989 = vpack.c.b16 %v2970, %v2969
        %v2990 = vpack.c.b16 %v2972, %v2971
        %v2991 = vpack.c.b16 %v2974, %v2973
        %v2992 = vpack.c.b16 %v2976, %v2975
        %2993 = vrot.lane.b32.xlu0 %v2977, 24
        %v2994 = vpop.permute.xlu0 %2993
        %2995 = vrot.lane.b32.xlu0 %v2978, 24
        %v2996 = vpop.permute.xlu0 %2995
        %2997 = vrot.lane.b32.xlu0 %v2979, 24
        %v2998 = vpop.permute.xlu0 %2997
        %2999 = vrot.lane.b32.xlu0 %v2980, 24
        %v3000 = vpop.permute.xlu0 %2999
        %3001 = vrot.lane.b32.xlu0 %v2981, 24
        %v3002 = vpop.permute.xlu0 %3001
        %3003 = vrot.lane.b32.xlu0 %v2982, 24
        %v3004 = vpop.permute.xlu0 %3003
        %3005 = vrot.lane.b32.xlu0 %v2983, 24
        %v3006 = vpop.permute.xlu0 %3005
        %3007 = vrot.lane.b32.xlu0 %v2984, 24
        %v3008 = vpop.permute.xlu0 %3007
        %3009 = vrot.lane.b32.xlu0 %v2985, 24
        %v3010 = vpop.permute.xlu0 %3009
        %3011 = vrot.lane.b32.xlu0 %v2986, 24
        %v3012 = vpop.permute.xlu0 %3011
        %3013 = vrot.lane.b32.xlu0 %v2987, 24
        %v3014 = vpop.permute.xlu0 %3013
        %3015 = vrot.lane.b32.xlu0 %v2988, 24
        %v3016 = vpop.permute.xlu0 %3015
        %3017 = vrot.lane.b32.xlu0 %v2989, 24
        %v3018 = vpop.permute.xlu0 %3017
        %3019 = vrot.lane.b32.xlu0 %v2990, 24
        %v3020 = vpop.permute.xlu0 %3019
        %3021 = vrot.lane.b32.xlu0 %v2991, 24
        %v3022 = vpop.permute.xlu0 %3021
        %3023 = vrot.lane.b32.xlu0 %v2992, 24
        %v3024 = vpop.permute.xlu0 %3023
        %v3041 = vunpack.c.l.b16 %v2336
        %v3042 = vunpack.c.l.b16 %v2337
        %v3043 = vunpack.c.l.b16 %v2338
        %v3044 = vunpack.c.l.b16 %v2339
        %v3045 = vunpack.c.l.b16 %v2340
        %v3046 = vunpack.c.l.b16 %v2341
        %v3047 = vunpack.c.l.b16 %v2342
        %v3048 = vunpack.c.l.b16 %v2343
        %v3049 = vunpack.c.l.b16 %v2344
        %v3050 = vunpack.c.l.b16 %v2345
        %v3051 = vunpack.c.l.b16 %v2346
        %v3052 = vunpack.c.l.b16 %v2347
        %v3053 = vunpack.c.l.b16 %v2348
        %v3054 = vunpack.c.l.b16 %v2349
        %v3055 = vunpack.c.l.b16 %v2350
        %v3056 = vunpack.c.l.b16 %v2351
        %v3057 = vpack.c.b16 %v3041, %v3041
        %v3058 = vpack.c.b16 %v3042, %v3042
        %v3059 = vpack.c.b16 %v3043, %v3043
        %v3060 = vpack.c.b16 %v3044, %v3044
        %v3061 = vpack.c.b16 %v3045, %v3045
        %v3062 = vpack.c.b16 %v3046, %v3046
        %v3063 = vpack.c.b16 %v3047, %v3047
        %v3064 = vpack.c.b16 %v3048, %v3048
        %v3065 = vpack.c.b16 %v3049, %v3049
        %v3066 = vpack.c.b16 %v3050, %v3050
        %v3067 = vpack.c.b16 %v3051, %v3051
        %v3068 = vpack.c.b16 %v3052, %v3052
        %v3069 = vpack.c.b16 %v3053, %v3053
        %v3070 = vpack.c.b16 %v3054, %v3054
        %v3071 = vpack.c.b16 %v3055, %v3055
        %v3072 = vpack.c.b16 %v3056, %v3056
        %v3074 = vshrl.u32 %v2977, 16
        %v3076 = vshll.u32 %v2977, 16
        %v3078 = vrot.slane %v3076, 1
        %v3079 = vor.u32 %v3074, %v3078
        %v3081 = vshll.u32 %v3057, 16
        %v3083 = vrot.slane %v3081, 1
        %v3084 = vsel %vm406, %v3079, %v3083
        %v3086 = vshrl.u32 %v2978, 16
        %v3088 = vshll.u32 %v2978, 16
        %v3090 = vrot.slane %v3088, 1
        %v3091 = vor.u32 %v3086, %v3090
        %v3093 = vshll.u32 %v3058, 16
        %v3095 = vrot.slane %v3093, 1
        %v3096 = vsel %vm406, %v3091, %v3095
        %v3098 = vshrl.u32 %v2979, 16
        %v3100 = vshll.u32 %v2979, 16
        %v3102 = vrot.slane %v3100, 1
        %v3103 = vor.u32 %v3098, %v3102
        %v3105 = vshll.u32 %v3059, 16
        %v3107 = vrot.slane %v3105, 1
        %v3108 = vsel %vm406, %v3103, %v3107
        %v3110 = vshrl.u32 %v2980, 16
        %v3112 = vshll.u32 %v2980, 16
        %v3114 = vrot.slane %v3112, 1
        %v3115 = vor.u32 %v3110, %v3114
        %v3117 = vshll.u32 %v3060, 16
        %v3119 = vrot.slane %v3117, 1
        %v3120 = vsel %vm406, %v3115, %v3119
        %v3122 = vshrl.u32 %v2981, 16
        %v3124 = vshll.u32 %v2981, 16
        %v3126 = vrot.slane %v3124, 1
        %v3127 = vor.u32 %v3122, %v3126
        %v3129 = vshll.u32 %v3061, 16
        %v3131 = vrot.slane %v3129, 1
        %v3132 = vsel %vm406, %v3127, %v3131
        %v3134 = vshrl.u32 %v2982, 16
        %v3136 = vshll.u32 %v2982, 16
        %v3138 = vrot.slane %v3136, 1
        %v3139 = vor.u32 %v3134, %v3138
        %v3141 = vshll.u32 %v3062, 16
        %v3143 = vrot.slane %v3141, 1
        %v3144 = vsel %vm406, %v3139, %v3143
        %v3146 = vshrl.u32 %v2983, 16
        %v3148 = vshll.u32 %v2983, 16
        %v3150 = vrot.slane %v3148, 1
        %v3151 = vor.u32 %v3146, %v3150
        %v3153 = vshll.u32 %v3063, 16
        %v3155 = vrot.slane %v3153, 1
        %v3156 = vsel %vm406, %v3151, %v3155
        %v3158 = vshrl.u32 %v2984, 16
        %v3160 = vshll.u32 %v2984, 16
        %v3162 = vrot.slane %v3160, 1
        %v3163 = vor.u32 %v3158, %v3162
        %v3165 = vshll.u32 %v3064, 16
        %v3167 = vrot.slane %v3165, 1
        %v3168 = vsel %vm406, %v3163, %v3167
        %v3170 = vshrl.u32 %v2985, 16
        %v3172 = vshll.u32 %v2985, 16
        %v3174 = vrot.slane %v3172, 1
        %v3175 = vor.u32 %v3170, %v3174
        %v3177 = vshll.u32 %v3065, 16
        %v3179 = vrot.slane %v3177, 1
        %v3180 = vsel %vm406, %v3175, %v3179
        %v3182 = vshrl.u32 %v2986, 16
        %v3184 = vshll.u32 %v2986, 16
        %v3186 = vrot.slane %v3184, 1
        %v3187 = vor.u32 %v3182, %v3186
        %v3189 = vshll.u32 %v3066, 16
        %v3191 = vrot.slane %v3189, 1
        %v3192 = vsel %vm406, %v3187, %v3191
        %v3194 = vshrl.u32 %v2987, 16
        %v3196 = vshll.u32 %v2987, 16
        %v3198 = vrot.slane %v3196, 1
        %v3199 = vor.u32 %v3194, %v3198
        %v3201 = vshll.u32 %v3067, 16
        %v3203 = vrot.slane %v3201, 1
        %v3204 = vsel %vm406, %v3199, %v3203
        %v3206 = vshrl.u32 %v2988, 16
        %v3208 = vshll.u32 %v2988, 16
        %v3210 = vrot.slane %v3208, 1
        %v3211 = vor.u32 %v3206, %v3210
        %v3213 = vshll.u32 %v3068, 16
        %v3215 = vrot.slane %v3213, 1
        %v3216 = vsel %vm406, %v3211, %v3215
        %v3218 = vshrl.u32 %v2989, 16
        %v3220 = vshll.u32 %v2989, 16
        %v3222 = vrot.slane %v3220, 1
        %v3223 = vor.u32 %v3218, %v3222
        %v3225 = vshll.u32 %v3069, 16
        %v3227 = vrot.slane %v3225, 1
        %v3228 = vsel %vm406, %v3223, %v3227
        %v3230 = vshrl.u32 %v2990, 16
        %v3232 = vshll.u32 %v2990, 16
        %v3234 = vrot.slane %v3232, 1
        %v3235 = vor.u32 %v3230, %v3234
        %v3237 = vshll.u32 %v3070, 16
        %v3239 = vrot.slane %v3237, 1
        %v3240 = vsel %vm406, %v3235, %v3239
        %v3242 = vshrl.u32 %v2991, 16
        %v3244 = vshll.u32 %v2991, 16
        %v3246 = vrot.slane %v3244, 1
        %v3247 = vor.u32 %v3242, %v3246
        %v3249 = vshll.u32 %v3071, 16
        %v3251 = vrot.slane %v3249, 1
        %v3252 = vsel %vm406, %v3247, %v3251
        %v3254 = vshrl.u32 %v2992, 16
        %v3256 = vshll.u32 %v2992, 16
        %v3258 = vrot.slane %v3256, 1
        %v3259 = vor.u32 %v3254, %v3258
        %v3261 = vshll.u32 %v3072, 16
        %v3263 = vrot.slane %v3261, 1
        %v3264 = vsel %vm406, %v3259, %v3263
        %3265 = vrot.lane.b32.xlu0 %v3084, 32
        %v3266 = vpop.permute.xlu0 %3265
        %3267 = vrot.lane.b32.xlu0 %v3096, 32
        %v3268 = vpop.permute.xlu0 %3267
        %3269 = vrot.lane.b32.xlu0 %v3108, 32
        %v3270 = vpop.permute.xlu0 %3269
        %3271 = vrot.lane.b32.xlu0 %v3120, 32
        %v3272 = vpop.permute.xlu0 %3271
        %3273 = vrot.lane.b32.xlu0 %v3132, 32
        %v3274 = vpop.permute.xlu0 %3273
        %3275 = vrot.lane.b32.xlu0 %v3144, 32
        %v3276 = vpop.permute.xlu0 %3275
        %3277 = vrot.lane.b32.xlu0 %v3156, 32
        %v3278 = vpop.permute.xlu0 %3277
        %3279 = vrot.lane.b32.xlu0 %v3168, 32
        %v3280 = vpop.permute.xlu0 %3279
        %3281 = vrot.lane.b32.xlu0 %v3180, 32
        %v3282 = vpop.permute.xlu0 %3281
        %3283 = vrot.lane.b32.xlu0 %v3192, 32
        %v3284 = vpop.permute.xlu0 %3283
        %3285 = vrot.lane.b32.xlu0 %v3204, 32
        %v3286 = vpop.permute.xlu0 %3285
        %3287 = vrot.lane.b32.xlu0 %v3216, 32
        %v3288 = vpop.permute.xlu0 %3287
        %3289 = vrot.lane.b32.xlu0 %v3228, 32
        %v3290 = vpop.permute.xlu0 %3289
        %3291 = vrot.lane.b32.xlu0 %v3240, 32
        %v3292 = vpop.permute.xlu0 %3291
        %3293 = vrot.lane.b32.xlu0 %v3252, 32
        %v3294 = vpop.permute.xlu0 %3293
        %3295 = vrot.lane.b32.xlu0 %v3264, 32
        %v3296 = vpop.permute.xlu0 %3295
        %v3313 = vunpack.c.l.b16 %v2352
        %v3314 = vunpack.c.l.b16 %v2353
        %v3315 = vunpack.c.l.b16 %v2354
        %v3316 = vunpack.c.l.b16 %v2355
        %v3317 = vunpack.c.l.b16 %v2356
        %v3318 = vunpack.c.l.b16 %v2357
        %v3319 = vunpack.c.l.b16 %v2358
        %v3320 = vunpack.c.l.b16 %v2359
        %v3321 = vunpack.c.l.b16 %v2360
        %v3322 = vunpack.c.l.b16 %v2361
        %v3323 = vunpack.c.l.b16 %v2362
        %v3324 = vunpack.c.l.b16 %v2363
        %v3325 = vunpack.c.l.b16 %v2364
        %v3326 = vunpack.c.l.b16 %v2365
        %v3327 = vunpack.c.l.b16 %v2366
        %v3328 = vunpack.c.l.b16 %v2367
        %v3329 = vpack.c.b16 %v2946, %v3313
        %v3330 = vpack.c.b16 %v2948, %v3314
        %v3331 = vpack.c.b16 %v2950, %v3315
        %v3332 = vpack.c.b16 %v2952, %v3316
        %v3333 = vpack.c.b16 %v2954, %v3317
        %v3334 = vpack.c.b16 %v2956, %v3318
        %v3335 = vpack.c.b16 %v2958, %v3319
        %v3336 = vpack.c.b16 %v2960, %v3320
        %v3337 = vpack.c.b16 %v2962, %v3321
        %v3338 = vpack.c.b16 %v2964, %v3322
        %v3339 = vpack.c.b16 %v2966, %v3323
        %v3340 = vpack.c.b16 %v2968, %v3324
        %v3341 = vpack.c.b16 %v2970, %v3325
        %v3342 = vpack.c.b16 %v2972, %v3326
        %v3343 = vpack.c.b16 %v2974, %v3327
        %v3344 = vpack.c.b16 %v2976, %v3328
        %v3345 = vrot.slane %v3329, 1
        %v3346 = vrot.slane %v3057, 1
        %v3347 = vsel %vm631, %v3345, %v3346
        %v3348 = vrot.slane %v3330, 1
        %v3349 = vrot.slane %v3058, 1
        %v3350 = vsel %vm631, %v3348, %v3349
        %v3351 = vrot.slane %v3331, 1
        %v3352 = vrot.slane %v3059, 1
        %v3353 = vsel %vm631, %v3351, %v3352
        %v3354 = vrot.slane %v3332, 1
        %v3355 = vrot.slane %v3060, 1
        %v3356 = vsel %vm631, %v3354, %v3355
        %v3357 = vrot.slane %v3333, 1
        %v3358 = vrot.slane %v3061, 1
        %v3359 = vsel %vm631, %v3357, %v3358
        %v3360 = vrot.slane %v3334, 1
        %v3361 = vrot.slane %v3062, 1
        %v3362 = vsel %vm631, %v3360, %v3361
        %v3363 = vrot.slane %v3335, 1
        %v3364 = vrot.slane %v3063, 1
        %v3365 = vsel %vm631, %v3363, %v3364
        %v3366 = vrot.slane %v3336, 1
        %v3367 = vrot.slane %v3064, 1
        %v3368 = vsel %vm631, %v3366, %v3367
        %v3369 = vrot.slane %v3337, 1
        %v3370 = vrot.slane %v3065, 1
        %v3371 = vsel %vm631, %v3369, %v3370
        %v3372 = vrot.slane %v3338, 1
        %v3373 = vrot.slane %v3066, 1
        %v3374 = vsel %vm631, %v3372, %v3373
        %v3375 = vrot.slane %v3339, 1
        %v3376 = vrot.slane %v3067, 1
        %v3377 = vsel %vm631, %v3375, %v3376
        %v3378 = vrot.slane %v3340, 1
        %v3379 = vrot.slane %v3068, 1
        %v3380 = vsel %vm631, %v3378, %v3379
        %v3381 = vrot.slane %v3341, 1
        %v3382 = vrot.slane %v3069, 1
        %v3383 = vsel %vm631, %v3381, %v3382
        %v3384 = vrot.slane %v3342, 1
        %v3385 = vrot.slane %v3070, 1
        %v3386 = vsel %vm631, %v3384, %v3385
        %v3387 = vrot.slane %v3343, 1
        %v3388 = vrot.slane %v3071, 1
        %v3389 = vsel %vm631, %v3387, %v3388
        %v3390 = vrot.slane %v3344, 1
        %v3391 = vrot.slane %v3072, 1
        %v3392 = vsel %vm631, %v3390, %v3391
        %3393 = vrot.lane.b32.xlu0 %v3347, 40
        %v3394 = vpop.permute.xlu0 %3393
        %3395 = vrot.lane.b32.xlu0 %v3350, 40
        %v3396 = vpop.permute.xlu0 %3395
        %3397 = vrot.lane.b32.xlu0 %v3353, 40
        %v3398 = vpop.permute.xlu0 %3397
        %3399 = vrot.lane.b32.xlu0 %v3356, 40
        %v3400 = vpop.permute.xlu0 %3399
        %3401 = vrot.lane.b32.xlu0 %v3359, 40
        %v3402 = vpop.permute.xlu0 %3401
        %3403 = vrot.lane.b32.xlu0 %v3362, 40
        %v3404 = vpop.permute.xlu0 %3403
        %3405 = vrot.lane.b32.xlu0 %v3365, 40
        %v3406 = vpop.permute.xlu0 %3405
        %3407 = vrot.lane.b32.xlu0 %v3368, 40
        %v3408 = vpop.permute.xlu0 %3407
        %3409 = vrot.lane.b32.xlu0 %v3371, 40
        %v3410 = vpop.permute.xlu0 %3409
        %3411 = vrot.lane.b32.xlu0 %v3374, 40
        %v3412 = vpop.permute.xlu0 %3411
        %3413 = vrot.lane.b32.xlu0 %v3377, 40
        %v3414 = vpop.permute.xlu0 %3413
        %3415 = vrot.lane.b32.xlu0 %v3380, 40
        %v3416 = vpop.permute.xlu0 %3415
        %3417 = vrot.lane.b32.xlu0 %v3383, 40
        %v3418 = vpop.permute.xlu0 %3417
        %3419 = vrot.lane.b32.xlu0 %v3386, 40
        %v3420 = vpop.permute.xlu0 %3419
        %3421 = vrot.lane.b32.xlu0 %v3389, 40
        %v3422 = vpop.permute.xlu0 %3421
        %3423 = vrot.lane.b32.xlu0 %v3392, 40
        %v3424 = vpop.permute.xlu0 %3423
        %v3457 = vunpack.c.l.b16 %v2369
        %v3458 = vunpack.c.l.b16 %v2370
        %v3459 = vunpack.c.l.b16 %v2371
        %v3460 = vunpack.c.l.b16 %v2372
        %v3461 = vunpack.c.l.b16 %v2373
        %v3462 = vunpack.c.l.b16 %v2374
        %v3463 = vunpack.c.l.b16 %v2375
        %v3464 = vunpack.c.l.b16 %v2376
        %v3465 = vunpack.c.l.b16 %v2377
        %v3466 = vunpack.c.l.b16 %v2378
        %v3467 = vunpack.c.l.b16 %v2379
        %v3468 = vunpack.c.l.b16 %v2380
        %v3469 = vunpack.c.l.b16 %v2381
        %v3470 = vunpack.c.l.b16 %v2382
        %v3471 = vunpack.c.l.b16 %v2383
        %v3472 = vunpack.c.l.b16 %v2384
        %v3473 = vunpack.c.l.b16 %v2385
        %v3474 = vunpack.c.l.b16 %v2386
        %v3475 = vunpack.c.l.b16 %v2387
        %v3476 = vunpack.c.l.b16 %v2388
        %v3477 = vunpack.c.l.b16 %v2389
        %v3478 = vunpack.c.l.b16 %v2390
        %v3479 = vunpack.c.l.b16 %v2391
        %v3480 = vunpack.c.l.b16 %v2392
        %v3481 = vunpack.c.l.b16 %v2393
        %v3482 = vunpack.c.l.b16 %v2394
        %v3483 = vunpack.c.l.b16 %v2395
        %v3484 = vunpack.c.l.b16 %v2396
        %v3485 = vunpack.c.l.b16 %v2397
        %v3486 = vunpack.c.l.b16 %v2398
        %v3487 = vunpack.c.l.b16 %v2399
        %v3488 = vunpack.c.l.b16 %v2400
        %v3489 = vpack.c.b16 %v3458, %v3457
        %v3490 = vpack.c.b16 %v3460, %v3459
        %v3491 = vpack.c.b16 %v3462, %v3461
        %v3492 = vpack.c.b16 %v3464, %v3463
        %v3493 = vpack.c.b16 %v3466, %v3465
        %v3494 = vpack.c.b16 %v3468, %v3467
        %v3495 = vpack.c.b16 %v3470, %v3469
        %v3496 = vpack.c.b16 %v3472, %v3471
        %v3497 = vpack.c.b16 %v3474, %v3473
        %v3498 = vpack.c.b16 %v3476, %v3475
        %v3499 = vpack.c.b16 %v3478, %v3477
        %v3500 = vpack.c.b16 %v3480, %v3479
        %v3501 = vpack.c.b16 %v3482, %v3481
        %v3502 = vpack.c.b16 %v3484, %v3483
        %v3503 = vpack.c.b16 %v3486, %v3485
        %v3504 = vpack.c.b16 %v3488, %v3487
        %3505 = vrot.lane.b32.xlu0 %v3489, 48
        %v3506 = vpop.permute.xlu0 %3505
        %3507 = vrot.lane.b32.xlu0 %v3490, 48
        %v3508 = vpop.permute.xlu0 %3507
        %3509 = vrot.lane.b32.xlu0 %v3491, 48
        %v3510 = vpop.permute.xlu0 %3509
        %3511 = vrot.lane.b32.xlu0 %v3492, 48
        %v3512 = vpop.permute.xlu0 %3511
        %3513 = vrot.lane.b32.xlu0 %v3493, 48
        %v3514 = vpop.permute.xlu0 %3513
        %3515 = vrot.lane.b32.xlu0 %v3494, 48
        %v3516 = vpop.permute.xlu0 %3515
        %3517 = vrot.lane.b32.xlu0 %v3495, 48
        %v3518 = vpop.permute.xlu0 %3517
        %3519 = vrot.lane.b32.xlu0 %v3496, 48
        %v3520 = vpop.permute.xlu0 %3519
        %3521 = vrot.lane.b32.xlu0 %v3497, 48
        %v3522 = vpop.permute.xlu0 %3521
        %3523 = vrot.lane.b32.xlu0 %v3498, 48
        %v3524 = vpop.permute.xlu0 %3523
        %3525 = vrot.lane.b32.xlu0 %v3499, 48
        %v3526 = vpop.permute.xlu0 %3525
        %3527 = vrot.lane.b32.xlu0 %v3500, 48
        %v3528 = vpop.permute.xlu0 %3527
        %3529 = vrot.lane.b32.xlu0 %v3501, 48
        %v3530 = vpop.permute.xlu0 %3529
        %3531 = vrot.lane.b32.xlu0 %v3502, 48
        %v3532 = vpop.permute.xlu0 %3531
        %3533 = vrot.lane.b32.xlu0 %v3503, 48
        %v3534 = vpop.permute.xlu0 %3533
        %3535 = vrot.lane.b32.xlu0 %v3504, 48
        %v3536 = vpop.permute.xlu0 %3535
        %v3553 = vunpack.c.l.b16 %v2401
        %v3554 = vunpack.c.l.b16 %v2402
        %v3555 = vunpack.c.l.b16 %v2403
        %v3556 = vunpack.c.l.b16 %v2404
        %v3557 = vunpack.c.l.b16 %v2405
        %v3558 = vunpack.c.l.b16 %v2406
        %v3559 = vunpack.c.l.b16 %v2407
        %v3560 = vunpack.c.l.b16 %v2408
        %v3561 = vunpack.c.l.b16 %v2409
        %v3562 = vunpack.c.l.b16 %v2410
        %v3563 = vunpack.c.l.b16 %v2411
        %v3564 = vunpack.c.l.b16 %v2412
        %v3565 = vunpack.c.l.b16 %v2413
        %v3566 = vunpack.c.l.b16 %v2414
        %v3567 = vunpack.c.l.b16 %v2415
        %v3568 = vunpack.c.l.b16 %v2416
        %v3569 = vpack.c.b16 %v3553, %v3553
        %v3570 = vpack.c.b16 %v3554, %v3554
        %v3571 = vpack.c.b16 %v3555, %v3555
        %v3572 = vpack.c.b16 %v3556, %v3556
        %v3573 = vpack.c.b16 %v3557, %v3557
        %v3574 = vpack.c.b16 %v3558, %v3558
        %v3575 = vpack.c.b16 %v3559, %v3559
        %v3576 = vpack.c.b16 %v3560, %v3560
        %v3577 = vpack.c.b16 %v3561, %v3561
        %v3578 = vpack.c.b16 %v3562, %v3562
        %v3579 = vpack.c.b16 %v3563, %v3563
        %v3580 = vpack.c.b16 %v3564, %v3564
        %v3581 = vpack.c.b16 %v3565, %v3565
        %v3582 = vpack.c.b16 %v3566, %v3566
        %v3583 = vpack.c.b16 %v3567, %v3567
        %v3584 = vpack.c.b16 %v3568, %v3568
        %v3586 = vshrl.u32 %v3489, 16
        %v3588 = vshll.u32 %v3489, 16
        %v3590 = vrot.slane %v3588, 1
        %v3591 = vor.u32 %v3586, %v3590
        %v3593 = vshll.u32 %v3569, 16
        %v3595 = vrot.slane %v3593, 1
        %v3596 = vsel %vm406, %v3591, %v3595
        %v3598 = vshrl.u32 %v3490, 16
        %v3600 = vshll.u32 %v3490, 16
        %v3602 = vrot.slane %v3600, 1
        %v3603 = vor.u32 %v3598, %v3602
        %v3605 = vshll.u32 %v3570, 16
        %v3607 = vrot.slane %v3605, 1
        %v3608 = vsel %vm406, %v3603, %v3607
        %v3610 = vshrl.u32 %v3491, 16
        %v3612 = vshll.u32 %v3491, 16
        %v3614 = vrot.slane %v3612, 1
        %v3615 = vor.u32 %v3610, %v3614
        %v3617 = vshll.u32 %v3571, 16
        %v3619 = vrot.slane %v3617, 1
        %v3620 = vsel %vm406, %v3615, %v3619
        %v3622 = vshrl.u32 %v3492, 16
        %v3624 = vshll.u32 %v3492, 16
        %v3626 = vrot.slane %v3624, 1
        %v3627 = vor.u32 %v3622, %v3626
        %v3629 = vshll.u32 %v3572, 16
        %v3631 = vrot.slane %v3629, 1
        %v3632 = vsel %vm406, %v3627, %v3631
        %v3634 = vshrl.u32 %v3493, 16
        %v3636 = vshll.u32 %v3493, 16
        %v3638 = vrot.slane %v3636, 1
        %v3639 = vor.u32 %v3634, %v3638
        %v3641 = vshll.u32 %v3573, 16
        %v3643 = vrot.slane %v3641, 1
        %v3644 = vsel %vm406, %v3639, %v3643
        %v3646 = vshrl.u32 %v3494, 16
        %v3648 = vshll.u32 %v3494, 16
        %v3650 = vrot.slane %v3648, 1
        %v3651 = vor.u32 %v3646, %v3650
        %v3653 = vshll.u32 %v3574, 16
        %v3655 = vrot.slane %v3653, 1
        %v3656 = vsel %vm406, %v3651, %v3655
        %v3658 = vshrl.u32 %v3495, 16
        %v3660 = vshll.u32 %v3495, 16
        %v3662 = vrot.slane %v3660, 1
        %v3663 = vor.u32 %v3658, %v3662
        %v3665 = vshll.u32 %v3575, 16
        %v3667 = vrot.slane %v3665, 1
        %v3668 = vsel %vm406, %v3663, %v3667
        %v3670 = vshrl.u32 %v3496, 16
        %v3672 = vshll.u32 %v3496, 16
        %v3674 = vrot.slane %v3672, 1
        %v3675 = vor.u32 %v3670, %v3674
        %v3677 = vshll.u32 %v3576, 16
        %v3679 = vrot.slane %v3677, 1
        %v3680 = vsel %vm406, %v3675, %v3679
        %v3682 = vshrl.u32 %v3497, 16
        %v3684 = vshll.u32 %v3497, 16
        %v3686 = vrot.slane %v3684, 1
        %v3687 = vor.u32 %v3682, %v3686
        %v3689 = vshll.u32 %v3577, 16
        %v3691 = vrot.slane %v3689, 1
        %v3692 = vsel %vm406, %v3687, %v3691
        %v3694 = vshrl.u32 %v3498, 16
        %v3696 = vshll.u32 %v3498, 16
        %v3698 = vrot.slane %v3696, 1
        %v3699 = vor.u32 %v3694, %v3698
        %v3701 = vshll.u32 %v3578, 16
        %v3703 = vrot.slane %v3701, 1
        %v3704 = vsel %vm406, %v3699, %v3703
        %v3706 = vshrl.u32 %v3499, 16
        %v3708 = vshll.u32 %v3499, 16
        %v3710 = vrot.slane %v3708, 1
        %v3711 = vor.u32 %v3706, %v3710
        %v3713 = vshll.u32 %v3579, 16
        %v3715 = vrot.slane %v3713, 1
        %v3716 = vsel %vm406, %v3711, %v3715
        %v3718 = vshrl.u32 %v3500, 16
        %v3720 = vshll.u32 %v3500, 16
        %v3722 = vrot.slane %v3720, 1
        %v3723 = vor.u32 %v3718, %v3722
        %v3725 = vshll.u32 %v3580, 16
        %v3727 = vrot.slane %v3725, 1
        %v3728 = vsel %vm406, %v3723, %v3727
        %v3730 = vshrl.u32 %v3501, 16
        %v3732 = vshll.u32 %v3501, 16
        %v3734 = vrot.slane %v3732, 1
        %v3735 = vor.u32 %v3730, %v3734
        %v3737 = vshll.u32 %v3581, 16
        %v3739 = vrot.slane %v3737, 1
        %v3740 = vsel %vm406, %v3735, %v3739
        %v3742 = vshrl.u32 %v3502, 16
        %v3744 = vshll.u32 %v3502, 16
        %v3746 = vrot.slane %v3744, 1
        %v3747 = vor.u32 %v3742, %v3746
        %v3749 = vshll.u32 %v3582, 16
        %v3751 = vrot.slane %v3749, 1
        %v3752 = vsel %vm406, %v3747, %v3751
        %v3754 = vshrl.u32 %v3503, 16
        %v3756 = vshll.u32 %v3503, 16
        %v3758 = vrot.slane %v3756, 1
        %v3759 = vor.u32 %v3754, %v3758
        %v3761 = vshll.u32 %v3583, 16
        %v3763 = vrot.slane %v3761, 1
        %v3764 = vsel %vm406, %v3759, %v3763
        %v3766 = vshrl.u32 %v3504, 16
        %v3768 = vshll.u32 %v3504, 16
        %v3770 = vrot.slane %v3768, 1
        %v3771 = vor.u32 %v3766, %v3770
        %v3773 = vshll.u32 %v3584, 16
        %v3775 = vrot.slane %v3773, 1
        %v3776 = vsel %vm406, %v3771, %v3775
        %3777 = vrot.lane.b32.xlu0 %v3596, 56
        %v3778 = vpop.permute.xlu0 %3777
        %3779 = vrot.lane.b32.xlu0 %v3608, 56
        %v3780 = vpop.permute.xlu0 %3779
        %3781 = vrot.lane.b32.xlu0 %v3620, 56
        %v3782 = vpop.permute.xlu0 %3781
        %3783 = vrot.lane.b32.xlu0 %v3632, 56
        %v3784 = vpop.permute.xlu0 %3783
        %3785 = vrot.lane.b32.xlu0 %v3644, 56
        %v3786 = vpop.permute.xlu0 %3785
        %3787 = vrot.lane.b32.xlu0 %v3656, 56
        %v3788 = vpop.permute.xlu0 %3787
        %3789 = vrot.lane.b32.xlu0 %v3668, 56
        %v3790 = vpop.permute.xlu0 %3789
        %3791 = vrot.lane.b32.xlu0 %v3680, 56
        %v3792 = vpop.permute.xlu0 %3791
        %3793 = vrot.lane.b32.xlu0 %v3692, 56
        %v3794 = vpop.permute.xlu0 %3793
        %3795 = vrot.lane.b32.xlu0 %v3704, 56
        %v3796 = vpop.permute.xlu0 %3795
        %3797 = vrot.lane.b32.xlu0 %v3716, 56
        %v3798 = vpop.permute.xlu0 %3797
        %3799 = vrot.lane.b32.xlu0 %v3728, 56
        %v3800 = vpop.permute.xlu0 %3799
        %3801 = vrot.lane.b32.xlu0 %v3740, 56
        %v3802 = vpop.permute.xlu0 %3801
        %3803 = vrot.lane.b32.xlu0 %v3752, 56
        %v3804 = vpop.permute.xlu0 %3803
        %3805 = vrot.lane.b32.xlu0 %v3764, 56
        %v3806 = vpop.permute.xlu0 %3805
        %3807 = vrot.lane.b32.xlu0 %v3776, 56
        %v3808 = vpop.permute.xlu0 %3807
        %v3825 = vunpack.c.l.b16 %v2417
        %v3826 = vunpack.c.l.b16 %v2418
        %v3827 = vunpack.c.l.b16 %v2419
        %v3828 = vunpack.c.l.b16 %v2420
        %v3829 = vunpack.c.l.b16 %v2421
        %v3830 = vunpack.c.l.b16 %v2422
        %v3831 = vunpack.c.l.b16 %v2423
        %v3832 = vunpack.c.l.b16 %v2424
        %v3833 = vunpack.c.l.b16 %v2425
        %v3834 = vunpack.c.l.b16 %v2426
        %v3835 = vunpack.c.l.b16 %v2427
        %v3836 = vunpack.c.l.b16 %v2428
        %v3837 = vunpack.c.l.b16 %v2429
        %v3838 = vunpack.c.l.b16 %v2430
        %v3839 = vunpack.c.l.b16 %v2431
        %v3840 = vunpack.c.l.b16 %v2432
        %v3841 = vpack.c.b16 %v3458, %v3825
        %v3842 = vpack.c.b16 %v3460, %v3826
        %v3843 = vpack.c.b16 %v3462, %v3827
        %v3844 = vpack.c.b16 %v3464, %v3828
        %v3845 = vpack.c.b16 %v3466, %v3829
        %v3846 = vpack.c.b16 %v3468, %v3830
        %v3847 = vpack.c.b16 %v3470, %v3831
        %v3848 = vpack.c.b16 %v3472, %v3832
        %v3849 = vpack.c.b16 %v3474, %v3833
        %v3850 = vpack.c.b16 %v3476, %v3834
        %v3851 = vpack.c.b16 %v3478, %v3835
        %v3852 = vpack.c.b16 %v3480, %v3836
        %v3853 = vpack.c.b16 %v3482, %v3837
        %v3854 = vpack.c.b16 %v3484, %v3838
        %v3855 = vpack.c.b16 %v3486, %v3839
        %v3856 = vpack.c.b16 %v3488, %v3840
        %v3857 = vrot.slane %v3841, 1
        %v3858 = vrot.slane %v3569, 1
        %v3859 = vsel %vm631, %v3857, %v3858
        %v3860 = vrot.slane %v3842, 1
        %v3861 = vrot.slane %v3570, 1
        %v3862 = vsel %vm631, %v3860, %v3861
        %v3863 = vrot.slane %v3843, 1
        %v3864 = vrot.slane %v3571, 1
        %v3865 = vsel %vm631, %v3863, %v3864
        %v3866 = vrot.slane %v3844, 1
        %v3867 = vrot.slane %v3572, 1
        %v3868 = vsel %vm631, %v3866, %v3867
        %v3869 = vrot.slane %v3845, 1
        %v3870 = vrot.slane %v3573, 1
        %v3871 = vsel %vm631, %v3869, %v3870
        %v3872 = vrot.slane %v3846, 1
        %v3873 = vrot.slane %v3574, 1
        %v3874 = vsel %vm631, %v3872, %v3873
        %v3875 = vrot.slane %v3847, 1
        %v3876 = vrot.slane %v3575, 1
        %v3877 = vsel %vm631, %v3875, %v3876
        %v3878 = vrot.slane %v3848, 1
        %v3879 = vrot.slane %v3576, 1
        %v3880 = vsel %vm631, %v3878, %v3879
        %v3881 = vrot.slane %v3849, 1
        %v3882 = vrot.slane %v3577, 1
        %v3883 = vsel %vm631, %v3881, %v3882
        %v3884 = vrot.slane %v3850, 1
        %v3885 = vrot.slane %v3578, 1
        %v3886 = vsel %vm631, %v3884, %v3885
        %v3887 = vrot.slane %v3851, 1
        %v3888 = vrot.slane %v3579, 1
        %v3889 = vsel %vm631, %v3887, %v3888
        %v3890 = vrot.slane %v3852, 1
        %v3891 = vrot.slane %v3580, 1
        %v3892 = vsel %vm631, %v3890, %v3891
        %v3893 = vrot.slane %v3853, 1
        %v3894 = vrot.slane %v3581, 1
        %v3895 = vsel %vm631, %v3893, %v3894
        %v3896 = vrot.slane %v3854, 1
        %v3897 = vrot.slane %v3582, 1
        %v3898 = vsel %vm631, %v3896, %v3897
        %v3899 = vrot.slane %v3855, 1
        %v3900 = vrot.slane %v3583, 1
        %v3901 = vsel %vm631, %v3899, %v3900
        %v3902 = vrot.slane %v3856, 1
        %v3903 = vrot.slane %v3584, 1
        %v3904 = vsel %vm631, %v3902, %v3903
        %3905 = vrot.lane.b32.xlu0 %v3859, 64
        %v3906 = vpop.permute.xlu0 %3905
        %3907 = vrot.lane.b32.xlu0 %v3862, 64
        %v3908 = vpop.permute.xlu0 %3907
        %3909 = vrot.lane.b32.xlu0 %v3865, 64
        %v3910 = vpop.permute.xlu0 %3909
        %3911 = vrot.lane.b32.xlu0 %v3868, 64
        %v3912 = vpop.permute.xlu0 %3911
        %3913 = vrot.lane.b32.xlu0 %v3871, 64
        %v3914 = vpop.permute.xlu0 %3913
        %3915 = vrot.lane.b32.xlu0 %v3874, 64
        %v3916 = vpop.permute.xlu0 %3915
        %3917 = vrot.lane.b32.xlu0 %v3877, 64
        %v3918 = vpop.permute.xlu0 %3917
        %3919 = vrot.lane.b32.xlu0 %v3880, 64
        %v3920 = vpop.permute.xlu0 %3919
        %3921 = vrot.lane.b32.xlu0 %v3883, 64
        %v3922 = vpop.permute.xlu0 %3921
        %3923 = vrot.lane.b32.xlu0 %v3886, 64
        %v3924 = vpop.permute.xlu0 %3923
        %3925 = vrot.lane.b32.xlu0 %v3889, 64
        %v3926 = vpop.permute.xlu0 %3925
        %3927 = vrot.lane.b32.xlu0 %v3892, 64
        %v3928 = vpop.permute.xlu0 %3927
        %3929 = vrot.lane.b32.xlu0 %v3895, 64
        %v3930 = vpop.permute.xlu0 %3929
        %3931 = vrot.lane.b32.xlu0 %v3898, 64
        %v3932 = vpop.permute.xlu0 %3931
        %3933 = vrot.lane.b32.xlu0 %v3901, 64
        %v3934 = vpop.permute.xlu0 %3933
        %3935 = vrot.lane.b32.xlu0 %v3904, 64
        %v3936 = vpop.permute.xlu0 %3935
        %3937 = vrot.lane.b32.xlu0 %v430, 72
        %v3938 = vpop.permute.xlu0 %3937
        %3939 = vrot.lane.b32.xlu0 %v442, 72
        %v3940 = vpop.permute.xlu0 %3939
        %3941 = vrot.lane.b32.xlu0 %v454, 72
        %v3942 = vpop.permute.xlu0 %3941
        %3943 = vrot.lane.b32.xlu0 %v466, 72
        %v3944 = vpop.permute.xlu0 %3943
        %3945 = vrot.lane.b32.xlu0 %v478, 72
        %v3946 = vpop.permute.xlu0 %3945
        %3947 = vrot.lane.b32.xlu0 %v490, 72
        %v3948 = vpop.permute.xlu0 %3947
        %3949 = vrot.lane.b32.xlu0 %v502, 72
        %v3950 = vpop.permute.xlu0 %3949
        %3951 = vrot.lane.b32.xlu0 %v514, 72
        %v3952 = vpop.permute.xlu0 %3951
        %3953 = vrot.lane.b32.xlu0 %v526, 72
        %v3954 = vpop.permute.xlu0 %3953
        %3955 = vrot.lane.b32.xlu0 %v538, 72
        %v3956 = vpop.permute.xlu0 %3955
        %3957 = vrot.lane.b32.xlu0 %v550, 72
        %v3958 = vpop.permute.xlu0 %3957
        %3959 = vrot.lane.b32.xlu0 %v562, 72
        %v3960 = vpop.permute.xlu0 %3959
        %3961 = vrot.lane.b32.xlu0 %v574, 72
        %v3962 = vpop.permute.xlu0 %3961
        %3963 = vrot.lane.b32.xlu0 %v586, 72
        %v3964 = vpop.permute.xlu0 %3963
        %3965 = vrot.lane.b32.xlu0 %v598, 72
        %v3966 = vpop.permute.xlu0 %3965
        %3967 = vrot.lane.b32.xlu0 %v763, 72
        %v3968 = vpop.permute.xlu0 %3967
        %v3970 = vsel %vm950, %v2497, %v2754
        %v3972 = vsel %vm950, %v2498, %v2756
        %v3974 = vsel %vm950, %v2499, %v2758
        %v3976 = vsel %vm950, %v2500, %v2760
        %v3978 = vsel %vm950, %v2501, %v2762
        %v3980 = vsel %vm950, %v2502, %v2764
        %v3982 = vsel %vm950, %v2503, %v2766
        %v3984 = vsel %vm950, %v2504, %v2768
        %v3986 = vsel %vm950, %v2505, %v2770
        %v3988 = vsel %vm950, %v2506, %v2772
        %v3990 = vsel %vm950, %v2507, %v2774
        %v3992 = vsel %vm950, %v2508, %v2776
        %v3994 = vsel %vm950, %v2509, %v2778
        %v3996 = vsel %vm950, %v2510, %v2780
        %v3998 = vsel %vm950, %v2511, %v2782
        %v4000 = vsel %vm950, %v2512, %v2784
        %v4002 = vsel %vm983, %v3970, %v2882
        %v4004 = vsel %vm983, %v3972, %v2884
        %v4006 = vsel %vm983, %v3974, %v2886
        %v4008 = vsel %vm983, %v3976, %v2888
        %v4010 = vsel %vm983, %v3978, %v2890
        %v4012 = vsel %vm983, %v3980, %v2892
        %v4014 = vsel %vm983, %v3982, %v2894
        %v4016 = vsel %vm983, %v3984, %v2896
        %v4018 = vsel %vm983, %v3986, %v2898
        %v4020 = vsel %vm983, %v3988, %v2900
        %v4022 = vsel %vm983, %v3990, %v2902
        %v4024 = vsel %vm983, %v3992, %v2904
        %v4026 = vsel %vm983, %v3994, %v2906
        %v4028 = vsel %vm983, %v3996, %v2908
        %v4030 = vsel %vm983, %v3998, %v2910
        %v4032 = vsel %vm983, %v4000, %v2912
        %v4034 = vsel %vm1016, %v4002, %v2994
        %v4036 = vsel %vm1016, %v4004, %v2996
        %v4038 = vsel %vm1016, %v4006, %v2998
        %v4040 = vsel %vm1016, %v4008, %v3000
        %v4042 = vsel %vm1016, %v4010, %v3002
        %v4044 = vsel %vm1016, %v4012, %v3004
        %v4046 = vsel %vm1016, %v4014, %v3006
        %v4048 = vsel %vm1016, %v4016, %v3008
        %v4050 = vsel %vm1016, %v4018, %v3010
        %v4052 = vsel %vm1016, %v4020, %v3012
        %v4054 = vsel %vm1016, %v4022, %v3014
        %v4056 = vsel %vm1016, %v4024, %v3016
        %v4058 = vsel %vm1016, %v4026, %v3018
        %v4060 = vsel %vm1016, %v4028, %v3020
        %v4062 = vsel %vm1016, %v4030, %v3022
        %v4064 = vsel %vm1016, %v4032, %v3024
        %v4066 = vsel %vm1049, %v4034, %v3266
        %v4068 = vsel %vm1049, %v4036, %v3268
        %v4070 = vsel %vm1049, %v4038, %v3270
        %v4072 = vsel %vm1049, %v4040, %v3272
        %v4074 = vsel %vm1049, %v4042, %v3274
        %v4076 = vsel %vm1049, %v4044, %v3276
        %v4078 = vsel %vm1049, %v4046, %v3278
        %v4080 = vsel %vm1049, %v4048, %v3280
        %v4082 = vsel %vm1049, %v4050, %v3282
        %v4084 = vsel %vm1049, %v4052, %v3284
        %v4086 = vsel %vm1049, %v4054, %v3286
        %v4088 = vsel %vm1049, %v4056, %v3288
        %v4090 = vsel %vm1049, %v4058, %v3290
        %v4092 = vsel %vm1049, %v4060, %v3292
        %v4094 = vsel %vm1049, %v4062, %v3294
        %v4096 = vsel %vm1049, %v4064, %v3296
        %v4098 = vsel %vm1082, %v4066, %v3394
        %v4100 = vsel %vm1082, %v4068, %v3396
        %v4102 = vsel %vm1082, %v4070, %v3398
        %v4104 = vsel %vm1082, %v4072, %v3400
        %v4106 = vsel %vm1082, %v4074, %v3402
        %v4108 = vsel %vm1082, %v4076, %v3404
        %v4110 = vsel %vm1082, %v4078, %v3406
        %v4112 = vsel %vm1082, %v4080, %v3408
        %v4114 = vsel %vm1082, %v4082, %v3410
        %v4116 = vsel %vm1082, %v4084, %v3412
        %v4118 = vsel %vm1082, %v4086, %v3414
        %v4120 = vsel %vm1082, %v4088, %v3416
        %v4122 = vsel %vm1082, %v4090, %v3418
        %v4124 = vsel %vm1082, %v4092, %v3420
        %v4126 = vsel %vm1082, %v4094, %v3422
        %v4128 = vsel %vm1082, %v4096, %v3424
        %v4130 = vsel %vm1115, %v4098, %v3506
        %v4132 = vsel %vm1115, %v4100, %v3508
        %v4134 = vsel %vm1115, %v4102, %v3510
        %v4136 = vsel %vm1115, %v4104, %v3512
        %v4138 = vsel %vm1115, %v4106, %v3514
        %v4140 = vsel %vm1115, %v4108, %v3516
        %v4142 = vsel %vm1115, %v4110, %v3518
        %v4144 = vsel %vm1115, %v4112, %v3520
        %v4146 = vsel %vm1115, %v4114, %v3522
        %v4148 = vsel %vm1115, %v4116, %v3524
        %v4150 = vsel %vm1115, %v4118, %v3526
        %v4152 = vsel %vm1115, %v4120, %v3528
        %v4154 = vsel %vm1115, %v4122, %v3530
        %v4156 = vsel %vm1115, %v4124, %v3532
        %v4158 = vsel %vm1115, %v4126, %v3534
        %v4160 = vsel %vm1115, %v4128, %v3536
        %v4162 = vsel %vm1148, %v4130, %v3778
        %v4164 = vsel %vm1148, %v4132, %v3780
        %v4166 = vsel %vm1148, %v4134, %v3782
        %v4168 = vsel %vm1148, %v4136, %v3784
        %v4170 = vsel %vm1148, %v4138, %v3786
        %v4172 = vsel %vm1148, %v4140, %v3788
        %v4174 = vsel %vm1148, %v4142, %v3790
        %v4176 = vsel %vm1148, %v4144, %v3792
        %v4178 = vsel %vm1148, %v4146, %v3794
        %v4180 = vsel %vm1148, %v4148, %v3796
        %v4182 = vsel %vm1148, %v4150, %v3798
        %v4184 = vsel %vm1148, %v4152, %v3800
        %v4186 = vsel %vm1148, %v4154, %v3802
        %v4188 = vsel %vm1148, %v4156, %v3804
        %v4190 = vsel %vm1148, %v4158, %v3806
        %v4192 = vsel %vm1148, %v4160, %v3808
        %v4194 = vsel %vm1181, %v4162, %v3906
        %v4196 = vsel %vm1181, %v4164, %v3908
        %v4198 = vsel %vm1181, %v4166, %v3910
        %v4200 = vsel %vm1181, %v4168, %v3912
        %v4202 = vsel %vm1181, %v4170, %v3914
        %v4204 = vsel %vm1181, %v4172, %v3916
        %v4206 = vsel %vm1181, %v4174, %v3918
        %v4208 = vsel %vm1181, %v4176, %v3920
        %v4210 = vsel %vm1181, %v4178, %v3922
        %v4212 = vsel %vm1181, %v4180, %v3924
        %v4214 = vsel %vm1181, %v4182, %v3926
        %v4216 = vsel %vm1181, %v4184, %v3928
        %v4218 = vsel %vm1181, %v4186, %v3930
        %v4220 = vsel %vm1181, %v4188, %v3932
        %v4222 = vsel %vm1181, %v4190, %v3934
        %v4224 = vsel %vm1181, %v4192, %v3936
        %v4226 = vsel %vm1257, %v4194, %v3938
        %v4228 = vsel %vm1257, %v4196, %v3940
        %v4230 = vsel %vm1257, %v4198, %v3942
        %v4232 = vsel %vm1257, %v4200, %v3944
        %v4234 = vsel %vm1257, %v4202, %v3946
        %v4236 = vsel %vm1257, %v4204, %v3948
        %v4238 = vsel %vm1257, %v4206, %v3950
        %v4240 = vsel %vm1257, %v4208, %v3952
        %v4242 = vsel %vm1257, %v4210, %v3954
        %v4244 = vsel %vm1257, %v4212, %v3956
        %v4246 = vsel %vm1257, %v4214, %v3958
        %v4248 = vsel %vm1257, %v4216, %v3960
        %v4250 = vsel %vm1257, %v4218, %v3962
        %v4252 = vsel %vm1257, %v4220, %v3964
        %v4254 = vsel %vm1257, %v4222, %v3966
        %v4256 = vsel %vm1257, %v4224, %v3968
        %v4257 = vld [vmem:[%s3] sm:$0xf]
        %v4258 = vld [vmem:[%s3 + $0x4] sm:$0xf]
        %v4259 = vld [vmem:[%s3 + $0x8] sm:$0xf]
        %v4260 = vld [vmem:[%s3 + $0xc] sm:$0xf]
        %v4261 = vld [vmem:[%s3 + $0x10] sm:$0xf]
        %v4262 = vld [vmem:[%s3 + $0x14] sm:$0xf]
        %v4263 = vld [vmem:[%s3 + $0x18] sm:$0xf]
        %v4264 = vld [vmem:[%s3 + $0x1c] sm:$0xf]
        %v4265 = vld [vmem:[%s3 + $0x20] sm:$0xf]
        %v4266 = vld [vmem:[%s3 + $0x24] sm:$0xf]
        %v4267 = vld [vmem:[%s4] sm:$0x1]
        %v4269 = vlaneseq
        %v4270 = vshrl.u32 %v4269, 7
        %v4271 = vsub.s32 0, %v4270
        %v4272 = vrot.slane %v4267, %v4271
        %v4284 = vunpack.c.l.b16 %v4257
        %v4285 = vunpack.c.l.b16 %v4258
        %v4286 = vunpack.c.l.b16 %v4259
        %v4287 = vunpack.c.l.b16 %v4260
        %v4288 = vunpack.c.l.b16 %v4261
        %v4289 = vunpack.c.l.b16 %v4262
        %v4290 = vunpack.c.l.b16 %v4263
        %v4291 = vunpack.c.l.b16 %v4264
        %v4292 = vunpack.c.l.b16 %v4265
        %v4293 = vunpack.c.l.b16 %v4266
        %v4294 = vpack.c.b16 %v4285, %v4284
        %v4295 = vpack.c.b16 %v4287, %v4286
        %v4296 = vpack.c.b16 %v4289, %v4288
        %v4297 = vpack.c.b16 %v4291, %v4290
        %v4298 = vpack.c.b16 %v4293, %v4292
        %vm4304 = vcmask 654336
        %v4305 = vsel %vm4304, %v4226, 0
        %v4307 = vsel %vm4304, %v4228, 0
        %v4309 = vsel %vm4304, %v4230, 0
        %v4311 = vsel %vm4304, %v4232, 0
        %v4313 = vsel %vm4304, %v4234, 0
        %v4315 = vsel %vm4304, %v4236, 0
        %v4317 = vsel %vm4304, %v4238, 0
        %v4319 = vsel %vm4304, %v4240, 0
        %v4321 = vsel %vm4304, %v4242, 0
        %v4323 = vsel %vm4304, %v4244, 0
        %v4325 = vsel %vm4304, %v4246, 0
        %v4327 = vsel %vm4304, %v4248, 0
        %v4329 = vsel %vm4304, %v4250, 0
        %v4331 = vsel %vm4304, %v4252, 0
        %v4333 = vsel %vm4304, %v4254, 0
        %v4335 = vsel %vm4304, %v4256, 0
        %4337 = vmatprep.subr.bf16.mxu0 0
        %4338 = vmatpush1.bf16.msra.mxu0 0
        %4339 = vmatprep.subr.bf16.mxu0 0
        %4340 = vmatpush1.bf16.msra.mxu0 0
        %4341 = vmatprep.subr.bf16.mxu0 0
        %4342 = vmatpush1.bf16.msra.mxu0 0
        %4343 = vmatprep.subr.bf16.mxu0 0
        %4344 = vmatpush1.bf16.msra.mxu0 %v4298
        %4345 = vmatprep.subr.bf16.mxu0 0
        %4346 = vmatpush1.bf16.msra.mxu0 %v4297
        %4347 = vmatprep.subr.bf16.mxu0 0
        %4348 = vmatpush1.bf16.msra.mxu0 %v4296
        %4349 = vmatprep.subr.bf16.mxu0 0
        %4350 = vmatpush1.bf16.msra.mxu0 %v4295
        %4351 = vmatprep.subr.bf16.mxu0 0
        %4352 = vmatpush1.bf16.msra.mxu0 %v4294
        %4353 = vmatprep.subr.bf16.mxu0 0
        %4354 = vmatpush2.bf16.msra.mxu0 0
        %4355 = vmatprep.subr.bf16.mxu0 0
        %4356 = vmatpush2.bf16.msra.mxu0 0
        %4357 = vmatprep.subr.bf16.mxu0 0
        %4358 = vmatpush2.bf16.msra.mxu0 0
        %4359 = vmatprep.subr.bf16.mxu0 0
        %4360 = vmatpush2.bf16.msra.mxu0 0
        %4361 = vmatprep.subr.bf16.mxu0 0
        %4362 = vmatpush2.bf16.msra.mxu0 0
        %4363 = vmatprep.subr.bf16.mxu0 0
        %4364 = vmatpush2.bf16.msra.mxu0 0
        %4365 = vmatprep.subr.bf16.mxu0 0
        %4366 = vmatpush2.bf16.msra.mxu0 0
        %4367 = vmatprep.subr.bf16.mxu0 0
        %4368 = vmatpush2.bf16.msra.mxu0 0
        %4369 = vmatprep.mubr.bf16.mxu0 0
        %4370 = vmatmul.mubr.bf16.gmra.mxu0 %v4305
        %v4371 = vpop.f32.mrf.mxu0
        %v4372 = vadd.f32 %v4272, %v4371
        %v4373 = vpop.f32.mrf.mxu0
        %v4374 = vpop.f32.mrf.mxu0
        %v4375 = vadd.f32 %v4272, %v4374
        %v4376 = vpop.f32.mrf.mxu0
        %4377 = vmatprep.mubr.bf16.mxu0 0
        %4378 = vmatmul.mubr.bf16.gmra.mxu0 %v4307
        %v4379 = vpop.f32.mrf.mxu0
        %v4380 = vadd.f32 %v4272, %v4379
        %v4381 = vpop.f32.mrf.mxu0
        %v4382 = vpop.f32.mrf.mxu0
        %v4383 = vadd.f32 %v4272, %v4382
        %v4384 = vpop.f32.mrf.mxu0
        %4385 = vmatprep.mubr.bf16.mxu0 0
        %4386 = vmatmul.mubr.bf16.gmra.mxu0 %v4309
        %v4387 = vpop.f32.mrf.mxu0
        %v4388 = vadd.f32 %v4272, %v4387
        %v4389 = vpop.f32.mrf.mxu0
        %v4390 = vpop.f32.mrf.mxu0
        %v4391 = vadd.f32 %v4272, %v4390
        %v4392 = vpop.f32.mrf.mxu0
        %4393 = vmatprep.mubr.bf16.mxu0 0
        %4394 = vmatmul.mubr.bf16.gmra.mxu0 %v4311
        %v4395 = vpop.f32.mrf.mxu0
        %v4396 = vadd.f32 %v4272, %v4395
        %v4397 = vpop.f32.mrf.mxu0
        %v4398 = vpop.f32.mrf.mxu0
        %v4399 = vadd.f32 %v4272, %v4398
        %v4400 = vpop.f32.mrf.mxu0
        %4401 = vmatprep.mubr.bf16.mxu0 0
        %4402 = vmatmul.mubr.bf16.gmra.mxu0 %v4313
        %v4403 = vpop.f32.mrf.mxu0
        %v4404 = vadd.f32 %v4272, %v4403
        %v4405 = vpop.f32.mrf.mxu0
        %v4406 = vpop.f32.mrf.mxu0
        %v4407 = vadd.f32 %v4272, %v4406
        %v4408 = vpop.f32.mrf.mxu0
        %4409 = vmatprep.mubr.bf16.mxu0 0
        %4410 = vmatmul.mubr.bf16.gmra.mxu0 %v4315
        %v4411 = vpop.f32.mrf.mxu0
        %v4412 = vadd.f32 %v4272, %v4411
        %v4413 = vpop.f32.mrf.mxu0
        %v4414 = vpop.f32.mrf.mxu0
        %v4415 = vadd.f32 %v4272, %v4414
        %v4416 = vpop.f32.mrf.mxu0
        %4417 = vmatprep.mubr.bf16.mxu0 0
        %4418 = vmatmul.mubr.bf16.gmra.mxu0 %v4317
        %v4419 = vpop.f32.mrf.mxu0
        %v4420 = vadd.f32 %v4272, %v4419
        %v4421 = vpop.f32.mrf.mxu0
        %v4422 = vpop.f32.mrf.mxu0
        %v4423 = vadd.f32 %v4272, %v4422
        %v4424 = vpop.f32.mrf.mxu0
        %4425 = vmatprep.mubr.bf16.mxu0 0
        %4426 = vmatmul.mubr.bf16.gmra.mxu0 %v4319
        %v4427 = vpop.f32.mrf.mxu0
        %v4428 = vadd.f32 %v4272, %v4427
        %v4429 = vpop.f32.mrf.mxu0
        %v4430 = vpop.f32.mrf.mxu0
        %v4431 = vadd.f32 %v4272, %v4430
        %v4432 = vpop.f32.mrf.mxu0
        %4433 = vmatprep.mubr.bf16.mxu0 0
        %4434 = vmatmul.mubr.bf16.gmra.mxu0 %v4321
        %v4435 = vpop.f32.mrf.mxu0
        %v4436 = vadd.f32 %v4272, %v4435
        %v4437 = vpop.f32.mrf.mxu0
        %v4438 = vpop.f32.mrf.mxu0
        %v4439 = vadd.f32 %v4272, %v4438
        %v4440 = vpop.f32.mrf.mxu0
        %4441 = vmatprep.mubr.bf16.mxu0 0
        %4442 = vmatmul.mubr.bf16.gmra.mxu0 %v4323
        %v4443 = vpop.f32.mrf.mxu0
        %v4444 = vadd.f32 %v4272, %v4443
        %v4445 = vpop.f32.mrf.mxu0
        %v4446 = vpop.f32.mrf.mxu0
        %v4447 = vadd.f32 %v4272, %v4446
        %v4448 = vpop.f32.mrf.mxu0
        %4449 = vmatprep.mubr.bf16.mxu0 0
        %4450 = vmatmul.mubr.bf16.gmra.mxu0 %v4325
        %v4451 = vpop.f32.mrf.mxu0
        %v4452 = vadd.f32 %v4272, %v4451
        %v4453 = vpop.f32.mrf.mxu0
        %v4454 = vpop.f32.mrf.mxu0
        %v4455 = vadd.f32 %v4272, %v4454
        %v4456 = vpop.f32.mrf.mxu0
        %4457 = vmatprep.mubr.bf16.mxu0 0
        %4458 = vmatmul.mubr.bf16.gmra.mxu0 %v4327
        %v4459 = vpop.f32.mrf.mxu0
        %v4460 = vadd.f32 %v4272, %v4459
        %v4461 = vpop.f32.mrf.mxu0
        %v4462 = vpop.f32.mrf.mxu0
        %v4463 = vadd.f32 %v4272, %v4462
        %v4464 = vpop.f32.mrf.mxu0
        %4465 = vmatprep.mubr.bf16.mxu0 0
        %4466 = vmatmul.mubr.bf16.gmra.mxu0 %v4329
        %v4467 = vpop.f32.mrf.mxu0
        %v4468 = vadd.f32 %v4272, %v4467
        %v4469 = vpop.f32.mrf.mxu0
        %v4470 = vpop.f32.mrf.mxu0
        %v4471 = vadd.f32 %v4272, %v4470
        %v4472 = vpop.f32.mrf.mxu0
        %4473 = vmatprep.mubr.bf16.mxu0 0
        %4474 = vmatmul.mubr.bf16.gmra.mxu0 %v4331
        %v4475 = vpop.f32.mrf.mxu0
        %v4476 = vadd.f32 %v4272, %v4475
        %v4477 = vpop.f32.mrf.mxu0
        %v4478 = vpop.f32.mrf.mxu0
        %v4479 = vadd.f32 %v4272, %v4478
        %v4480 = vpop.f32.mrf.mxu0
        %4481 = vmatprep.mubr.bf16.mxu0 0
        %4482 = vmatmul.mubr.bf16.gmra.mxu0 %v4333
        %v4483 = vpop.f32.mrf.mxu0
        %v4484 = vadd.f32 %v4272, %v4483
        %v4485 = vpop.f32.mrf.mxu0
        %v4486 = vpop.f32.mrf.mxu0
        %v4487 = vadd.f32 %v4272, %v4486
        %v4488 = vpop.f32.mrf.mxu0
        %4489 = vmatprep.mubr.bf16.mxu0 0
        %4490 = vmatmul.mubr.bf16.gmra.mxu0 %v4335
        %v4491 = vpop.f32.mrf.mxu0
        %v4492 = vadd.f32 %v4272, %v4491
        %v4493 = vpop.f32.mrf.mxu0
        %v4494 = vpop.f32.mrf.mxu0
        %v4495 = vadd.f32 %v4272, %v4494
        %v4496 = vpop.f32.mrf.mxu0
        %4497 = vdwg.mxu0
        %v4498 = vxor.u32 %v4372, 2147483648
        %v4499 = vxor.u32 %v4375, 2147483648
        %v4500 = vxor.u32 %v4380, 2147483648
        %v4501 = vxor.u32 %v4383, 2147483648
        %v4502 = vxor.u32 %v4388, 2147483648
        %v4503 = vxor.u32 %v4391, 2147483648
        %v4504 = vxor.u32 %v4396, 2147483648
        %v4505 = vxor.u32 %v4399, 2147483648
        %v4506 = vxor.u32 %v4404, 2147483648
        %v4507 = vxor.u32 %v4407, 2147483648
        %v4508 = vxor.u32 %v4412, 2147483648
        %v4509 = vxor.u32 %v4415, 2147483648
        %v4510 = vxor.u32 %v4420, 2147483648
        %v4511 = vxor.u32 %v4423, 2147483648
        %v4512 = vxor.u32 %v4428, 2147483648
        %v4513 = vxor.u32 %v4431, 2147483648
        %v4514 = vxor.u32 %v4436, 2147483648
        %v4515 = vxor.u32 %v4439, 2147483648
        %v4516 = vxor.u32 %v4444, 2147483648
        %v4517 = vxor.u32 %v4447, 2147483648
        %v4518 = vxor.u32 %v4452, 2147483648
        %v4519 = vxor.u32 %v4455, 2147483648
        %v4520 = vxor.u32 %v4460, 2147483648
        %v4521 = vxor.u32 %v4463, 2147483648
        %v4522 = vxor.u32 %v4468, 2147483648
        %v4523 = vxor.u32 %v4471, 2147483648
        %v4524 = vxor.u32 %v4476, 2147483648
        %v4525 = vxor.u32 %v4479, 2147483648
        %v4526 = vxor.u32 %v4484, 2147483648
        %v4527 = vxor.u32 %v4487, 2147483648
        %v4528 = vxor.u32 %v4492, 2147483648
        %v4529 = vxor.u32 %v4495, 2147483648
        %v4530 = vmul.f32 %v4498, 1.442695
        %v4531 = vpow.pop %v4530
        %v4532 = vmul.f32 %v4499, 1.442695
        %v4533 = vpow.pop %v4532
        %v4534 = vmul.f32 %v4500, 1.442695
        %v4535 = vpow.pop %v4534
        %v4536 = vmul.f32 %v4501, 1.442695
        %v4537 = vpow.pop %v4536
        %v4538 = vmul.f32 %v4502, 1.442695
        %v4539 = vpow.pop %v4538
        %v4540 = vmul.f32 %v4503, 1.442695
        %v4541 = vpow.pop %v4540
        %v4542 = vmul.f32 %v4504, 1.442695
        %v4543 = vpow.pop %v4542
        %v4544 = vmul.f32 %v4505, 1.442695
        %v4545 = vpow.pop %v4544
        %v4546 = vmul.f32 %v4506, 1.442695
        %v4547 = vpow.pop %v4546
        %v4548 = vmul.f32 %v4507, 1.442695
        %v4549 = vpow.pop %v4548
        %v4550 = vmul.f32 %v4508, 1.442695
        %v4551 = vpow.pop %v4550
        %v4552 = vmul.f32 %v4509, 1.442695
        %v4553 = vpow.pop %v4552
        %v4554 = vmul.f32 %v4510, 1.442695
        %v4555 = vpow.pop %v4554
        %v4556 = vmul.f32 %v4511, 1.442695
        %v4557 = vpow.pop %v4556
        %v4558 = vmul.f32 %v4512, 1.442695
        %v4559 = vpow.pop %v4558
        %v4560 = vmul.f32 %v4513, 1.442695
        %v4561 = vpow.pop %v4560
        %v4562 = vmul.f32 %v4514, 1.442695
        %v4563 = vpow.pop %v4562
        %v4564 = vmul.f32 %v4515, 1.442695
        %v4565 = vpow.pop %v4564
        %v4566 = vmul.f32 %v4516, 1.442695
        %v4567 = vpow.pop %v4566
        %v4568 = vmul.f32 %v4517, 1.442695
        %v4569 = vpow.pop %v4568
        %v4570 = vmul.f32 %v4518, 1.442695
        %v4571 = vpow.pop %v4570
        %v4572 = vmul.f32 %v4519, 1.442695
        %v4573 = vpow.pop %v4572
        %v4574 = vmul.f32 %v4520, 1.442695
        %v4575 = vpow.pop %v4574
        %v4576 = vmul.f32 %v4521, 1.442695
        %v4577 = vpow.pop %v4576
        %v4578 = vmul.f32 %v4522, 1.442695
        %v4579 = vpow.pop %v4578
        %v4580 = vmul.f32 %v4523, 1.442695
        %v4581 = vpow.pop %v4580
        %v4582 = vmul.f32 %v4524, 1.442695
        %v4583 = vpow.pop %v4582
        %v4584 = vmul.f32 %v4525, 1.442695
        %v4585 = vpow.pop %v4584
        %v4586 = vmul.f32 %v4526, 1.442695
        %v4587 = vpow.pop %v4586
        %v4588 = vmul.f32 %v4527, 1.442695
        %v4589 = vpow.pop %v4588
        %v4590 = vmul.f32 %v4528, 1.442695
        %v4591 = vpow.pop %v4590
        %v4592 = vmul.f32 %v4529, 1.442695
        %v4593 = vpow.pop %v4592
        %v4594 = vadd.f32 %v4531, 1.0
        %v4595 = vadd.f32 %v4533, 1.0
        %v4596 = vadd.f32 %v4535, 1.0
        %v4597 = vadd.f32 %v4537, 1.0
        %v4598 = vadd.f32 %v4539, 1.0
        %v4599 = vadd.f32 %v4541, 1.0
        %v4600 = vadd.f32 %v4543, 1.0
        %v4601 = vadd.f32 %v4545, 1.0
        %v4602 = vadd.f32 %v4547, 1.0
        %v4603 = vadd.f32 %v4549, 1.0
        %v4604 = vadd.f32 %v4551, 1.0
        %v4605 = vadd.f32 %v4553, 1.0
        %v4606 = vadd.f32 %v4555, 1.0
        %v4607 = vadd.f32 %v4557, 1.0
        %v4608 = vadd.f32 %v4559, 1.0
        %v4609 = vadd.f32 %v4561, 1.0
        %v4610 = vadd.f32 %v4563, 1.0
        %v4611 = vadd.f32 %v4565, 1.0
        %v4612 = vadd.f32 %v4567, 1.0
        %v4613 = vadd.f32 %v4569, 1.0
        %v4614 = vadd.f32 %v4571, 1.0
        %v4615 = vadd.f32 %v4573, 1.0
        %v4616 = vadd.f32 %v4575, 1.0
        %v4617 = vadd.f32 %v4577, 1.0
        %v4618 = vadd.f32 %v4579, 1.0
        %v4619 = vadd.f32 %v4581, 1.0
        %v4620 = vadd.f32 %v4583, 1.0
        %v4621 = vadd.f32 %v4585, 1.0
        %v4622 = vadd.f32 %v4587, 1.0
        %v4623 = vadd.f32 %v4589, 1.0
        %v4624 = vadd.f32 %v4591, 1.0
        %v4625 = vadd.f32 %v4593, 1.0
        %v4626 = vrcp.pop %v4594
        %v4627 = vmul.f32 1.0, %v4626
        %v4628 = vrcp.pop %v4595
        %v4629 = vmul.f32 1.0, %v4628
        %v4630 = vrcp.pop %v4596
        %v4631 = vmul.f32 1.0, %v4630
        %v4632 = vrcp.pop %v4597
        %v4633 = vmul.f32 1.0, %v4632
        %v4634 = vrcp.pop %v4598
        %v4635 = vmul.f32 1.0, %v4634
        %v4636 = vrcp.pop %v4599
        %v4637 = vmul.f32 1.0, %v4636
        %v4638 = vrcp.pop %v4600
        %v4639 = vmul.f32 1.0, %v4638
        %v4640 = vrcp.pop %v4601
        %v4641 = vmul.f32 1.0, %v4640
        %v4642 = vrcp.pop %v4602
        %v4643 = vmul.f32 1.0, %v4642
        %v4644 = vrcp.pop %v4603
        %v4645 = vmul.f32 1.0, %v4644
        %v4646 = vrcp.pop %v4604
        %v4647 = vmul.f32 1.0, %v4646
        %v4648 = vrcp.pop %v4605
        %v4649 = vmul.f32 1.0, %v4648
        %v4650 = vrcp.pop %v4606
        %v4651 = vmul.f32 1.0, %v4650
        %v4652 = vrcp.pop %v4607
        %v4653 = vmul.f32 1.0, %v4652
        %v4654 = vrcp.pop %v4608
        %v4655 = vmul.f32 1.0, %v4654
        %v4656 = vrcp.pop %v4609
        %v4657 = vmul.f32 1.0, %v4656
        %v4658 = vrcp.pop %v4610
        %v4659 = vmul.f32 1.0, %v4658
        %v4660 = vrcp.pop %v4611
        %v4661 = vmul.f32 1.0, %v4660
        %v4662 = vrcp.pop %v4612
        %v4663 = vmul.f32 1.0, %v4662
        %v4664 = vrcp.pop %v4613
        %v4665 = vmul.f32 1.0, %v4664
        %v4666 = vrcp.pop %v4614
        %v4667 = vmul.f32 1.0, %v4666
        %v4668 = vrcp.pop %v4615
        %v4669 = vmul.f32 1.0, %v4668
        %v4670 = vrcp.pop %v4616
        %v4671 = vmul.f32 1.0, %v4670
        %v4672 = vrcp.pop %v4617
        %v4673 = vmul.f32 1.0, %v4672
        %v4674 = vrcp.pop %v4618
        %v4675 = vmul.f32 1.0, %v4674
        %v4676 = vrcp.pop %v4619
        %v4677 = vmul.f32 1.0, %v4676
        %v4678 = vrcp.pop %v4620
        %v4679 = vmul.f32 1.0, %v4678
        %v4680 = vrcp.pop %v4621
        %v4681 = vmul.f32 1.0, %v4680
        %v4682 = vrcp.pop %v4622
        %v4683 = vmul.f32 1.0, %v4682
        %v4684 = vrcp.pop %v4623
        %v4685 = vmul.f32 1.0, %v4684
        %v4686 = vrcp.pop %v4624
        %v4687 = vmul.f32 1.0, %v4686
        %v4688 = vrcp.pop %v4625
        %v4689 = vmul.f32 1.0, %v4688
        %4690 = vst [vmem:[%s217] sm:$0xff] %v4627
        %4691 = vst [vmem:[%s217 + $0x8] sm:$0xff] %v4629
        %4692 = vst [vmem:[%s217 + $0x10] sm:$0xff] %v4631
        %4693 = vst [vmem:[%s217 + $0x18] sm:$0xff] %v4633
        %4694 = vst [vmem:[%s217 + $0x20] sm:$0xff] %v4635
        %4695 = vst [vmem:[%s217 + $0x28] sm:$0xff] %v4637
        %4696 = vst [vmem:[%s217 + $0x30] sm:$0xff] %v4639
        %4697 = vst [vmem:[%s217 + $0x38] sm:$0xff] %v4641
        %4698 = vst [vmem:[%s217 + $0x40] sm:$0xff] %v4643
        %4699 = vst [vmem:[%s217 + $0x48] sm:$0xff] %v4645
        %4700 = vst [vmem:[%s217 + $0x50] sm:$0xff] %v4647
        %4701 = vst [vmem:[%s217 + $0x58] sm:$0xff] %v4649
        %4702 = vst [vmem:[%s217 + $0x60] sm:$0xff] %v4651
        %4703 = vst [vmem:[%s217 + $0x68] sm:$0xff] %v4653
        %4704 = vst [vmem:[%s217 + $0x70] sm:$0xff] %v4655
        %4705 = vst [vmem:[%s217 + $0x78] sm:$0xff] %v4657
        %4706 = vst [vmem:[%s217 + $0x80] sm:$0xff] %v4659
        %4707 = vst [vmem:[%s217 + $0x88] sm:$0xff] %v4661
        %4708 = vst [vmem:[%s217 + $0x90] sm:$0xff] %v4663
        %4709 = vst [vmem:[%s217 + $0x98] sm:$0xff] %v4665
        %4710 = vst [vmem:[%s217 + $0xa0] sm:$0xff] %v4667
        %4711 = vst [vmem:[%s217 + $0xa8] sm:$0xff] %v4669
        %4712 = vst [vmem:[%s217 + $0xb0] sm:$0xff] %v4671
        %4713 = vst [vmem:[%s217 + $0xb8] sm:$0xff] %v4673
        %4714 = vst [vmem:[%s217 + $0xc0] sm:$0xff] %v4675
        %4715 = vst [vmem:[%s217 + $0xc8] sm:$0xff] %v4677
        %4716 = vst [vmem:[%s217 + $0xd0] sm:$0xff] %v4679
        %4717 = vst [vmem:[%s217 + $0xd8] sm:$0xff] %v4681
        %4718 = vst [vmem:[%s217 + $0xe0] sm:$0xff] %v4683
        %4719 = vst [vmem:[%s217 + $0xe8] sm:$0xff] %v4685
        %4720 = vst [vmem:[%s217 + $0xf0] sm:$0xff] %v4687
        %4721 = vst [vmem:[%s217 + $0xf8] sm:$0xff] %v4689
        %s4722 = sand.u32 %s137, 1
        %s4723 = scalar_lea.sflag [#allocation4], %s4722
        %s4724 = sand.u32 %s137, 1
        %s4725 = smul.addr %s4724, 256
        %s4726 = scalar_lea.vmem [#allocation3], %s4725
        // Predicated region
        $region41: #{tpu_custom_call.1} parent=39 // pred_check
          %p4727 = pneg %p147
        $region42: #{tpu_custom_call.1} parent=39 // pred_check_branch
          %4729 = sbr.rel (%p4727) target = $region44
        $region43: #{tpu_custom_call.1} parent=39 // pred_region
          %s4731 = ssub.s32 4096, 4096
          %4732 = vsyncadd %s4723, %s4731
          %s4733 = smul.addr %s19, 32
          %s4734 = smul.addr %s4733, 128
          %s4735 = scalar_lea.hbm %s5, %s4734
          %s4736 = sshll.u32 %s4726, 4
          %s4737 = int_to_ptr.vmem [resolvable:$true] %s4736
          %4742 = dma.vmem_to_hbm [thread:$0]  %s4737, 4096, %s4735, %s4723, 128, 128, 8
        $region44: #{tpu_custom_call.1} parent=39 // pred_fallthru
          _
      $region40: #{tpu_custom_call.1} parent=5 // pred_fallthru
        _
      %p4743 = scmp.le.s32.totalorder 2, %s14
      // Predicated region
      $region45: #{tpu_custom_call.1} parent=5 // pred_check
        %p4744 = pneg %p4743
      $region46: #{tpu_custom_call.1} parent=5 // pred_check_branch
        %4746 = sbr.rel (%p4744) target = $region48
      $region47: #{tpu_custom_call.1} parent=5 // pred_region
        %s4747 = ssub.s32 %s14, 2
        // Predicated region
        $region49: #{tpu_custom_call.1} parent=47 // pred_check
          %p4748 = pneg %p153
        $region50: #{tpu_custom_call.1} parent=47 // pred_check_branch
          %4750 = sbr.rel (%p4748) target = $region52
        $region51: #{tpu_custom_call.1} parent=47 // pred_region
          %s4751 = sand.u32 %s138, 1
          %s4752 = scalar_lea.sflag [#allocation4], %s4751
          %s4753 = sand.u32 %s138, 1
          %s4754 = smul.addr %s4753, 256
          %s4755 = scalar_lea.vmem [#allocation3], %s4754
          %4756 = dma.done %s4752, 4096
        $region52: #{tpu_custom_call.1} parent=47 // pred_fallthru
          _
      $region48: #{tpu_custom_call.1} parent=5 // pred_fallthru
        _
    $region6: #{tpu_custom_call.1} parent=1 // loop_footer
      %s18 = sadd.s32 1, %s14
    $region7: #{tpu_custom_call.1} parent=1 // loop_footer_branch
      %13 = sbr.rel target = $region3
    $region8: #{tpu_custom_call.1} parent=1 // loop_exit
      _
    %4757 = vsyncpa [#allocation4], 1
    %s4758 = scalar_lea.sflag [#allocation4], 1
    %4759 = vsyncpa %s4758, 1

</llo_original>
